<compile_context>
chip_gen: v7x
topology: tpu7x:2x2x1
jax: 0.10.0
libtpu: 0.0.40
codegen_flags: <defaults>
</compile_context>

<pallas_src>
import numpy as np
import jax
import jax.numpy as jnp
from jax import lax
from jax.experimental import pallas as pl
from jax.experimental.pallas import tpu as pltpu


# ------------------------------------------------------------------ operators
def gradient_matrix(n: int) -> np.ndarray:
    """Dense operator implementing torch.gradient (spacing=1, edge_order=1)."""
    M = np.zeros((n, n), dtype=np.float64)
    M[0, 0], M[0, 1] = -1.0, 1.0
    M[n - 1, n - 2], M[n - 1, n - 1] = -1.0, 1.0
    for i in range(1, n - 1):
        M[i, i - 1], M[i, i + 1] = -0.5, 0.5
    return M


def blur_matrix(n: int, k1d: np.ndarray, pad: int) -> np.ndarray:
    """Dense operator for 1-D Gaussian correlation with replicate padding."""
    M = np.zeros((n, n), dtype=np.float64)
    for i in range(n):
        for t, kv in enumerate(k1d):
            j = min(max(i + t - pad, 0), n - 1)
            M[i, j] += float(kv)
    return M


# --------------------------------------------------------------------- kernel
def hess_block_kernel(a_ref, lcat0_ref, lcat1_ref, l0_ref, rcat_ref,
                      w1_ref, b1_ref, w2_ref, b2_ref, o_ref):
    # One-pass bf16 MXU matmuls with f32 accumulation (DEFAULT precision).
    dot = lambda a, b: jnp.dot(a, b, preferred_element_type=jnp.float32)

    DH, W = a_ref.shape
    A = a_ref[...]                                   # (DH, W) raw volume slice

    # Single fused right-multiply along w: [blur | grad*blur | grad^2*blur].
    Bcat = dot(A, rcat_ref[...])                     # (DH, 3W)
    B0 = Bcat[:, :W]                                 # lane-tile aligned slices
    B1 = Bcat[:, W:2 * W]
    B2 = Bcat[:, 2 * W:]

    # Fused left-multiplies -> Hessian elements.
    F0 = dot(lcat0_ref[...], B0)                     # (3DH, W): [L11;L12;L22]@B0
    F1 = dot(lcat1_ref[...], B1)                     # (2DH, W): [L1 ;L2 ]@B1
    F5 = dot(l0_ref[...], B2)                        # ( DH, W): L0@B2

    # combinations_with_replacement([d, h, w], 2) order.
    feats = (
        F0[:DH],            # (d, d)
        F0[DH:2 * DH],      # (d, h)
        F1[:DH],            # (d, w)
        F0[2 * DH:],        # (h, h)
        F1[DH:],            # (h, w)
        F5,                 # (w, w)
    )

    # Per-voxel MLP; the constant scale channel is already folded into b1.
    out = None
    for j in range(10):
        acc = w1_ref[j, 0] * feats[0] + b1_ref[j]
        for k in range(1, 6):
            acc = acc + w1_ref[j, k] * feats[k]
        acc = jnp.maximum(acc, 0.0)                  # ReLU
        term = w2_ref[j] * acc
        out = term if out is None else out + term
    out = out + b2_ref[0]

    # Sigmoid via EUP exp + approximate reciprocal (keeps the VALU slot free).
    o_ref[...] = pl.reciprocal(1.0 + jnp.exp(-out), approx=True)


# -------------------------------------------------------------------- wrapper
def hess_block_forward(x, params):
    (Lcat0, Lcat1, L0, Rcat, w1, b1, w2, b2) = params
    B, C, D, H, W = x.shape
    assert C == 1, "GaussianBlur3D is Conv3d(1, 1, ...): channel dim must be 1"
    DH = D * H
    A = x.reshape(B, DH, W).astype(jnp.float32)

    # Grid-constant operators: constant index_map -> DMA'd once and kept
    # resident across grid steps.
    def op_spec(shape):
        return pl.BlockSpec(shape, lambda b: (0, 0))

    smem = pl.BlockSpec(memory_space=pltpu.MemorySpace.SMEM)

    out2d = pl.pallas_call(
        hess_block_kernel,
        out_shape=jax.ShapeDtypeStruct((B, DH, W), jnp.float32),
        grid=(B,),
        in_specs=[
            pl.BlockSpec((None, DH, W), lambda b: (b, 0, 0)),   # volume
            op_spec((3 * DH, DH)),                              # [L11;L12;L22]
            op_spec((2 * DH, DH)),                              # [L1 ;L2 ]
            op_spec((DH, DH)),                                  # L0
            op_spec((W, 3 * W)),                                # [R0 |R1 |R2]
            smem, smem, smem, smem,                             # MLP params
        ],
        out_specs=pl.BlockSpec((None, DH, W), lambda b: (b, 0, 0)),
        compiler_params=pltpu.CompilerParams(
            dimension_semantics=("parallel",)),   # batches are independent
    )(A, Lcat0, Lcat1, L0, Rcat, w1, b1, w2, b2)

    return out2d.reshape(B, D, H, W)[:, None, :, :, :]   # (B, 1, D, H, W)


# --------------------------------------------------------- parameters (init)
def build_params(start_scale, D, H, W, key):
    # GaussianBlur3D.__init__ / set_weights (host-side, float64 for accuracy).
    ks = 1 + 6 * int(start_scale)
    pad = ks // 2
    sigma = float(np.clip(start_scale, 0.1, 10.0))
    k1 = np.exp(-((np.arange(ks, dtype=np.float64) - pad) ** 2)
                / (2.0 * sigma ** 2))
    k1n = k1 / k1.sum()                       # normalized separable factor

    Gd = blur_matrix(D, k1n, pad)
    Gh = blur_matrix(H, k1n, pad)
    Gw = blur_matrix(W, k1n, pad)
    Dd = gradient_matrix(D)
    Dh = gradient_matrix(H)
    Dw = gradient_matrix(W)

    LG = np.kron(Gd, Gh)                      # blur over (d, h)
    KD = np.kron(Dd, np.eye(H))               # d/dd on the (DH) row index
    KH = np.kron(np.eye(D), Dh)               # d/dh on the (DH) row index

    # Composite left operators (depth-2 in-kernel chain).
    L0 = LG
    L1 = KD @ LG
    L2 = KH @ LG
    L11 = KD @ L1
    L12 = KH @ L1
    L22 = KH @ L2
    # Composite right operators (act along w via right-multiply).
    R0 = Gw.T
    R1 = (Dw @ Gw).T
    R2 = (Dw @ Dw @ Gw).T

    # Fused operator blocks (one wide right matmul, three tall left matmuls).
    Lcat0 = np.vstack([L11, L12, L22])        # (3*DH, DH) -> features dd,dh,hh
    Lcat1 = np.vstack([L1, L2])               # (2*DH, DH) -> features dw,hw
    Rcat = np.hstack([R0, R1, R2])            # (W, 3*W)

    f32 = lambda m: jnp.asarray(np.asarray(m, dtype=np.float32))

    # nn.Linear(7,10) / nn.Linear(10,1) weights, deterministic synthetic init.
    k1_, k2_, k3_, k4_ = jax.random.split(key, 4)
    w1 = jax.random.uniform(k1_, (10, 7), jnp.float32, -0.3, 0.3)
    b1 = jax.random.uniform(k2_, (10,), jnp.float32, -0.3, 0.3)
    w2 = jax.random.uniform(k3_, (10,), jnp.float32, -0.3, 0.3)
    b2 = jax.random.uniform(k4_, (), jnp.float32, -0.3, 0.3)

    # Fold the constant scale channel into the hidden bias: b1' = b1 + s*w1[:,6]
    b1_fold = b1 + jnp.float32(start_scale) * w1[:, 6]
    w1_hess = w1[:, :6]
    b2_arr = b2.reshape(1)

    kernel_params = (f32(Lcat0), f32(Lcat1), f32(L0), f32(Rcat),
                     w1_hess, b1_fold, w2, b2_arr)
    ref_params = (k1n.astype(np.float32), pad, w1, b1, w2, b2)
    return kernel_params, ref_params


# ------------------------------------------------------- pure-JAX reference
def _tgrad(f, axis):
    n = f.shape[axis]
    left = lax.slice_in_dim(f, 0, n - 2, axis=axis)
    right = lax.slice_in_dim(f, 2, n, axis=axis)
    interior = 0.5 * (right - left)
    first = (lax.slice_in_dim(f, 1, 2, axis=axis)
             - lax.slice_in_dim(f, 0, 1, axis=axis))
    last = (lax.slice_in_dim(f, n - 1, n, axis=axis)
            - lax.slice_in_dim(f, n - 2, n - 1, axis=axis))
    return jnp.concatenate([first, interior, last], axis=axis)


def reference_forward(x, k1n, pad, w1, b1, w2, b2, scale):
    v = x[:, 0].astype(jnp.float32)                  # (B, D, H, W)
    vp = jnp.pad(v, ((0, 0), (pad, pad), (pad, pad), (pad, pad)), mode="edge")
    k = jnp.asarray(k1n)

    def conv_axis(u, axis):
        n_out = u.shape[axis] - 2 * pad
        acc = jnp.zeros_like(lax.slice_in_dim(u, 0, n_out, axis=axis))
        for t in range(k.shape[0]):
            acc = acc + k[t] * lax.slice_in_dim(u, t, t + n_out, axis=axis)
        return acc

    y = conv_axis(conv_axis(conv_axis(vp, 1), 2), 3)
    gd, gh, gw = _tgrad(y, 1), _tgrad(y, 2), _tgrad(y, 3)
    feats = jnp.stack([
        _tgrad(gd, 1), _tgrad(gd, 2), _tgrad(gd, 3),
        _tgrad(gh, 2), _tgrad(gh, 3), _tgrad(gw, 3)], axis=-1)
    scale_feat = jnp.full(feats.shape[:-1] + (1,), scale, jnp.float32)
    feats = jnp.concatenate([feats, scale_feat], axis=-1)      # (B,D,H,W,7)
    h = jnp.maximum(
        jnp.einsum("bdhwk,jk->bdhwj", feats, w1,
                   precision=jax.lax.Precision.HIGHEST) + b1, 0.0)
    o = jax.nn.sigmoid(
        jnp.einsum("bdhwj,j->bdhw", h, w2,
                   precision=jax.lax.Precision.HIGHEST) + b2)
    return o[:, None]                                          # (B,1,D,H,W)


# ------------------------------------------------------------------------ main
if __name__ == "__main__":
    B, C, D, H, W = 2, 1, 8, 16, 128    # D*H = 128 and W = 128 -> MXU friendly
    start_scale = 1.0                   # HessBlock(start_scale=1.0, ...)

    key = jax.random.PRNGKey(0)
    kx, kp = jax.random.split(key)
    x = jax.random.normal(kx, (B, C, D, H, W), jnp.float32)

    params, (k1n, pad, w1, b1, w2, b2) = build_params(start_scale, D, H, W, kp)

    out = jax.block_until_ready(hess_block_forward(x, params))
    assert out.shape == (B, 1, D, H, W)

    ref = jax.block_until_ready(
        reference_forward(x, k1n, pad, w1, b1, w2, b2, start_scale))
    np.testing.assert_allclose(np.asarray(out), np.asarray(ref), atol=1e-2)

    print("KERNEL_OK")
</pallas_src>

<mosaic_0001>
module attributes {stable_mosaic.version = 11 : i64} {
  func.func @hess_block_kernel(%arg0: i32, %arg1: memref<1x128x128xf32, #tpu.memory_space<vmem>>, %arg2: memref<384x128xf32, #tpu.memory_space<vmem>>, %arg3: memref<256x128xf32, #tpu.memory_space<vmem>>, %arg4: memref<128x128xf32, #tpu.memory_space<vmem>>, %arg5: memref<128x384xf32, #tpu.memory_space<vmem>>, %arg6: memref<10x6xf32, #tpu.memory_space<smem>>, %arg7: memref<10xf32, #tpu.memory_space<smem>>, %arg8: memref<10xf32, #tpu.memory_space<smem>>, %arg9: memref<1xf32, #tpu.memory_space<smem>>, %arg10: memref<1x128x128xf32, #tpu.memory_space<vmem>>) attributes {dimension_semantics = [#tpu.dimension_semantics<parallel>], iteration_bounds = array<i64: 2>, scalar_prefetch = 0 : i64, scratch_operands = 0 : i64, tpu.core_type = #tpu.core_type<tc>, window_params = [{transform_indices = @transform_0, window_bounds = array<i64: 1, 128, 128>}, {pipeline_mode = #tpu.pipeline_mode<synchronous>, transform_indices = @transform_1, window_bounds = array<i64: 384, 128>}, {pipeline_mode = #tpu.pipeline_mode<synchronous>, transform_indices = @transform_2, window_bounds = array<i64: 256, 128>}, {pipeline_mode = #tpu.pipeline_mode<synchronous>, transform_indices = @transform_3, window_bounds = array<i64: 128, 128>}, {pipeline_mode = #tpu.pipeline_mode<synchronous>, transform_indices = @transform_4, window_bounds = array<i64: 128, 384>}, {transform_indices = @transform_5, window_bounds = array<i64: 10, 6>}, {transform_indices = @transform_6, window_bounds = array<i64: 10>}, {transform_indices = @transform_7, window_bounds = array<i64: 10>}, {transform_indices = @transform_8, window_bounds = array<i64: 1>}, {transform_indices = @transform_9, window_bounds = array<i64: 1, 128, 128>}]} {
    %c0 = arith.constant 0 : index
    %c0_0 = arith.constant 0 : index
    %c0_1 = arith.constant 0 : index
    %0 = vector.load %arg1[%c0, %c0_0, %c0_1] : memref<1x128x128xf32, #tpu.memory_space<vmem>>, vector<1x128x128xf32>
    %1 = vector.shape_cast %0 : vector<1x128x128xf32> to vector<128x128xf32>
    %c0_2 = arith.constant 0 : index
    %c0_3 = arith.constant 0 : index
    %2 = vector.load %arg5[%c0_2, %c0_3] : memref<128x384xf32, #tpu.memory_space<vmem>>, vector<128x384xf32>
    %cst = arith.constant dense<0.000000e+00> : vector<128x384xf32>
    %3 = tpu.matmul %1, %2, %cst {dimension_numbers = #tpu.dot_dimension_numbers<[1], [0], [0], [1], [0, 0, 1, 1], [], []>} : vector<128x128xf32>, vector<128x384xf32>, vector<128x384xf32> -> vector<128x384xf32>
    %4 = vector.extract_strided_slice %3 {offsets = [0, 0], sizes = [128, 128], strides = [1, 1]} : vector<128x384xf32> to vector<128x128xf32>
    %5 = vector.extract_strided_slice %3 {offsets = [0, 128], sizes = [128, 128], strides = [1, 1]} : vector<128x384xf32> to vector<128x128xf32>
    %6 = vector.extract_strided_slice %3 {offsets = [0, 256], sizes = [128, 128], strides = [1, 1]} : vector<128x384xf32> to vector<128x128xf32>
    %c0_4 = arith.constant 0 : index
    %c0_5 = arith.constant 0 : index
    %7 = vector.load %arg2[%c0_4, %c0_5] : memref<384x128xf32, #tpu.memory_space<vmem>>, vector<384x128xf32>
    %cst_6 = arith.constant dense<0.000000e+00> : vector<384x128xf32>
    %8 = tpu.matmul %7, %4, %cst_6 {dimension_numbers = #tpu.dot_dimension_numbers<[1], [0], [0], [1], [0, 0, 1, 1], [], []>} : vector<384x128xf32>, vector<128x128xf32>, vector<384x128xf32> -> vector<384x128xf32>
    %c0_7 = arith.constant 0 : index
    %c0_8 = arith.constant 0 : index
    %9 = vector.load %arg3[%c0_7, %c0_8] : memref<256x128xf32, #tpu.memory_space<vmem>>, vector<256x128xf32>
    %cst_9 = arith.constant dense<0.000000e+00> : vector<256x128xf32>
    %10 = tpu.matmul %9, %5, %cst_9 {dimension_numbers = #tpu.dot_dimension_numbers<[1], [0], [0], [1], [0, 0, 1, 1], [], []>} : vector<256x128xf32>, vector<128x128xf32>, vector<256x128xf32> -> vector<256x128xf32>
    %c0_10 = arith.constant 0 : index
    %c0_11 = arith.constant 0 : index
    %11 = vector.load %arg4[%c0_10, %c0_11] : memref<128x128xf32, #tpu.memory_space<vmem>>, vector<128x128xf32>
    %cst_12 = arith.constant dense<0.000000e+00> : vector<128x128xf32>
    %12 = tpu.matmul %11, %6, %cst_12 {dimension_numbers = #tpu.dot_dimension_numbers<[1], [0], [0], [1], [0, 0, 1, 1], [], []>} : vector<128x128xf32>, vector<128x128xf32>, vector<128x128xf32> -> vector<128x128xf32>
    %13 = vector.extract_strided_slice %8 {offsets = [0, 0], sizes = [128, 128], strides = [1, 1]} : vector<384x128xf32> to vector<128x128xf32>
    %14 = vector.extract_strided_slice %8 {offsets = [128, 0], sizes = [128, 128], strides = [1, 1]} : vector<384x128xf32> to vector<128x128xf32>
    %15 = vector.extract_strided_slice %10 {offsets = [0, 0], sizes = [128, 128], strides = [1, 1]} : vector<256x128xf32> to vector<128x128xf32>
    %16 = vector.extract_strided_slice %8 {offsets = [256, 0], sizes = [128, 128], strides = [1, 1]} : vector<384x128xf32> to vector<128x128xf32>
    %17 = vector.extract_strided_slice %10 {offsets = [128, 0], sizes = [128, 128], strides = [1, 1]} : vector<256x128xf32> to vector<128x128xf32>
    %c0_13 = arith.constant 0 : index
    %c0_14 = arith.constant 0 : index
    %18 = memref.load %arg6[%c0_13, %c0_14] : memref<10x6xf32, #tpu.memory_space<smem>>
    %19 = vector.broadcast %18 : f32 to vector<128x128xf32>
    %20 = arith.mulf %19, %13 : vector<128x128xf32>
    %c0_15 = arith.constant 0 : index
    %21 = memref.load %arg7[%c0_15] : memref<10xf32, #tpu.memory_space<smem>>
    %22 = vector.broadcast %21 : f32 to vector<128x128xf32>
    %23 = arith.addf %20, %22 : vector<128x128xf32>
    %c0_16 = arith.constant 0 : index
    %c1 = arith.constant 1 : index
    %24 = memref.load %arg6[%c0_16, %c1] : memref<10x6xf32, #tpu.memory_space<smem>>
    %25 = vector.broadcast %24 : f32 to vector<128x128xf32>
    %26 = arith.mulf %25, %14 : vector<128x128xf32>
    %27 = arith.addf %23, %26 : vector<128x128xf32>
    %c0_17 = arith.constant 0 : index
    %c2 = arith.constant 2 : index
    %28 = memref.load %arg6[%c0_17, %c2] : memref<10x6xf32, #tpu.memory_space<smem>>
    %29 = vector.broadcast %28 : f32 to vector<128x128xf32>
    %30 = arith.mulf %29, %15 : vector<128x128xf32>
    %31 = arith.addf %27, %30 : vector<128x128xf32>
    %c0_18 = arith.constant 0 : index
    %c3 = arith.constant 3 : index
    %32 = memref.load %arg6[%c0_18, %c3] : memref<10x6xf32, #tpu.memory_space<smem>>
    %33 = vector.broadcast %32 : f32 to vector<128x128xf32>
    %34 = arith.mulf %33, %16 : vector<128x128xf32>
    %35 = arith.addf %31, %34 : vector<128x128xf32>
    %c0_19 = arith.constant 0 : index
    %c4 = arith.constant 4 : index
    %36 = memref.load %arg6[%c0_19, %c4] : memref<10x6xf32, #tpu.memory_space<smem>>
    %37 = vector.broadcast %36 : f32 to vector<128x128xf32>
    %38 = arith.mulf %37, %17 : vector<128x128xf32>
    %39 = arith.addf %35, %38 : vector<128x128xf32>
    %c0_20 = arith.constant 0 : index
    %c5 = arith.constant 5 : index
    %40 = memref.load %arg6[%c0_20, %c5] : memref<10x6xf32, #tpu.memory_space<smem>>
    %41 = vector.broadcast %40 : f32 to vector<128x128xf32>
    %42 = arith.mulf %41, %12 : vector<128x128xf32>
    %43 = arith.addf %39, %42 : vector<128x128xf32>
    %cst_21 = arith.constant 0.000000e+00 : f32
    %44 = vector.broadcast %cst_21 : f32 to vector<128x128xf32>
    %45 = arith.maximumf %43, %44 : vector<128x128xf32>
    %c0_22 = arith.constant 0 : index
    %46 = memref.load %arg8[%c0_22] : memref<10xf32, #tpu.memory_space<smem>>
    %47 = vector.broadcast %46 : f32 to vector<128x128xf32>
    %48 = arith.mulf %47, %45 : vector<128x128xf32>
    %c1_23 = arith.constant 1 : index
    %c0_24 = arith.constant 0 : index
    %49 = memref.load %arg6[%c1_23, %c0_24] : memref<10x6xf32, #tpu.memory_space<smem>>
    %50 = vector.broadcast %49 : f32 to vector<128x128xf32>
    %51 = arith.mulf %50, %13 : vector<128x128xf32>
    %c1_25 = arith.constant 1 : index
    %52 = memref.load %arg7[%c1_25] : memref<10xf32, #tpu.memory_space<smem>>
    %53 = vector.broadcast %52 : f32 to vector<128x128xf32>
    %54 = arith.addf %51, %53 : vector<128x128xf32>
    %c1_26 = arith.constant 1 : index
    %c1_27 = arith.constant 1 : index
    %55 = memref.load %arg6[%c1_26, %c1_27] : memref<10x6xf32, #tpu.memory_space<smem>>
    %56 = vector.broadcast %55 : f32 to vector<128x128xf32>
    %57 = arith.mulf %56, %14 : vector<128x128xf32>
    %58 = arith.addf %54, %57 : vector<128x128xf32>
    %c1_28 = arith.constant 1 : index
    %c2_29 = arith.constant 2 : index
    %59 = memref.load %arg6[%c1_28, %c2_29] : memref<10x6xf32, #tpu.memory_space<smem>>
    %60 = vector.broadcast %59 : f32 to vector<128x128xf32>
    %61 = arith.mulf %60, %15 : vector<128x128xf32>
    %62 = arith.addf %58, %61 : vector<128x128xf32>
    %c1_30 = arith.constant 1 : index
    %c3_31 = arith.constant 3 : index
    %63 = memref.load %arg6[%c1_30, %c3_31] : memref<10x6xf32, #tpu.memory_space<smem>>
    %64 = vector.broadcast %63 : f32 to vector<128x128xf32>
    %65 = arith.mulf %64, %16 : vector<128x128xf32>
    %66 = arith.addf %62, %65 : vector<128x128xf32>
    %c1_32 = arith.constant 1 : index
    %c4_33 = arith.constant 4 : index
    %67 = memref.load %arg6[%c1_32, %c4_33] : memref<10x6xf32, #tpu.memory_space<smem>>
    %68 = vector.broadcast %67 : f32 to vector<128x128xf32>
    %69 = arith.mulf %68, %17 : vector<128x128xf32>
    %70 = arith.addf %66, %69 : vector<128x128xf32>
    %c1_34 = arith.constant 1 : index
    %c5_35 = arith.constant 5 : index
    %71 = memref.load %arg6[%c1_34, %c5_35] : memref<10x6xf32, #tpu.memory_space<smem>>
    %72 = vector.broadcast %71 : f32 to vector<128x128xf32>
    %73 = arith.mulf %72, %12 : vector<128x128xf32>
    %74 = arith.addf %70, %73 : vector<128x128xf32>
    %cst_36 = arith.constant 0.000000e+00 : f32
    %75 = vector.broadcast %cst_36 : f32 to vector<128x128xf32>
    %76 = arith.maximumf %74, %75 : vector<128x128xf32>
    %c1_37 = arith.constant 1 : index
    %77 = memref.load %arg8[%c1_37] : memref<10xf32, #tpu.memory_space<smem>>
    %78 = vector.broadcast %77 : f32 to vector<128x128xf32>
    %79 = arith.mulf %78, %76 : vector<128x128xf32>
    %80 = arith.addf %48, %79 : vector<128x128xf32>
    %c2_38 = arith.constant 2 : index
    %c0_39 = arith.constant 0 : index
    %81 = memref.load %arg6[%c2_38, %c0_39] : memref<10x6xf32, #tpu.memory_space<smem>>
    %82 = vector.broadcast %81 : f32 to vector<128x128xf32>
    %83 = arith.mulf %82, %13 : vector<128x128xf32>
    %c2_40 = arith.constant 2 : index
    %84 = memref.load %arg7[%c2_40] : memref<10xf32, #tpu.memory_space<smem>>
    %85 = vector.broadcast %84 : f32 to vector<128x128xf32>
    %86 = arith.addf %83, %85 : vector<128x128xf32>
    %c2_41 = arith.constant 2 : index
    %c1_42 = arith.constant 1 : index
    %87 = memref.load %arg6[%c2_41, %c1_42] : memref<10x6xf32, #tpu.memory_space<smem>>
    %88 = vector.broadcast %87 : f32 to vector<128x128xf32>
    %89 = arith.mulf %88, %14 : vector<128x128xf32>
    %90 = arith.addf %86, %89 : vector<128x128xf32>
    %c2_43 = arith.constant 2 : index
    %c2_44 = arith.constant 2 : index
    %91 = memref.load %arg6[%c2_43, %c2_44] : memref<10x6xf32, #tpu.memory_space<smem>>
    %92 = vector.broadcast %91 : f32 to vector<128x128xf32>
    %93 = arith.mulf %92, %15 : vector<128x128xf32>
    %94 = arith.addf %90, %93 : vector<128x128xf32>
    %c2_45 = arith.constant 2 : index
    %c3_46 = arith.constant 3 : index
    %95 = memref.load %arg6[%c2_45, %c3_46] : memref<10x6xf32, #tpu.memory_space<smem>>
    %96 = vector.broadcast %95 : f32 to vector<128x128xf32>
    %97 = arith.mulf %96, %16 : vector<128x128xf32>
    %98 = arith.addf %94, %97 : vector<128x128xf32>
    %c2_47 = arith.constant 2 : index
    %c4_48 = arith.constant 4 : index
    %99 = memref.load %arg6[%c2_47, %c4_48] : memref<10x6xf32, #tpu.memory_space<smem>>
    %100 = vector.broadcast %99 : f32 to vector<128x128xf32>
    %101 = arith.mulf %100, %17 : vector<128x128xf32>
    %102 = arith.addf %98, %101 : vector<128x128xf32>
    %c2_49 = arith.constant 2 : index
    %c5_50 = arith.constant 5 : index
    %103 = memref.load %arg6[%c2_49, %c5_50] : memref<10x6xf32, #tpu.memory_space<smem>>
    %104 = vector.broadcast %103 : f32 to vector<128x128xf32>
    %105 = arith.mulf %104, %12 : vector<128x128xf32>
    %106 = arith.addf %102, %105 : vector<128x128xf32>
    %cst_51 = arith.constant 0.000000e+00 : f32
    %107 = vector.broadcast %cst_51 : f32 to vector<128x128xf32>
    %108 = arith.maximumf %106, %107 : vector<128x128xf32>
    %c2_52 = arith.constant 2 : index
    %109 = memref.load %arg8[%c2_52] : memref<10xf32, #tpu.memory_space<smem>>
    %110 = vector.broadcast %109 : f32 to vector<128x128xf32>
    %111 = arith.mulf %110, %108 : vector<128x128xf32>
    %112 = arith.addf %80, %111 : vector<128x128xf32>
    %c3_53 = arith.constant 3 : index
    %c0_54 = arith.constant 0 : index
    %113 = memref.load %arg6[%c3_53, %c0_54] : memref<10x6xf32, #tpu.memory_space<smem>>
    %114 = vector.broadcast %113 : f32 to vector<128x128xf32>
    %115 = arith.mulf %114, %13 : vector<128x128xf32>
    %c3_55 = arith.constant 3 : index
    %116 = memref.load %arg7[%c3_55] : memref<10xf32, #tpu.memory_space<smem>>
    %117 = vector.broadcast %116 : f32 to vector<128x128xf32>
    %118 = arith.addf %115, %117 : vector<128x128xf32>
    %c3_56 = arith.constant 3 : index
    %c1_57 = arith.constant 1 : index
    %119 = memref.load %arg6[%c3_56, %c1_57] : memref<10x6xf32, #tpu.memory_space<smem>>
    %120 = vector.broadcast %119 : f32 to vector<128x128xf32>
    %121 = arith.mulf %120, %14 : vector<128x128xf32>
    %122 = arith.addf %118, %121 : vector<128x128xf32>
    %c3_58 = arith.constant 3 : index
    %c2_59 = arith.constant 2 : index
    %123 = memref.load %arg6[%c3_58, %c2_59] : memref<10x6xf32, #tpu.memory_space<smem>>
    %124 = vector.broadcast %123 : f32 to vector<128x128xf32>
    %125 = arith.mulf %124, %15 : vector<128x128xf32>
    %126 = arith.addf %122, %125 : vector<128x128xf32>
    %c3_60 = arith.constant 3 : index
    %c3_61 = arith.constant 3 : index
    %127 = memref.load %arg6[%c3_60, %c3_61] : memref<10x6xf32, #tpu.memory_space<smem>>
    %128 = vector.broadcast %127 : f32 to vector<128x128xf32>
    %129 = arith.mulf %128, %16 : vector<128x128xf32>
    %130 = arith.addf %126, %129 : vector<128x128xf32>
    %c3_62 = arith.constant 3 : index
    %c4_63 = arith.constant 4 : index
    %131 = memref.load %arg6[%c3_62, %c4_63] : memref<10x6xf32, #tpu.memory_space<smem>>
    %132 = vector.broadcast %131 : f32 to vector<128x128xf32>
    %133 = arith.mulf %132, %17 : vector<128x128xf32>
    %134 = arith.addf %130, %133 : vector<128x128xf32>
    %c3_64 = arith.constant 3 : index
    %c5_65 = arith.constant 5 : index
    %135 = memref.load %arg6[%c3_64, %c5_65] : memref<10x6xf32, #tpu.memory_space<smem>>
    %136 = vector.broadcast %135 : f32 to vector<128x128xf32>
    %137 = arith.mulf %136, %12 : vector<128x128xf32>
    %138 = arith.addf %134, %137 : vector<128x128xf32>
    %cst_66 = arith.constant 0.000000e+00 : f32
    %139 = vector.broadcast %cst_66 : f32 to vector<128x128xf32>
    %140 = arith.maximumf %138, %139 : vector<128x128xf32>
    %c3_67 = arith.constant 3 : index
    %141 = memref.load %arg8[%c3_67] : memref<10xf32, #tpu.memory_space<smem>>
    %142 = vector.broadcast %141 : f32 to vector<128x128xf32>
    %143 = arith.mulf %142, %140 : vector<128x128xf32>
    %144 = arith.addf %112, %143 : vector<128x128xf32>
    %c4_68 = arith.constant 4 : index
    %c0_69 = arith.constant 0 : index
    %145 = memref.load %arg6[%c4_68, %c0_69] : memref<10x6xf32, #tpu.memory_space<smem>>
    %146 = vector.broadcast %145 : f32 to vector<128x128xf32>
    %147 = arith.mulf %146, %13 : vector<128x128xf32>
    %c4_70 = arith.constant 4 : index
    %148 = memref.load %arg7[%c4_70] : memref<10xf32, #tpu.memory_space<smem>>
    %149 = vector.broadcast %148 : f32 to vector<128x128xf32>
    %150 = arith.addf %147, %149 : vector<128x128xf32>
    %c4_71 = arith.constant 4 : index
    %c1_72 = arith.constant 1 : index
    %151 = memref.load %arg6[%c4_71, %c1_72] : memref<10x6xf32, #tpu.memory_space<smem>>
    %152 = vector.broadcast %151 : f32 to vector<128x128xf32>
    %153 = arith.mulf %152, %14 : vector<128x128xf32>
    %154 = arith.addf %150, %153 : vector<128x128xf32>
    %c4_73 = arith.constant 4 : index
    %c2_74 = arith.constant 2 : index
    %155 = memref.load %arg6[%c4_73, %c2_74] : memref<10x6xf32, #tpu.memory_space<smem>>
    %156 = vector.broadcast %155 : f32 to vector<128x128xf32>
    %157 = arith.mulf %156, %15 : vector<128x128xf32>
    %158 = arith.addf %154, %157 : vector<128x128xf32>
    %c4_75 = arith.constant 4 : index
    %c3_76 = arith.constant 3 : index
    %159 = memref.load %arg6[%c4_75, %c3_76] : memref<10x6xf32, #tpu.memory_space<smem>>
    %160 = vector.broadcast %159 : f32 to vector<128x128xf32>
    %161 = arith.mulf %160, %16 : vector<128x128xf32>
    %162 = arith.addf %158, %161 : vector<128x128xf32>
    %c4_77 = arith.constant 4 : index
    %c4_78 = arith.constant 4 : index
    %163 = memref.load %arg6[%c4_77, %c4_78] : memref<10x6xf32, #tpu.memory_space<smem>>
    %164 = vector.broadcast %163 : f32 to vector<128x128xf32>
    %165 = arith.mulf %164, %17 : vector<128x128xf32>
    %166 = arith.addf %162, %165 : vector<128x128xf32>
    %c4_79 = arith.constant 4 : index
    %c5_80 = arith.constant 5 : index
    %167 = memref.load %arg6[%c4_79, %c5_80] : memref<10x6xf32, #tpu.memory_space<smem>>
    %168 = vector.broadcast %167 : f32 to vector<128x128xf32>
    %169 = arith.mulf %168, %12 : vector<128x128xf32>
    %170 = arith.addf %166, %169 : vector<128x128xf32>
    %cst_81 = arith.constant 0.000000e+00 : f32
    %171 = vector.broadcast %cst_81 : f32 to vector<128x128xf32>
    %172 = arith.maximumf %170, %171 : vector<128x128xf32>
    %c4_82 = arith.constant 4 : index
    %173 = memref.load %arg8[%c4_82] : memref<10xf32, #tpu.memory_space<smem>>
    %174 = vector.broadcast %173 : f32 to vector<128x128xf32>
    %175 = arith.mulf %174, %172 : vector<128x128xf32>
    %176 = arith.addf %144, %175 : vector<128x128xf32>
    %c5_83 = arith.constant 5 : index
    %c0_84 = arith.constant 0 : index
    %177 = memref.load %arg6[%c5_83, %c0_84] : memref<10x6xf32, #tpu.memory_space<smem>>
    %178 = vector.broadcast %177 : f32 to vector<128x128xf32>
    %179 = arith.mulf %178, %13 : vector<128x128xf32>
    %c5_85 = arith.constant 5 : index
    %180 = memref.load %arg7[%c5_85] : memref<10xf32, #tpu.memory_space<smem>>
    %181 = vector.broadcast %180 : f32 to vector<128x128xf32>
    %182 = arith.addf %179, %181 : vector<128x128xf32>
    %c5_86 = arith.constant 5 : index
    %c1_87 = arith.constant 1 : index
    %183 = memref.load %arg6[%c5_86, %c1_87] : memref<10x6xf32, #tpu.memory_space<smem>>
    %184 = vector.broadcast %183 : f32 to vector<128x128xf32>
    %185 = arith.mulf %184, %14 : vector<128x128xf32>
    %186 = arith.addf %182, %185 : vector<128x128xf32>
    %c5_88 = arith.constant 5 : index
    %c2_89 = arith.constant 2 : index
    %187 = memref.load %arg6[%c5_88, %c2_89] : memref<10x6xf32, #tpu.memory_space<smem>>
    %188 = vector.broadcast %187 : f32 to vector<128x128xf32>
    %189 = arith.mulf %188, %15 : vector<128x128xf32>
    %190 = arith.addf %186, %189 : vector<128x128xf32>
    %c5_90 = arith.constant 5 : index
    %c3_91 = arith.constant 3 : index
    %191 = memref.load %arg6[%c5_90, %c3_91] : memref<10x6xf32, #tpu.memory_space<smem>>
    %192 = vector.broadcast %191 : f32 to vector<128x128xf32>
    %193 = arith.mulf %192, %16 : vector<128x128xf32>
    %194 = arith.addf %190, %193 : vector<128x128xf32>
    %c5_92 = arith.constant 5 : index
    %c4_93 = arith.constant 4 : index
    %195 = memref.load %arg6[%c5_92, %c4_93] : memref<10x6xf32, #tpu.memory_space<smem>>
    %196 = vector.broadcast %195 : f32 to vector<128x128xf32>
    %197 = arith.mulf %196, %17 : vector<128x128xf32>
    %198 = arith.addf %194, %197 : vector<128x128xf32>
    %c5_94 = arith.constant 5 : index
    %c5_95 = arith.constant 5 : index
    %199 = memref.load %arg6[%c5_94, %c5_95] : memref<10x6xf32, #tpu.memory_space<smem>>
    %200 = vector.broadcast %199 : f32 to vector<128x128xf32>
    %201 = arith.mulf %200, %12 : vector<128x128xf32>
    %202 = arith.addf %198, %201 : vector<128x128xf32>
    %cst_96 = arith.constant 0.000000e+00 : f32
    %203 = vector.broadcast %cst_96 : f32 to vector<128x128xf32>
    %204 = arith.maximumf %202, %203 : vector<128x128xf32>
    %c5_97 = arith.constant 5 : index
    %205 = memref.load %arg8[%c5_97] : memref<10xf32, #tpu.memory_space<smem>>
    %206 = vector.broadcast %205 : f32 to vector<128x128xf32>
    %207 = arith.mulf %206, %204 : vector<128x128xf32>
    %208 = arith.addf %176, %207 : vector<128x128xf32>
    %c6 = arith.constant 6 : index
    %c0_98 = arith.constant 0 : index
    %209 = memref.load %arg6[%c6, %c0_98] : memref<10x6xf32, #tpu.memory_space<smem>>
    %210 = vector.broadcast %209 : f32 to vector<128x128xf32>
    %211 = arith.mulf %210, %13 : vector<128x128xf32>
    %c6_99 = arith.constant 6 : index
    %212 = memref.load %arg7[%c6_99] : memref<10xf32, #tpu.memory_space<smem>>
    %213 = vector.broadcast %212 : f32 to vector<128x128xf32>
    %214 = arith.addf %211, %213 : vector<128x128xf32>
    %c6_100 = arith.constant 6 : index
    %c1_101 = arith.constant 1 : index
    %215 = memref.load %arg6[%c6_100, %c1_101] : memref<10x6xf32, #tpu.memory_space<smem>>
    %216 = vector.broadcast %215 : f32 to vector<128x128xf32>
    %217 = arith.mulf %216, %14 : vector<128x128xf32>
    %218 = arith.addf %214, %217 : vector<128x128xf32>
    %c6_102 = arith.constant 6 : index
    %c2_103 = arith.constant 2 : index
    %219 = memref.load %arg6[%c6_102, %c2_103] : memref<10x6xf32, #tpu.memory_space<smem>>
    %220 = vector.broadcast %219 : f32 to vector<128x128xf32>
    %221 = arith.mulf %220, %15 : vector<128x128xf32>
    %222 = arith.addf %218, %221 : vector<128x128xf32>
    %c6_104 = arith.constant 6 : index
    %c3_105 = arith.constant 3 : index
    %223 = memref.load %arg6[%c6_104, %c3_105] : memref<10x6xf32, #tpu.memory_space<smem>>
    %224 = vector.broadcast %223 : f32 to vector<128x128xf32>
    %225 = arith.mulf %224, %16 : vector<128x128xf32>
    %226 = arith.addf %222, %225 : vector<128x128xf32>
    %c6_106 = arith.constant 6 : index
    %c4_107 = arith.constant 4 : index
    %227 = memref.load %arg6[%c6_106, %c4_107] : memref<10x6xf32, #tpu.memory_space<smem>>
    %228 = vector.broadcast %227 : f32 to vector<128x128xf32>
    %229 = arith.mulf %228, %17 : vector<128x128xf32>
    %230 = arith.addf %226, %229 : vector<128x128xf32>
    %c6_108 = arith.constant 6 : index
    %c5_109 = arith.constant 5 : index
    %231 = memref.load %arg6[%c6_108, %c5_109] : memref<10x6xf32, #tpu.memory_space<smem>>
    %232 = vector.broadcast %231 : f32 to vector<128x128xf32>
    %233 = arith.mulf %232, %12 : vector<128x128xf32>
    %234 = arith.addf %230, %233 : vector<128x128xf32>
    %cst_110 = arith.constant 0.000000e+00 : f32
    %235 = vector.broadcast %cst_110 : f32 to vector<128x128xf32>
    %236 = arith.maximumf %234, %235 : vector<128x128xf32>
    %c6_111 = arith.constant 6 : index
    %237 = memref.load %arg8[%c6_111] : memref<10xf32, #tpu.memory_space<smem>>
    %238 = vector.broadcast %237 : f32 to vector<128x128xf32>
    %239 = arith.mulf %238, %236 : vector<128x128xf32>
    %240 = arith.addf %208, %239 : vector<128x128xf32>
    %c7 = arith.constant 7 : index
    %c0_112 = arith.constant 0 : index
    %241 = memref.load %arg6[%c7, %c0_112] : memref<10x6xf32, #tpu.memory_space<smem>>
    %242 = vector.broadcast %241 : f32 to vector<128x128xf32>
    %243 = arith.mulf %242, %13 : vector<128x128xf32>
    %c7_113 = arith.constant 7 : index
    %244 = memref.load %arg7[%c7_113] : memref<10xf32, #tpu.memory_space<smem>>
    %245 = vector.broadcast %244 : f32 to vector<128x128xf32>
    %246 = arith.addf %243, %245 : vector<128x128xf32>
    %c7_114 = arith.constant 7 : index
    %c1_115 = arith.constant 1 : index
    %247 = memref.load %arg6[%c7_114, %c1_115] : memref<10x6xf32, #tpu.memory_space<smem>>
    %248 = vector.broadcast %247 : f32 to vector<128x128xf32>
    %249 = arith.mulf %248, %14 : vector<128x128xf32>
    %250 = arith.addf %246, %249 : vector<128x128xf32>
    %c7_116 = arith.constant 7 : index
    %c2_117 = arith.constant 2 : index
    %251 = memref.load %arg6[%c7_116, %c2_117] : memref<10x6xf32, #tpu.memory_space<smem>>
    %252 = vector.broadcast %251 : f32 to vector<128x128xf32>
    %253 = arith.mulf %252, %15 : vector<128x128xf32>
    %254 = arith.addf %250, %253 : vector<128x128xf32>
    %c7_118 = arith.constant 7 : index
    %c3_119 = arith.constant 3 : index
    %255 = memref.load %arg6[%c7_118, %c3_119] : memref<10x6xf32, #tpu.memory_space<smem>>
    %256 = vector.broadcast %255 : f32 to vector<128x128xf32>
    %257 = arith.mulf %256, %16 : vector<128x128xf32>
    %258 = arith.addf %254, %257 : vector<128x128xf32>
    %c7_120 = arith.constant 7 : index
    %c4_121 = arith.constant 4 : index
    %259 = memref.load %arg6[%c7_120, %c4_121] : memref<10x6xf32, #tpu.memory_space<smem>>
    %260 = vector.broadcast %259 : f32 to vector<128x128xf32>
    %261 = arith.mulf %260, %17 : vector<128x128xf32>
    %262 = arith.addf %258, %261 : vector<128x128xf32>
    %c7_122 = arith.constant 7 : index
    %c5_123 = arith.constant 5 : index
    %263 = memref.load %arg6[%c7_122, %c5_123] : memref<10x6xf32, #tpu.memory_space<smem>>
    %264 = vector.broadcast %263 : f32 to vector<128x128xf32>
    %265 = arith.mulf %264, %12 : vector<128x128xf32>
    %266 = arith.addf %262, %265 : vector<128x128xf32>
    %cst_124 = arith.constant 0.000000e+00 : f32
    %267 = vector.broadcast %cst_124 : f32 to vector<128x128xf32>
    %268 = arith.maximumf %266, %267 : vector<128x128xf32>
    %c7_125 = arith.constant 7 : index
    %269 = memref.load %arg8[%c7_125] : memref<10xf32, #tpu.memory_space<smem>>
    %270 = vector.broadcast %269 : f32 to vector<128x128xf32>
    %271 = arith.mulf %270, %268 : vector<128x128xf32>
    %272 = arith.addf %240, %271 : vector<128x128xf32>
    %c8 = arith.constant 8 : index
    %c0_126 = arith.constant 0 : index
    %273 = memref.load %arg6[%c8, %c0_126] : memref<10x6xf32, #tpu.memory_space<smem>>
    %274 = vector.broadcast %273 : f32 to vector<128x128xf32>
    %275 = arith.mulf %274, %13 : vector<128x128xf32>
    %c8_127 = arith.constant 8 : index
    %276 = memref.load %arg7[%c8_127] : memref<10xf32, #tpu.memory_space<smem>>
    %277 = vector.broadcast %276 : f32 to vector<128x128xf32>
    %278 = arith.addf %275, %277 : vector<128x128xf32>
    %c8_128 = arith.constant 8 : index
    %c1_129 = arith.constant 1 : index
    %279 = memref.load %arg6[%c8_128, %c1_129] : memref<10x6xf32, #tpu.memory_space<smem>>
    %280 = vector.broadcast %279 : f32 to vector<128x128xf32>
    %281 = arith.mulf %280, %14 : vector<128x128xf32>
    %282 = arith.addf %278, %281 : vector<128x128xf32>
    %c8_130 = arith.constant 8 : index
    %c2_131 = arith.constant 2 : index
    %283 = memref.load %arg6[%c8_130, %c2_131] : memref<10x6xf32, #tpu.memory_space<smem>>
    %284 = vector.broadcast %283 : f32 to vector<128x128xf32>
    %285 = arith.mulf %284, %15 : vector<128x128xf32>
    %286 = arith.addf %282, %285 : vector<128x128xf32>
    %c8_132 = arith.constant 8 : index
    %c3_133 = arith.constant 3 : index
    %287 = memref.load %arg6[%c8_132, %c3_133] : memref<10x6xf32, #tpu.memory_space<smem>>
    %288 = vector.broadcast %287 : f32 to vector<128x128xf32>
    %289 = arith.mulf %288, %16 : vector<128x128xf32>
    %290 = arith.addf %286, %289 : vector<128x128xf32>
    %c8_134 = arith.constant 8 : index
    %c4_135 = arith.constant 4 : index
    %291 = memref.load %arg6[%c8_134, %c4_135] : memref<10x6xf32, #tpu.memory_space<smem>>
    %292 = vector.broadcast %291 : f32 to vector<128x128xf32>
    %293 = arith.mulf %292, %17 : vector<128x128xf32>
    %294 = arith.addf %290, %293 : vector<128x128xf32>
    %c8_136 = arith.constant 8 : index
    %c5_137 = arith.constant 5 : index
    %295 = memref.load %arg6[%c8_136, %c5_137] : memref<10x6xf32, #tpu.memory_space<smem>>
    %296 = vector.broadcast %295 : f32 to vector<128x128xf32>
    %297 = arith.mulf %296, %12 : vector<128x128xf32>
    %298 = arith.addf %294, %297 : vector<128x128xf32>
    %cst_138 = arith.constant 0.000000e+00 : f32
    %299 = vector.broadcast %cst_138 : f32 to vector<128x128xf32>
    %300 = arith.maximumf %298, %299 : vector<128x128xf32>
    %c8_139 = arith.constant 8 : index
    %301 = memref.load %arg8[%c8_139] : memref<10xf32, #tpu.memory_space<smem>>
    %302 = vector.broadcast %301 : f32 to vector<128x128xf32>
    %303 = arith.mulf %302, %300 : vector<128x128xf32>
    %304 = arith.addf %272, %303 : vector<128x128xf32>
    %c9 = arith.constant 9 : index
    %c0_140 = arith.constant 0 : index
    %305 = memref.load %arg6[%c9, %c0_140] : memref<10x6xf32, #tpu.memory_space<smem>>
    %306 = vector.broadcast %305 : f32 to vector<128x128xf32>
    %307 = arith.mulf %306, %13 : vector<128x128xf32>
    %c9_141 = arith.constant 9 : index
    %308 = memref.load %arg7[%c9_141] : memref<10xf32, #tpu.memory_space<smem>>
    %309 = vector.broadcast %308 : f32 to vector<128x128xf32>
    %310 = arith.addf %307, %309 : vector<128x128xf32>
    %c9_142 = arith.constant 9 : index
    %c1_143 = arith.constant 1 : index
    %311 = memref.load %arg6[%c9_142, %c1_143] : memref<10x6xf32, #tpu.memory_space<smem>>
    %312 = vector.broadcast %311 : f32 to vector<128x128xf32>
    %313 = arith.mulf %312, %14 : vector<128x128xf32>
    %314 = arith.addf %310, %313 : vector<128x128xf32>
    %c9_144 = arith.constant 9 : index
    %c2_145 = arith.constant 2 : index
    %315 = memref.load %arg6[%c9_144, %c2_145] : memref<10x6xf32, #tpu.memory_space<smem>>
    %316 = vector.broadcast %315 : f32 to vector<128x128xf32>
    %317 = arith.mulf %316, %15 : vector<128x128xf32>
    %318 = arith.addf %314, %317 : vector<128x128xf32>
    %c9_146 = arith.constant 9 : index
    %c3_147 = arith.constant 3 : index
    %319 = memref.load %arg6[%c9_146, %c3_147] : memref<10x6xf32, #tpu.memory_space<smem>>
    %320 = vector.broadcast %319 : f32 to vector<128x128xf32>
    %321 = arith.mulf %320, %16 : vector<128x128xf32>
    %322 = arith.addf %318, %321 : vector<128x128xf32>
    %c9_148 = arith.constant 9 : index
    %c4_149 = arith.constant 4 : index
    %323 = memref.load %arg6[%c9_148, %c4_149] : memref<10x6xf32, #tpu.memory_space<smem>>
    %324 = vector.broadcast %323 : f32 to vector<128x128xf32>
    %325 = arith.mulf %324, %17 : vector<128x128xf32>
    %326 = arith.addf %322, %325 : vector<128x128xf32>
    %c9_150 = arith.constant 9 : index
    %c5_151 = arith.constant 5 : index
    %327 = memref.load %arg6[%c9_150, %c5_151] : memref<10x6xf32, #tpu.memory_space<smem>>
    %328 = vector.broadcast %327 : f32 to vector<128x128xf32>
    %329 = arith.mulf %328, %12 : vector<128x128xf32>
    %330 = arith.addf %326, %329 : vector<128x128xf32>
    %cst_152 = arith.constant 0.000000e+00 : f32
    %331 = vector.broadcast %cst_152 : f32 to vector<128x128xf32>
    %332 = arith.maximumf %330, %331 : vector<128x128xf32>
    %c9_153 = arith.constant 9 : index
    %333 = memref.load %arg8[%c9_153] : memref<10xf32, #tpu.memory_space<smem>>
    %334 = vector.broadcast %333 : f32 to vector<128x128xf32>
    %335 = arith.mulf %334, %332 : vector<128x128xf32>
    %336 = arith.addf %304, %335 : vector<128x128xf32>
    %c0_154 = arith.constant 0 : index
    %337 = memref.load %arg9[%c0_154] : memref<1xf32, #tpu.memory_space<smem>>
    %338 = vector.broadcast %337 : f32 to vector<128x128xf32>
    %339 = arith.addf %336, %338 : vector<128x128xf32>
    %cst_155 = arith.constant 0.000000e+00 : f32
    %340 = vector.broadcast %cst_155 : f32 to vector<128x128xf32>
    %341 = arith.subf %340, %339 : vector<128x128xf32>
    %342 = math.exp %341 : vector<128x128xf32>
    %cst_156 = arith.constant 1.000000e+00 : f32
    %343 = vector.broadcast %cst_156 : f32 to vector<128x128xf32>
    %344 = arith.addf %343, %342 : vector<128x128xf32>
    %345 = tpu.reciprocal %344 {approx = true} : vector<128x128xf32> -> vector<128x128xf32>
    %c0_157 = arith.constant 0 : index
    %c0_158 = arith.constant 0 : index
    %c0_159 = arith.constant 0 : index
    %346 = vector.load %arg10[%c0_157, %c0_158, %c0_159] : memref<1x128x128xf32, #tpu.memory_space<vmem>>, vector<1x128x128xf32>
    %347 = vector.shape_cast %346 : vector<1x128x128xf32> to vector<128x128xf32>
    %348 = vector.shape_cast %345 : vector<128x128xf32> to vector<1x128x128xf32>
    tpu.vector_store %arg10[%c0_157, %c0_158, %c0_159], %348 {strides = array<i32>} : memref<1x128x128xf32, #tpu.memory_space<vmem>>, vector<1x128x128xf32>,
    return
  }
  func.func @transform_0(%arg0: i32) -> (i32, i32, i32) {
    %c0_i32 = arith.constant 0 : i32
    %c0_i32_0 = arith.constant 0 : i32
    %c0_i32_1 = arith.constant 0 : i32
    return %arg0, %c0_i32, %c0_i32_0 : i32, i32, i32
  }
  func.func @transform_1(%arg0: i32) -> (i32, i32) {
    %c0_i32 = arith.constant 0 : i32
    %c0_i32_0 = arith.constant 0 : i32
    %c0_i32_1 = arith.constant 0 : i32
    return %c0_i32, %c0_i32_0 : i32, i32
  }
  func.func @transform_2(%arg0: i32) -> (i32, i32) {
    %c0_i32 = arith.constant 0 : i32
    %c0_i32_0 = arith.constant 0 : i32
    %c0_i32_1 = arith.constant 0 : i32
    return %c0_i32, %c0_i32_0 : i32, i32
  }
  func.func @transform_3(%arg0: i32) -> (i32, i32) {
    %c0_i32 = arith.constant 0 : i32
    %c0_i32_0 = arith.constant 0 : i32
    %c0_i32_1 = arith.constant 0 : i32
    return %c0_i32, %c0_i32_0 : i32, i32
  }
  func.func @transform_4(%arg0: i32) -> (i32, i32) {
    %c0_i32 = arith.constant 0 : i32
    %c0_i32_0 = arith.constant 0 : i32
    %c0_i32_1 = arith.constant 0 : i32
    return %c0_i32, %c0_i32_0 : i32, i32
  }
  func.func @transform_5(%arg0: i32) -> (i32, i32) {
    %c0_i32 = arith.constant 0 : i32
    %c0_i32_0 = arith.constant 0 : i32
    %c0_i32_1 = arith.constant 0 : i32
    return %c0_i32, %c0_i32_0 : i32, i32
  }
  func.func @transform_6(%arg0: i32) -> i32 {
    %c0_i32 = arith.constant 0 : i32
    %c0_i32_0 = arith.constant 0 : i32
    return %c0_i32 : i32
  }
  func.func @transform_7(%arg0: i32) -> i32 {
    %c0_i32 = arith.constant 0 : i32
    %c0_i32_0 = arith.constant 0 : i32
    return %c0_i32 : i32
  }
  func.func @transform_8(%arg0: i32) -> i32 {
    %c0_i32 = arith.constant 0 : i32
    %c0_i32_0 = arith.constant 0 : i32
    return %c0_i32 : i32
  }
  func.func @transform_9(%arg0: i32) -> (i32, i32, i32) {
    %c0_i32 = arith.constant 0 : i32
    %c0_i32_0 = arith.constant 0 : i32
    %c0_i32_1 = arith.constant 0 : i32
    return %arg0, %c0_i32, %c0_i32_0 : i32, i32, i32
  }
}

</mosaic_0001>

<llo_original>
// kernel: tpu_custom_call.1
$region0: #{tpu_custom_call.1}
  #allocation0 [shape = 'u32[]', space=smem, size = 0x4, offset = 0x4, fixed_abs, tag = 'smem constant byte address 0x4 - core index']
  #allocation1 [shape = 'u32[144,128]{1,0:T(1,128)}', space=vmem, size = 0x12000, scoped, tag = 'internal scratch']
  #allocation2 [shape = 'f32[1]{0:T(128)S(6)}', space=smem, size = 0x200, scoped, tag = 'scoped memory for tpu_custom_call.1']
  %s0 = inlined_call_operand.hbm [shape: f32[2,128,128], index: 0, kind: input, shape index: {}]
  %s1 = inlined_call_operand.hbm [shape: f32[384,128], index: 1, kind: input, shape index: {}]
  %s2 = inlined_call_operand.hbm [shape: f32[256,128], index: 2, kind: input, shape index: {}]
  %s3 = inlined_call_operand.hbm [shape: f32[128,128], index: 3, kind: input, shape index: {}]
  %s4 = inlined_call_operand.hbm [shape: f32[128,384], index: 4, kind: input, shape index: {}]
  %s5 = inlined_call_operand.vmem [shape: f32[10,6], index: 5, kind: input, shape index: {}]
  %s6 = inlined_call_operand.vmem [shape: f32[10], index: 6, kind: input, shape index: {}]
  %s7 = inlined_call_operand.vmem [shape: f32[10], index: 7, kind: input, shape index: {}]
  %s8 = inlined_call_operand.<no memory space> [shape: f32[1], index: 8, kind: input, shape index: {}]
  %s9 = inlined_call_operand.hbm [shape: f32[2,128,128], index: 9, kind: output, shape index: {}]
  %s10 = sld [smem:[#allocation0]]
  $region101: #{tpu_custom_call.1} parent=0
    _
  %s12 = ssub.s32 1, %s10
  %s13 = scalar_select 0, %s12, %s10
  %14 = sst [smem:[#allocation2]] %s8
  $region1: #{tpu_custom_call.1} parent=0
    #allocation3 [shape = 'u8[131072]{0}', space=vmem, size = 0x20000, scoped, tag = 'input window, operand 0']
    #allocation4 [shape = 's32[2]{0}', space=sflag, size = 0x8, scoped, tag = 'scoped memory for tpu_custom_call.1']
    #allocation5 [shape = 's32[2]{0}', space=sflag, size = 0x8, scoped, tag = 'scoped memory for tpu_custom_call.1']
    #allocation6 [shape = 's32[2]{0}', space=sflag, size = 0x8, scoped, tag = 'scoped memory for tpu_custom_call.1']
    #allocation7 [shape = 'u8[196608]{0}', space=vmem, size = 0x30000, scoped, tag = 'input window, operand 1, single buffered']
    #allocation8 [shape = 's32[1]{0}', space=sflag, size = 0x4, scoped, tag = 'scoped memory for tpu_custom_call.1']
    #allocation9 [shape = 'u8[131072]{0}', space=vmem, size = 0x20000, scoped, tag = 'input window, operand 2, single buffered']
    #allocation10 [shape = 'u8[65536]{0}', space=vmem, size = 0x10000, scoped, tag = 'input window, operand 3, single buffered']
    #allocation11 [shape = 's32[1]{0}', space=sflag, size = 0x4, scoped, tag = 'scoped memory for tpu_custom_call.1']
    #allocation12 [shape = 'u8[196608]{0}', space=vmem, size = 0x30000, scoped, tag = 'input window, operand 4, single buffered']
    #allocation13 [shape = 'u8[8192]{0}', space=smem, size = 0x2000, scoped, tag = 'input window, operand 5, single buffered']
    #allocation14 [shape = 'u8[512]{0}', space=smem, size = 0x200, scoped, tag = 'input window, operand 6, single buffered']
    #allocation15 [shape = 's32[1]{0}', space=sflag, size = 0x4, scoped, tag = 'scoped memory for tpu_custom_call.1']
    #allocation16 [shape = 'u8[512]{0}', space=smem, size = 0x200, scoped, tag = 'input window, operand 7, single buffered']
    #allocation17 [shape = 'u8[131072]{0}', space=vmem, size = 0x20000, scoped, tag = 'output window, operand 0']
    %15 = vsyncpa [#allocation4], 0
    %s16 = scalar_lea.sflag [#allocation4], 1
    %17 = vsyncpa %s16, 0
    %18 = vsyncpa [#allocation8], 0
    %19 = vsyncpa [#allocation11], 0
    %20 = vsyncpa [#allocation6], 0
    %21 = vsyncpa [#allocation15], 0
    %22 = vsyncpa [#allocation5], 0
    %s23 = scalar_lea.sflag [#allocation5], 1
    %24 = vsyncpa %s23, 0
    loop: start=0, step=1, limit=4
    $region2: #{tpu_custom_call.1} parent=1 // loop_pre_header
      _
    $region3: #{tpu_custom_call.1} parent=1 // loop_header
      %s26 = sphi 0, %s30
      %p27 = scmp.ge.s32.totalorder %s26, 4
      %s36 = sphi 0, %s38
      %s39 = sphi 0, %s36
      %s40 = sphi 0, %s39
      %s56 = sphi 0, %s40
      %s60 = sphi 0, %s60
      %s62 = sphi 0, %s60
      %s63 = sphi 0, %s62
      %s77 = sphi 0, %s63
      %s81 = sphi 0, %s81
      %s83 = sphi 0, %s81
      %s84 = sphi 0, %s83
      %s98 = sphi 0, %s84
      %s102 = sphi 0, %s102
      %s104 = sphi 0, %s102
      %s105 = sphi 0, %s104
      %s119 = sphi 0, %s105
      %s123 = sphi 0, %s123
      %s125 = sphi 0, %s123
      %s126 = sphi 0, %s125
      %s140 = sphi 0, %s126
      %s144 = sphi 0, %s144
      %s146 = sphi 0, %s144
      %s147 = sphi 0, %s146
      %s161 = sphi 0, %s147
      %s165 = sphi 0, %s165
      %s167 = sphi 0, %s165
      %s168 = sphi 0, %s167
      %s182 = sphi 0, %s168
      %s186 = sphi 0, %s186
      %s188 = sphi 0, %s186
      %s189 = sphi 0, %s188
      %s203 = sphi 0, %s189
      %s207 = sphi 0, %s207
      %s209 = sphi 0, %s207
      %s210 = sphi 0, %s209
      %s224 = sphi 0, %s210
      %s230 = sphi 0, %s232
      %s233 = sphi 0, %s230
      %s234 = sphi 0, %s233
      %s250 = sphi 0, %s234
    $region4: #{tpu_custom_call.1} parent=1 // loop_header_branch
      %29 = sbr.rel (%p27) target = $region8
    $region5: #{tpu_custom_call.1} parent=1 // loop_body
      %s31 = ssub.s32 %s26, 1
      %s32 = ssub.s32 %s26, 2
      %s33 = sadd.s32 %s26, 1
      %s34 = ssub.s32 %s26, %s33
      %p35 = scmp.eq.s32.totalorder %s34, 0
      %s37 = sadd.s32 %s36, 1
      %s38 = scalar_select %p35, %s36, %s37
      %p41 = pneg %p35
      %p42 = scmp.eq.s32.totalorder %s26, 1
      %p43 = por %p41, %p42
      %p44 = scmp.ne.s32.totalorder %s36, %s39
      %p45 = scmp.eq.s32.totalorder %s26, 0
      %p46 = por %p44, %p45
      %p47 = scmp.ne.s32.totalorder %s36, %s39
      %p48 = scmp.eq.s32.totalorder %s31, 1
      %p49 = por %p47, %p48
      %p50 = scmp.ne.s32.totalorder %s39, %s40
      %p51 = scmp.eq.s32.totalorder %s31, 0
      %p52 = por %p50, %p51
      %p53 = scmp.ne.s32.totalorder %s39, %s40
      %p54 = scmp.eq.s32.totalorder %s32, 1
      %p55 = por %p53, %p54
      %p57 = scmp.ne.s32.totalorder %s40, %s56
      %p58 = scmp.eq.s32.totalorder %s32, 0
      %p59 = por %p57, %p58
      %s61 = sadd.s32 %s60, 1
      %p64 = scmp.eq.s32.totalorder %s26, 1
      %p65 = scmp.ne.s32.totalorder %s60, %s62
      %p66 = scmp.eq.s32.totalorder %s26, 0
      %p67 = por %p65, %p66
      %p68 = scmp.ne.s32.totalorder %s60, %s62
      %p69 = scmp.eq.s32.totalorder %s31, 1
      %p70 = por %p68, %p69
      %p71 = scmp.ne.s32.totalorder %s62, %s63
      %p72 = scmp.eq.s32.totalorder %s31, 0
      %p73 = por %p71, %p72
      %p74 = scmp.ne.s32.totalorder %s62, %s63
      %p75 = scmp.eq.s32.totalorder %s32, 1
      %p76 = por %p74, %p75
      %p78 = scmp.ne.s32.totalorder %s63, %s77
      %p79 = scmp.eq.s32.totalorder %s32, 0
      %p80 = por %p78, %p79
      %s82 = sadd.s32 %s81, 1
      %p85 = scmp.eq.s32.totalorder %s26, 1
      %p86 = scmp.ne.s32.totalorder %s81, %s83
      %p87 = scmp.eq.s32.totalorder %s26, 0
      %p88 = por %p86, %p87
      %p89 = scmp.ne.s32.totalorder %s81, %s83
      %p90 = scmp.eq.s32.totalorder %s31, 1
      %p91 = por %p89, %p90
      %p92 = scmp.ne.s32.totalorder %s83, %s84
      %p93 = scmp.eq.s32.totalorder %s31, 0
      %p94 = por %p92, %p93
      %p95 = scmp.ne.s32.totalorder %s83, %s84
      %p96 = scmp.eq.s32.totalorder %s32, 1
      %p97 = por %p95, %p96
      %p99 = scmp.ne.s32.totalorder %s84, %s98
      %p100 = scmp.eq.s32.totalorder %s32, 0
      %p101 = por %p99, %p100
      %s103 = sadd.s32 %s102, 1
      %p106 = scmp.eq.s32.totalorder %s26, 1
      %p107 = scmp.ne.s32.totalorder %s102, %s104
      %p108 = scmp.eq.s32.totalorder %s26, 0
      %p109 = por %p107, %p108
      %p110 = scmp.ne.s32.totalorder %s102, %s104
      %p111 = scmp.eq.s32.totalorder %s31, 1
      %p112 = por %p110, %p111
      %p113 = scmp.ne.s32.totalorder %s104, %s105
      %p114 = scmp.eq.s32.totalorder %s31, 0
      %p115 = por %p113, %p114
      %p116 = scmp.ne.s32.totalorder %s104, %s105
      %p117 = scmp.eq.s32.totalorder %s32, 1
      %p118 = por %p116, %p117
      %p120 = scmp.ne.s32.totalorder %s105, %s119
      %p121 = scmp.eq.s32.totalorder %s32, 0
      %p122 = por %p120, %p121
      %s124 = sadd.s32 %s123, 1
      %p127 = scmp.eq.s32.totalorder %s26, 1
      %p128 = scmp.ne.s32.totalorder %s123, %s125
      %p129 = scmp.eq.s32.totalorder %s26, 0
      %p130 = por %p128, %p129
      %p131 = scmp.ne.s32.totalorder %s123, %s125
      %p132 = scmp.eq.s32.totalorder %s31, 1
      %p133 = por %p131, %p132
      %p134 = scmp.ne.s32.totalorder %s125, %s126
      %p135 = scmp.eq.s32.totalorder %s31, 0
      %p136 = por %p134, %p135
      %p137 = scmp.ne.s32.totalorder %s125, %s126
      %p138 = scmp.eq.s32.totalorder %s32, 1
      %p139 = por %p137, %p138
      %p141 = scmp.ne.s32.totalorder %s126, %s140
      %p142 = scmp.eq.s32.totalorder %s32, 0
      %p143 = por %p141, %p142
      %s145 = sadd.s32 %s144, 1
      %p148 = scmp.eq.s32.totalorder %s26, 1
      %p149 = scmp.ne.s32.totalorder %s144, %s146
      %p150 = scmp.eq.s32.totalorder %s26, 0
      %p151 = por %p149, %p150
      %p152 = scmp.ne.s32.totalorder %s144, %s146
      %p153 = scmp.eq.s32.totalorder %s31, 1
      %p154 = por %p152, %p153
      %p155 = scmp.ne.s32.totalorder %s146, %s147
      %p156 = scmp.eq.s32.totalorder %s31, 0
      %p157 = por %p155, %p156
      %p158 = scmp.ne.s32.totalorder %s146, %s147
      %p159 = scmp.eq.s32.totalorder %s32, 1
      %p160 = por %p158, %p159
      %p162 = scmp.ne.s32.totalorder %s147, %s161
      %p163 = scmp.eq.s32.totalorder %s32, 0
      %p164 = por %p162, %p163
      %s166 = sadd.s32 %s165, 1
      %p169 = scmp.eq.s32.totalorder %s26, 1
      %p170 = scmp.ne.s32.totalorder %s165, %s167
      %p171 = scmp.eq.s32.totalorder %s26, 0
      %p172 = por %p170, %p171
      %p173 = scmp.ne.s32.totalorder %s165, %s167
      %p174 = scmp.eq.s32.totalorder %s31, 1
      %p175 = por %p173, %p174
      %p176 = scmp.ne.s32.totalorder %s167, %s168
      %p177 = scmp.eq.s32.totalorder %s31, 0
      %p178 = por %p176, %p177
      %p179 = scmp.ne.s32.totalorder %s167, %s168
      %p180 = scmp.eq.s32.totalorder %s32, 1
      %p181 = por %p179, %p180
      %p183 = scmp.ne.s32.totalorder %s168, %s182
      %p184 = scmp.eq.s32.totalorder %s32, 0
      %p185 = por %p183, %p184
      %s187 = sadd.s32 %s186, 1
      %p190 = scmp.eq.s32.totalorder %s26, 1
      %p191 = scmp.ne.s32.totalorder %s186, %s188
      %p192 = scmp.eq.s32.totalorder %s26, 0
      %p193 = por %p191, %p192
      %p194 = scmp.ne.s32.totalorder %s186, %s188
      %p195 = scmp.eq.s32.totalorder %s31, 1
      %p196 = por %p194, %p195
      %p197 = scmp.ne.s32.totalorder %s188, %s189
      %p198 = scmp.eq.s32.totalorder %s31, 0
      %p199 = por %p197, %p198
      %p200 = scmp.ne.s32.totalorder %s188, %s189
      %p201 = scmp.eq.s32.totalorder %s32, 1
      %p202 = por %p200, %p201
      %p204 = scmp.ne.s32.totalorder %s189, %s203
      %p205 = scmp.eq.s32.totalorder %s32, 0
      %p206 = por %p204, %p205
      %s208 = sadd.s32 %s207, 1
      %p211 = scmp.eq.s32.totalorder %s26, 1
      %p212 = scmp.ne.s32.totalorder %s207, %s209
      %p213 = scmp.eq.s32.totalorder %s26, 0
      %p214 = por %p212, %p213
      %p215 = scmp.ne.s32.totalorder %s207, %s209
      %p216 = scmp.eq.s32.totalorder %s31, 1
      %p217 = por %p215, %p216
      %p218 = scmp.ne.s32.totalorder %s209, %s210
      %p219 = scmp.eq.s32.totalorder %s31, 0
      %p220 = por %p218, %p219
      %p221 = scmp.ne.s32.totalorder %s209, %s210
      %p222 = scmp.eq.s32.totalorder %s32, 1
      %p223 = por %p221, %p222
      %p225 = scmp.ne.s32.totalorder %s210, %s224
      %p226 = scmp.eq.s32.totalorder %s32, 0
      %p227 = por %p225, %p226
      %s228 = ssub.s32 %s26, %s33
      %p229 = scmp.eq.s32.totalorder %s228, 0
      %s231 = sadd.s32 %s230, 1
      %s232 = scalar_select %p229, %s230, %s231
      %p235 = pneg %p229
      %p236 = scmp.eq.s32.totalorder %s26, 1
      %p237 = por %p235, %p236
      %p238 = scmp.ne.s32.totalorder %s230, %s233
      %p239 = scmp.eq.s32.totalorder %s26, 0
      %p240 = por %p238, %p239
      %p241 = scmp.ne.s32.totalorder %s230, %s233
      %p242 = scmp.eq.s32.totalorder %s31, 1
      %p243 = por %p241, %p242
      %p244 = scmp.ne.s32.totalorder %s233, %s234
      %p245 = scmp.eq.s32.totalorder %s31, 0
      %p246 = por %p244, %p245
      %p247 = scmp.ne.s32.totalorder %s233, %s234
      %p248 = scmp.eq.s32.totalorder %s32, 1
      %p249 = por %p247, %p248
      %p251 = scmp.ne.s32.totalorder %s234, %s250
      %p252 = scmp.eq.s32.totalorder %s32, 0
      %p253 = por %p251, %p252
      %p254 = scmp.le.s32.totalorder 1, %s26
      %p255 = scmp.lt.s32.totalorder %s26, 3
      %p256 = pnand %p254, %p255
      %p257 = pneg %p256
      // Predicated region
      $region9: #{tpu_custom_call.1} parent=5 // pred_check
        _
      $region10: #{tpu_custom_call.1} parent=5 // pred_check_branch
        %259 = sbr.rel (%p256) target = $region12
      $region11: #{tpu_custom_call.1} parent=5 // pred_region
        %s260 = ssub.s32 %s26, 1
        // Predicated region
        $region13: #{tpu_custom_call.1} parent=11 // pred_check
          %p261 = pneg %p73
        $region14: #{tpu_custom_call.1} parent=11 // pred_check_branch
          %263 = sbr.rel (%p261) target = $region16
        $region15: #{tpu_custom_call.1} parent=11 // pred_region
          %s265 = ssub.s32 6144, 6144
          %266 = vsyncadd [#allocation8], %s265
          %s267 = sshll.u32 [#allocation7], 4
          %s268 = int_to_ptr.vmem [resolvable:$true] %s267
          %273 = dma.hbm_to_vmem [thread:$0]  %s1, 6144, %s268, [#allocation8], 128, 128, 8
        $region16: #{tpu_custom_call.1} parent=11 // pred_fallthru
          _
        // Predicated region
        $region17: #{tpu_custom_call.1} parent=11 // pred_check
          %p274 = pneg %p94
        $region18: #{tpu_custom_call.1} parent=11 // pred_check_branch
          %276 = sbr.rel (%p274) target = $region20
        $region19: #{tpu_custom_call.1} parent=11 // pred_region
          %s278 = ssub.s32 4096, 4096
          %279 = vsyncadd [#allocation8], %s278
          %s280 = sshll.u32 [#allocation9], 4
          %s281 = int_to_ptr.vmem [resolvable:$true] %s280
          %286 = dma.hbm_to_vmem [thread:$0]  %s2, 4096, %s281, [#allocation8], 128, 128, 8
        $region20: #{tpu_custom_call.1} parent=11 // pred_fallthru
          _
        // Predicated region
        $region21: #{tpu_custom_call.1} parent=11 // pred_check
          %p287 = pneg %p115
        $region22: #{tpu_custom_call.1} parent=11 // pred_check_branch
          %289 = sbr.rel (%p287) target = $region24
        $region23: #{tpu_custom_call.1} parent=11 // pred_region
          %s291 = ssub.s32 2048, 2048
          %292 = vsyncadd [#allocation11], %s291
          %s293 = sshll.u32 [#allocation10], 4
          %s294 = int_to_ptr.vmem [resolvable:$true] %s293
          %299 = dma.hbm_to_vmem [thread:$0]  %s3, 2048, %s294, [#allocation11], 128, 128, 8
        $region24: #{tpu_custom_call.1} parent=11 // pred_fallthru
          _
        // Predicated region
        $region25: #{tpu_custom_call.1} parent=11 // pred_check
          %p300 = pneg %p136
        $region26: #{tpu_custom_call.1} parent=11 // pred_check_branch
          %302 = sbr.rel (%p300) target = $region28
        $region27: #{tpu_custom_call.1} parent=11 // pred_region
          %s304 = ssub.s32 6144, 6144
          %305 = vsyncadd [#allocation11], %s304
          %s306 = sshll.u32 [#allocation12], 4
          %s307 = int_to_ptr.vmem [resolvable:$true] %s306
          %312 = dma.hbm_to_vmem [thread:$0]  %s4, 6144, %s307, [#allocation11], 384, 384, 24
        $region28: #{tpu_custom_call.1} parent=11 // pred_fallthru
          _
        // Predicated region
        $region29: #{tpu_custom_call.1} parent=11 // pred_check
          %p313 = pneg %p157
        $region30: #{tpu_custom_call.1} parent=11 // pred_check_branch
          %315 = sbr.rel (%p313) target = $region32
        $region31: #{tpu_custom_call.1} parent=11 // pred_region
          %s317 = ssub.s32 256, 256
          %318 = vsyncadd [#allocation6], %s317
          %s319 = sshll.u32 %s5, 4
          %s320 = int_to_ptr.vmem [resolvable:$true] %s319
          %325 = dma.vmem_to_smem %s320, 256, [#allocation13], [#allocation6], 128, 128, 8
        $region32: #{tpu_custom_call.1} parent=11 // pred_fallthru
          _
        // Predicated region
        $region33: #{tpu_custom_call.1} parent=11 // pred_check
          %p326 = pneg %p178
        $region34: #{tpu_custom_call.1} parent=11 // pred_check_branch
          %328 = sbr.rel (%p326) target = $region36
        $region35: #{tpu_custom_call.1} parent=11 // pred_region
          %s330 = ssub.s32 16, 16
          %331 = vsyncadd [#allocation15], %s330
          %s333 = sshll.u32 %s6, 4
          %s334 = int_to_ptr.vmem [resolvable:$true] %s333
          %336 = dma.vmem_to_smem %s334, 16, [#allocation14], [#allocation15]
        $region36: #{tpu_custom_call.1} parent=11 // pred_fallthru
          _
        // Predicated region
        $region37: #{tpu_custom_call.1} parent=11 // pred_check
          %p337 = pneg %p199
        $region38: #{tpu_custom_call.1} parent=11 // pred_check_branch
          %339 = sbr.rel (%p337) target = $region40
        $region39: #{tpu_custom_call.1} parent=11 // pred_region
          %s341 = ssub.s32 16, 16
          %342 = vsyncadd [#allocation15], %s341
          %s344 = sshll.u32 %s7, 4
          %s345 = int_to_ptr.vmem [resolvable:$true] %s344
          %347 = dma.vmem_to_smem %s345, 16, [#allocation16], [#allocation15]
        $region40: #{tpu_custom_call.1} parent=11 // pred_fallthru
          _
        // Predicated region
        $region41: #{tpu_custom_call.1} parent=11 // pred_check
          %p348 = pneg %p220
        $region42: #{tpu_custom_call.1} parent=11 // pred_check_branch
          %350 = sbr.rel (%p348) target = $region44
        $region43: #{tpu_custom_call.1} parent=11 // pred_region
          _
        $region44: #{tpu_custom_call.1} parent=11 // pred_fallthru
          _
      $region12: #{tpu_custom_call.1} parent=5 // pred_fallthru
        _
      %p351 = scmp.lt.s32.totalorder %s26, 2
      // Predicated region
      $region45: #{tpu_custom_call.1} parent=5 // pred_check
        %p352 = pneg %p351
      $region46: #{tpu_custom_call.1} parent=5 // pred_check_branch
        %354 = sbr.rel (%p352) target = $region48
      $region47: #{tpu_custom_call.1} parent=5 // pred_region
        // Predicated region
        $region49: #{tpu_custom_call.1} parent=47 // pred_check
          %p355 = pneg %p46
        $region50: #{tpu_custom_call.1} parent=47 // pred_check_branch
          %357 = sbr.rel (%p355) target = $region52
        $region51: #{tpu_custom_call.1} parent=47 // pred_region
          %s358 = sand.u32 %s36, 1
          %s359 = scalar_lea.sflag [#allocation4], %s358
          %s360 = sand.u32 %s36, 1
          %s361 = smul.addr %s360, 128
          %s362 = scalar_lea.vmem [#allocation3], %s361
          %s364 = ssub.s32 2048, 2048
          %365 = vsyncadd %s359, %s364
          %s366 = smul.addr %s26, 16
          %s367 = smul.addr %s366, 128
          %s368 = scalar_lea.hbm %s0, %s367
          %s369 = sshll.u32 %s362, 4
          %s370 = int_to_ptr.vmem [resolvable:$true] %s369
          %375 = dma.hbm_to_vmem [thread:$0]  %s368, 2048, %s370, %s359, 128, 128, 8
        $region52: #{tpu_custom_call.1} parent=47 // pred_fallthru
          _
      $region48: #{tpu_custom_call.1} parent=5 // pred_fallthru
        _
      %p376 = scmp.le.s32.totalorder 1, %s26
      %p377 = scmp.lt.s32.totalorder %s26, 3
      %p378 = pnand %p376, %p377
      %p379 = pneg %p378
      // Predicated region
      $region53: #{tpu_custom_call.1} parent=5 // pred_check
        _
      $region54: #{tpu_custom_call.1} parent=5 // pred_check_branch
        %381 = sbr.rel (%p378) target = $region56
      $region55: #{tpu_custom_call.1} parent=5 // pred_region
        %s382 = ssub.s32 %s26, 1
        %s383 = sand.u32 %s39, 1
        %s384 = scalar_lea.sflag [#allocation4], %s383
        %s385 = sand.u32 %s39, 1
        %s386 = smul.addr %s385, 128
        %s387 = scalar_lea.vmem [#allocation3], %s386
        // Predicated region
        $region57: #{tpu_custom_call.1} parent=55 // pred_check
          %p388 = pneg %p52
        $region58: #{tpu_custom_call.1} parent=55 // pred_check_branch
          %390 = sbr.rel (%p388) target = $region60
        $region59: #{tpu_custom_call.1} parent=55 // pred_region
          %391 = dma.done %s384, 2048
        $region60: #{tpu_custom_call.1} parent=55 // pred_fallthru
          _
        // Predicated region
        $region61: #{tpu_custom_call.1} parent=55 // pred_check
          %p392 = pneg %p73
        $region62: #{tpu_custom_call.1} parent=55 // pred_check_branch
          %394 = sbr.rel (%p392) target = $region64
        $region63: #{tpu_custom_call.1} parent=55 // pred_region
          %395 = dma.done [#allocation8], 6144
        $region64: #{tpu_custom_call.1} parent=55 // pred_fallthru
          _
        // Predicated region
        $region65: #{tpu_custom_call.1} parent=55 // pred_check
          %p396 = pneg %p94
        $region66: #{tpu_custom_call.1} parent=55 // pred_check_branch
          %398 = sbr.rel (%p396) target = $region68
        $region67: #{tpu_custom_call.1} parent=55 // pred_region
          %399 = dma.done [#allocation8], 4096
        $region68: #{tpu_custom_call.1} parent=55 // pred_fallthru
          _
        // Predicated region
        $region69: #{tpu_custom_call.1} parent=55 // pred_check
          %p400 = pneg %p115
        $region70: #{tpu_custom_call.1} parent=55 // pred_check_branch
          %402 = sbr.rel (%p400) target = $region72
        $region71: #{tpu_custom_call.1} parent=55 // pred_region
          %403 = dma.done [#allocation11], 2048
        $region72: #{tpu_custom_call.1} parent=55 // pred_fallthru
          _
        // Predicated region
        $region73: #{tpu_custom_call.1} parent=55 // pred_check
          %p404 = pneg %p136
        $region74: #{tpu_custom_call.1} parent=55 // pred_check_branch
          %406 = sbr.rel (%p404) target = $region76
        $region75: #{tpu_custom_call.1} parent=55 // pred_region
          %407 = dma.done [#allocation11], 6144
        $region76: #{tpu_custom_call.1} parent=55 // pred_fallthru
          _
        // Predicated region
        $region77: #{tpu_custom_call.1} parent=55 // pred_check
          %p408 = pneg %p157
        $region78: #{tpu_custom_call.1} parent=55 // pred_check_branch
          %410 = sbr.rel (%p408) target = $region80
        $region79: #{tpu_custom_call.1} parent=55 // pred_region
          %411 = dma.done [#allocation6], 256
        $region80: #{tpu_custom_call.1} parent=55 // pred_fallthru
          _
        // Predicated region
        $region81: #{tpu_custom_call.1} parent=55 // pred_check
          %p412 = pneg %p178
        $region82: #{tpu_custom_call.1} parent=55 // pred_check_branch
          %414 = sbr.rel (%p412) target = $region84
        $region83: #{tpu_custom_call.1} parent=55 // pred_region
          %415 = dma.done [#allocation15], 16
        $region84: #{tpu_custom_call.1} parent=55 // pred_fallthru
          _
        // Predicated region
        $region85: #{tpu_custom_call.1} parent=55 // pred_check
          %p416 = pneg %p199
        $region86: #{tpu_custom_call.1} parent=55 // pred_check_branch
          %418 = sbr.rel (%p416) target = $region88
        $region87: #{tpu_custom_call.1} parent=55 // pred_region
          %419 = dma.done [#allocation15], 16
        $region88: #{tpu_custom_call.1} parent=55 // pred_fallthru
          _
        %420 = sfence
        %s421 = sand.u32 %s39, 1
        %s422 = scalar_lea.sflag [#allocation4], %s421
        %s423 = sand.u32 %s39, 1
        %s424 = smul.addr %s423, 128
        %s425 = scalar_lea.vmem [#allocation3], %s424
        %p426 = pneg %p52
        %p427 = pneg %p49
        %p428 = pneg %p73
        %p429 = pneg %p70
        %p430 = pneg %p94
        %p431 = pneg %p91
        %p432 = pneg %p115
        %p433 = pneg %p112
        %p434 = pneg %p136
        %p435 = pneg %p133
        %p436 = pneg %p157
        %p437 = pneg %p154
        %p438 = pneg %p178
        %p439 = pneg %p175
        %p440 = pneg %p199
        %p441 = pneg %p196
        %p442 = pneg %p220
        %p443 = pneg %p217
        %p444 = pneg %p246
        %p445 = pneg %p243
        %s446 = sand.u32 %s233, 1
        %s447 = scalar_lea.sflag [#allocation5], %s446
        %s448 = sand.u32 %s233, 1
        %s449 = smul.addr %s448, 128
        %s450 = scalar_lea.vmem [#allocation17], %s449
        %v451 = vld [vmem:[%s387] sm:$0xff]
        %v452 = vld [vmem:[%s387 + $0x8] sm:$0xff]
        %v453 = vld [vmem:[%s387 + $0x10] sm:$0xff]
        %v454 = vld [vmem:[%s387 + $0x18] sm:$0xff]
        %v455 = vld [vmem:[%s387 + $0x20] sm:$0xff]
        %v456 = vld [vmem:[%s387 + $0x28] sm:$0xff]
        %v457 = vld [vmem:[%s387 + $0x30] sm:$0xff]
        %v458 = vld [vmem:[%s387 + $0x38] sm:$0xff]
        %v459 = vld [vmem:[%s387 + $0x40] sm:$0xff]
        %v460 = vld [vmem:[%s387 + $0x48] sm:$0xff]
        %v461 = vld [vmem:[%s387 + $0x50] sm:$0xff]
        %v462 = vld [vmem:[%s387 + $0x58] sm:$0xff]
        %v463 = vld [vmem:[%s387 + $0x60] sm:$0xff]
        %v464 = vld [vmem:[%s387 + $0x68] sm:$0xff]
        %v465 = vld [vmem:[%s387 + $0x70] sm:$0xff]
        %v466 = vld [vmem:[%s387 + $0x78] sm:$0xff]
        %v467 = vld [vmem:[#allocation12] sm:$0xff]
        %v468 = vld [vmem:[#allocation12 + $0x8] sm:$0xff]
        %v469 = vld [vmem:[#allocation12 + $0x10] sm:$0xff]
        %v470 = vld [vmem:[#allocation12 + $0x18] sm:$0xff]
        %v471 = vld [vmem:[#allocation12 + $0x20] sm:$0xff]
        %v472 = vld [vmem:[#allocation12 + $0x28] sm:$0xff]
        %v473 = vld [vmem:[#allocation12 + $0x30] sm:$0xff]
        %v474 = vld [vmem:[#allocation12 + $0x38] sm:$0xff]
        %v475 = vld [vmem:[#allocation12 + $0x40] sm:$0xff]
        %v476 = vld [vmem:[#allocation12 + $0x48] sm:$0xff]
        %v477 = vld [vmem:[#allocation12 + $0x50] sm:$0xff]
        %v478 = vld [vmem:[#allocation12 + $0x58] sm:$0xff]
        %v479 = vld [vmem:[#allocation12 + $0x60] sm:$0xff]
        %v480 = vld [vmem:[#allocation12 + $0x68] sm:$0xff]
        %v481 = vld [vmem:[#allocation12 + $0x70] sm:$0xff]
        %v482 = vld [vmem:[#allocation12 + $0x78] sm:$0xff]
        %v483 = vld [vmem:[#allocation12 + $0x80] sm:$0xff]
        %v484 = vld [vmem:[#allocation12 + $0x88] sm:$0xff]
        %v485 = vld [vmem:[#allocation12 + $0x90] sm:$0xff]
        %v486 = vld [vmem:[#allocation12 + $0x98] sm:$0xff]
        %v487 = vld [vmem:[#allocation12 + $0xa0] sm:$0xff]
        %v488 = vld [vmem:[#allocation12 + $0xa8] sm:$0xff]
        %v489 = vld [vmem:[#allocation12 + $0xb0] sm:$0xff]
        %v490 = vld [vmem:[#allocation12 + $0xb8] sm:$0xff]
        %v491 = vld [vmem:[#allocation12 + $0xc0] sm:$0xff]
        %v492 = vld [vmem:[#allocation12 + $0xc8] sm:$0xff]
        %v493 = vld [vmem:[#allocation12 + $0xd0] sm:$0xff]
        %v494 = vld [vmem:[#allocation12 + $0xd8] sm:$0xff]
        %v495 = vld [vmem:[#allocation12 + $0xe0] sm:$0xff]
        %v496 = vld [vmem:[#allocation12 + $0xe8] sm:$0xff]
        %v497 = vld [vmem:[#allocation12 + $0xf0] sm:$0xff]
        %v498 = vld [vmem:[#allocation12 + $0xf8] sm:$0xff]
        %v499 = vld [vmem:[#allocation12 + $0x100] sm:$0xff]
        %v500 = vld [vmem:[#allocation12 + $0x108] sm:$0xff]
        %v501 = vld [vmem:[#allocation12 + $0x110] sm:$0xff]
        %v502 = vld [vmem:[#allocation12 + $0x118] sm:$0xff]
        %v503 = vld [vmem:[#allocation12 + $0x120] sm:$0xff]
        %v504 = vld [vmem:[#allocation12 + $0x128] sm:$0xff]
        %v505 = vld [vmem:[#allocation12 + $0x130] sm:$0xff]
        %v506 = vld [vmem:[#allocation12 + $0x138] sm:$0xff]
        %v507 = vld [vmem:[#allocation12 + $0x140] sm:$0xff]
        %v508 = vld [vmem:[#allocation12 + $0x148] sm:$0xff]
        %v509 = vld [vmem:[#allocation12 + $0x150] sm:$0xff]
        %v510 = vld [vmem:[#allocation12 + $0x158] sm:$0xff]
        %v511 = vld [vmem:[#allocation12 + $0x160] sm:$0xff]
        %v512 = vld [vmem:[#allocation12 + $0x168] sm:$0xff]
        %v513 = vld [vmem:[#allocation12 + $0x170] sm:$0xff]
        %v514 = vld [vmem:[#allocation12 + $0x178] sm:$0xff]
        %515 = vmatprep.subr.mxu0 %v468
        %516 = vmatpush1.msra.mxu0 %v467
        %517 = vmatprep.subr.mxu0 %v471
        %518 = vmatpush1.msra.mxu0 %v470
        %519 = vmatprep.subr.mxu0 %v474
        %520 = vmatpush1.msra.mxu0 %v473
        %521 = vmatprep.subr.mxu0 %v477
        %522 = vmatpush1.msra.mxu0 %v476
        %523 = vmatprep.subr.mxu0 %v480
        %524 = vmatpush1.msra.mxu0 %v479
        %525 = vmatprep.subr.mxu0 %v483
        %526 = vmatpush1.msra.mxu0 %v482
        %527 = vmatprep.subr.mxu0 %v486
        %528 = vmatpush1.msra.mxu0 %v485
        %529 = vmatprep.subr.mxu0 %v489
        %530 = vmatpush1.msra.mxu0 %v488
        %531 = vmatprep.subr.mxu0 %v492
        %532 = vmatpush1.msra.mxu0 %v491
        %533 = vmatprep.subr.mxu0 %v495
        %534 = vmatpush1.msra.mxu0 %v494
        %535 = vmatprep.subr.mxu0 %v498
        %536 = vmatpush1.msra.mxu0 %v497
        %537 = vmatprep.subr.mxu0 %v501
        %538 = vmatpush1.msra.mxu0 %v500
        %539 = vmatprep.subr.mxu0 %v504
        %540 = vmatpush1.msra.mxu0 %v503
        %541 = vmatprep.subr.mxu0 %v507
        %542 = vmatpush1.msra.mxu0 %v506
        %543 = vmatprep.subr.mxu0 %v510
        %544 = vmatpush1.msra.mxu0 %v509
        %545 = vmatprep.subr.mxu0 %v513
        %546 = vmatpush1.msra.mxu0 %v512
        %547 = vmatprep.subr.mxu0 0.0
        %548 = vmatpush1.msra.mxu0 0.0
        %549 = vmatprep.subr.mxu0 0.0
        %550 = vmatpush1.msra.mxu0 0.0
        %551 = vmatprep.subr.mxu0 0.0
        %552 = vmatpush1.msra.mxu0 0.0
        %553 = vmatprep.subr.mxu0 0.0
        %554 = vmatpush1.msra.mxu0 0.0
        %555 = vmatprep.subr.mxu0 0.0
        %556 = vmatpush1.msra.mxu0 0.0
        %557 = vmatprep.subr.mxu0 0.0
        %558 = vmatpush1.msra.mxu0 0.0
        %559 = vmatprep.subr.mxu0 0.0
        %560 = vmatpush1.msra.mxu0 0.0
        %561 = vmatprep.subr.mxu0 0.0
        %562 = vmatpush1.msra.mxu0 0.0
        %563 = vmatprep.subr.mxu0 0.0
        %564 = vmatpush1.msra.mxu0 0.0
        %565 = vmatprep.subr.mxu0 0.0
        %566 = vmatpush1.msra.mxu0 0.0
        %567 = vmatprep.subr.mxu0 0.0
        %568 = vmatpush1.msra.mxu0 0.0
        %569 = vmatprep.subr.mxu0 0.0
        %570 = vmatpush1.msra.mxu0 0.0
        %571 = vmatprep.subr.mxu0 0.0
        %572 = vmatpush1.msra.mxu0 0.0
        %573 = vmatprep.subr.mxu0 0.0
        %574 = vmatpush1.msra.mxu0 0.0
        %575 = vmatprep.subr.mxu0 0.0
        %576 = vmatpush1.msra.mxu0 0.0
        %577 = vmatprep.subr.mxu0 0.0
        %578 = vmatpush1.msra.mxu0 0.0
        %579 = vmatprep.mubr.f32.mxu0 0.0
        %580 = vmatmul.mubr.f32.gmra.mrb[0].mxu0 %v451
        %v581 = vpop.f32.mrb[0].mxu0
        %v582 = vadd.f32 0.0, %v581
        %v583 = vpop.f32.mrb[0].mxu0
        %v584 = vadd.f32 0.0, %v583
        %585 = vmatprep.mubr.f32.mxu0 0.0
        %586 = vmatmul.mubr.f32.gmra.mrb[0].mxu0 %v452
        %v587 = vpop.f32.mrb[0].mxu0
        %v588 = vadd.f32 0.0, %v587
        %v589 = vpop.f32.mrb[0].mxu0
        %v590 = vadd.f32 0.0, %v589
        %591 = vmatprep.mubr.f32.mxu0 0.0
        %592 = vmatmul.mubr.f32.gmra.mrb[0].mxu0 %v453
        %v593 = vpop.f32.mrb[0].mxu0
        %v594 = vadd.f32 0.0, %v593
        %v595 = vpop.f32.mrb[0].mxu0
        %v596 = vadd.f32 0.0, %v595
        %597 = vmatprep.mubr.f32.mxu0 0.0
        %598 = vmatmul.mubr.f32.gmra.mrb[0].mxu0 %v454
        %v599 = vpop.f32.mrb[0].mxu0
        %v600 = vadd.f32 0.0, %v599
        %v601 = vpop.f32.mrb[0].mxu0
        %v602 = vadd.f32 0.0, %v601
        %603 = vmatprep.mubr.f32.mxu0 0.0
        %604 = vmatmul.mubr.f32.gmra.mrb[0].mxu0 %v455
        %v605 = vpop.f32.mrb[0].mxu0
        %v606 = vadd.f32 0.0, %v605
        %v607 = vpop.f32.mrb[0].mxu0
        %v608 = vadd.f32 0.0, %v607
        %609 = vmatprep.mubr.f32.mxu0 0.0
        %610 = vmatmul.mubr.f32.gmra.mrb[0].mxu0 %v456
        %v611 = vpop.f32.mrb[0].mxu0
        %v612 = vadd.f32 0.0, %v611
        %v613 = vpop.f32.mrb[0].mxu0
        %v614 = vadd.f32 0.0, %v613
        %615 = vmatprep.mubr.f32.mxu0 0.0
        %616 = vmatmul.mubr.f32.gmra.mrb[0].mxu0 %v457
        %v617 = vpop.f32.mrb[0].mxu0
        %v618 = vadd.f32 0.0, %v617
        %v619 = vpop.f32.mrb[0].mxu0
        %v620 = vadd.f32 0.0, %v619
        %621 = vmatprep.mubr.f32.mxu0 0.0
        %622 = vmatmul.mubr.f32.gmra.mrb[0].mxu0 %v458
        %v623 = vpop.f32.mrb[0].mxu0
        %v624 = vadd.f32 0.0, %v623
        %v625 = vpop.f32.mrb[0].mxu0
        %v626 = vadd.f32 0.0, %v625
        %627 = vmatprep.mubr.f32.mxu0 0.0
        %628 = vmatmul.mubr.f32.gmra.mrb[0].mxu0 %v459
        %v629 = vpop.f32.mrb[0].mxu0
        %v630 = vadd.f32 0.0, %v629
        %v631 = vpop.f32.mrb[0].mxu0
        %v632 = vadd.f32 0.0, %v631
        %633 = vmatprep.mubr.f32.mxu0 0.0
        %634 = vmatmul.mubr.f32.gmra.mrb[0].mxu0 %v460
        %v635 = vpop.f32.mrb[0].mxu0
        %v636 = vadd.f32 0.0, %v635
        %v637 = vpop.f32.mrb[0].mxu0
        %v638 = vadd.f32 0.0, %v637
        %639 = vmatprep.mubr.f32.mxu0 0.0
        %640 = vmatmul.mubr.f32.gmra.mrb[0].mxu0 %v461
        %v641 = vpop.f32.mrb[0].mxu0
        %v642 = vadd.f32 0.0, %v641
        %v643 = vpop.f32.mrb[0].mxu0
        %v644 = vadd.f32 0.0, %v643
        %645 = vmatprep.mubr.f32.mxu0 0.0
        %646 = vmatmul.mubr.f32.gmra.mrb[0].mxu0 %v462
        %v647 = vpop.f32.mrb[0].mxu0
        %v648 = vadd.f32 0.0, %v647
        %v649 = vpop.f32.mrb[0].mxu0
        %v650 = vadd.f32 0.0, %v649
        %651 = vmatprep.mubr.f32.mxu0 0.0
        %652 = vmatmul.mubr.f32.gmra.mrb[0].mxu0 %v463
        %v653 = vpop.f32.mrb[0].mxu0
        %v654 = vadd.f32 0.0, %v653
        %v655 = vpop.f32.mrb[0].mxu0
        %v656 = vadd.f32 0.0, %v655
        %657 = vmatprep.mubr.f32.mxu0 0.0
        %658 = vmatmul.mubr.f32.gmra.mrb[0].mxu0 %v464
        %v659 = vpop.f32.mrb[0].mxu0
        %v660 = vadd.f32 0.0, %v659
        %v661 = vpop.f32.mrb[0].mxu0
        %v662 = vadd.f32 0.0, %v661
        %663 = vmatprep.mubr.f32.mxu0 0.0
        %664 = vmatmul.mubr.f32.gmra.mrb[0].mxu0 %v465
        %v665 = vpop.f32.mrb[0].mxu0
        %v666 = vadd.f32 0.0, %v665
        %v667 = vpop.f32.mrb[0].mxu0
        %v668 = vadd.f32 0.0, %v667
        %669 = vmatprep.mubr.f32.mxu0 0.0
        %670 = vmatmul.mubr.f32.gmra.mrb[0].mxu0 %v466
        %v671 = vpop.f32.mrb[0].mxu0
        %v672 = vadd.f32 0.0, %v671
        %v673 = vpop.f32.mrb[0].mxu0
        %v674 = vadd.f32 0.0, %v673
        %675 = vdwg.mxu0
        %676 = vmatprep.subr.mxu0 0.0
        %677 = vmatpush1.msra.mxu0 %v469
        %678 = vmatprep.subr.mxu0 0.0
        %679 = vmatpush1.msra.mxu0 %v472
        %680 = vmatprep.subr.mxu0 0.0
        %681 = vmatpush1.msra.mxu0 %v475
        %682 = vmatprep.subr.mxu0 0.0
        %683 = vmatpush1.msra.mxu0 %v478
        %684 = vmatprep.subr.mxu0 0.0
        %685 = vmatpush1.msra.mxu0 %v481
        %686 = vmatprep.subr.mxu0 0.0
        %687 = vmatpush1.msra.mxu0 %v484
        %688 = vmatprep.subr.mxu0 0.0
        %689 = vmatpush1.msra.mxu0 %v487
        %690 = vmatprep.subr.mxu0 0.0
        %691 = vmatpush1.msra.mxu0 %v490
        %692 = vmatprep.subr.mxu0 0.0
        %693 = vmatpush1.msra.mxu0 %v493
        %694 = vmatprep.subr.mxu0 0.0
        %695 = vmatpush1.msra.mxu0 %v496
        %696 = vmatprep.subr.mxu0 0.0
        %697 = vmatpush1.msra.mxu0 %v499
        %698 = vmatprep.subr.mxu0 0.0
        %699 = vmatpush1.msra.mxu0 %v502
        %700 = vmatprep.subr.mxu0 0.0
        %701 = vmatpush1.msra.mxu0 %v505
        %702 = vmatprep.subr.mxu0 0.0
        %703 = vmatpush1.msra.mxu0 %v508
        %704 = vmatprep.subr.mxu0 0.0
        %705 = vmatpush1.msra.mxu0 %v511
        %706 = vmatprep.subr.mxu0 0.0
        %707 = vmatpush1.msra.mxu0 %v514
        %708 = vmatprep.subr.mxu0 0.0
        %709 = vmatpush1.msra.mxu0 0.0
        %710 = vmatprep.subr.mxu0 0.0
        %711 = vmatpush1.msra.mxu0 0.0
        %712 = vmatprep.subr.mxu0 0.0
        %713 = vmatpush1.msra.mxu0 0.0
        %714 = vmatprep.subr.mxu0 0.0
        %715 = vmatpush1.msra.mxu0 0.0
        %716 = vmatprep.subr.mxu0 0.0
        %717 = vmatpush1.msra.mxu0 0.0
        %718 = vmatprep.subr.mxu0 0.0
        %719 = vmatpush1.msra.mxu0 0.0
        %720 = vmatprep.subr.mxu0 0.0
        %721 = vmatpush1.msra.mxu0 0.0
        %722 = vmatprep.subr.mxu0 0.0
        %723 = vmatpush1.msra.mxu0 0.0
        %724 = vmatprep.subr.mxu0 0.0
        %725 = vmatpush1.msra.mxu0 0.0
        %726 = vmatprep.subr.mxu0 0.0
        %727 = vmatpush1.msra.mxu0 0.0
        %728 = vmatprep.subr.mxu0 0.0
        %729 = vmatpush1.msra.mxu0 0.0
        %730 = vmatprep.subr.mxu0 0.0
        %731 = vmatpush1.msra.mxu0 0.0
        %732 = vmatprep.subr.mxu0 0.0
        %733 = vmatpush1.msra.mxu0 0.0
        %734 = vmatprep.subr.mxu0 0.0
        %735 = vmatpush1.msra.mxu0 0.0
        %736 = vmatprep.subr.mxu0 0.0
        %737 = vmatpush1.msra.mxu0 0.0
        %738 = vmatprep.subr.mxu0 0.0
        %739 = vmatpush1.msra.mxu0 0.0
        %740 = vmatprep.mubr.f32.mxu0 0.0
        %741 = vmatmul.mubr.f32.gmra.mrb[0].mxu0 %v451
        %v742 = vpop.f32.mrb[0].mxu0
        %v743 = vadd.f32 0.0, %v742
        %v744 = vpop.f32.mrb[0].mxu0
        %745 = vmatprep.mubr.f32.mxu0 0.0
        %746 = vmatmul.mubr.f32.gmra.mrb[0].mxu0 %v452
        %v747 = vpop.f32.mrb[0].mxu0
        %v748 = vadd.f32 0.0, %v747
        %v749 = vpop.f32.mrb[0].mxu0
        %750 = vmatprep.mubr.f32.mxu0 0.0
        %751 = vmatmul.mubr.f32.gmra.mrb[0].mxu0 %v453
        %v752 = vpop.f32.mrb[0].mxu0
        %v753 = vadd.f32 0.0, %v752
        %v754 = vpop.f32.mrb[0].mxu0
        %755 = vmatprep.mubr.f32.mxu0 0.0
        %756 = vmatmul.mubr.f32.gmra.mrb[0].mxu0 %v454
        %v757 = vpop.f32.mrb[0].mxu0
        %v758 = vadd.f32 0.0, %v757
        %v759 = vpop.f32.mrb[0].mxu0
        %760 = vmatprep.mubr.f32.mxu0 0.0
        %761 = vmatmul.mubr.f32.gmra.mrb[0].mxu0 %v455
        %v762 = vpop.f32.mrb[0].mxu0
        %v763 = vadd.f32 0.0, %v762
        %v764 = vpop.f32.mrb[0].mxu0
        %765 = vmatprep.mubr.f32.mxu0 0.0
        %766 = vmatmul.mubr.f32.gmra.mrb[0].mxu0 %v456
        %v767 = vpop.f32.mrb[0].mxu0
        %v768 = vadd.f32 0.0, %v767
        %v769 = vpop.f32.mrb[0].mxu0
        %770 = vmatprep.mubr.f32.mxu0 0.0
        %771 = vmatmul.mubr.f32.gmra.mrb[0].mxu0 %v457
        %v772 = vpop.f32.mrb[0].mxu0
        %v773 = vadd.f32 0.0, %v772
        %v774 = vpop.f32.mrb[0].mxu0
        %775 = vmatprep.mubr.f32.mxu0 0.0
        %776 = vmatmul.mubr.f32.gmra.mrb[0].mxu0 %v458
        %v777 = vpop.f32.mrb[0].mxu0
        %v778 = vadd.f32 0.0, %v777
        %v779 = vpop.f32.mrb[0].mxu0
        %780 = vmatprep.mubr.f32.mxu0 0.0
        %781 = vmatmul.mubr.f32.gmra.mrb[0].mxu0 %v459
        %v782 = vpop.f32.mrb[0].mxu0
        %v783 = vadd.f32 0.0, %v782
        %v784 = vpop.f32.mrb[0].mxu0
        %785 = vmatprep.mubr.f32.mxu0 0.0
        %786 = vmatmul.mubr.f32.gmra.mrb[0].mxu0 %v460
        %v787 = vpop.f32.mrb[0].mxu0
        %v788 = vadd.f32 0.0, %v787
        %v789 = vpop.f32.mrb[0].mxu0
        %790 = vmatprep.mubr.f32.mxu0 0.0
        %791 = vmatmul.mubr.f32.gmra.mrb[0].mxu0 %v461
        %v792 = vpop.f32.mrb[0].mxu0
        %v793 = vadd.f32 0.0, %v792
        %v794 = vpop.f32.mrb[0].mxu0
        %795 = vmatprep.mubr.f32.mxu0 0.0
        %796 = vmatmul.mubr.f32.gmra.mrb[0].mxu0 %v462
        %v797 = vpop.f32.mrb[0].mxu0
        %v798 = vadd.f32 0.0, %v797
        %v799 = vpop.f32.mrb[0].mxu0
        %800 = vmatprep.mubr.f32.mxu0 0.0
        %801 = vmatmul.mubr.f32.gmra.mrb[0].mxu0 %v463
        %v802 = vpop.f32.mrb[0].mxu0
        %v803 = vadd.f32 0.0, %v802
        %v804 = vpop.f32.mrb[0].mxu0
        %805 = vmatprep.mubr.f32.mxu0 0.0
        %806 = vmatmul.mubr.f32.gmra.mrb[0].mxu0 %v464
        %v807 = vpop.f32.mrb[0].mxu0
        %v808 = vadd.f32 0.0, %v807
        %v809 = vpop.f32.mrb[0].mxu0
        %810 = vmatprep.mubr.f32.mxu0 0.0
        %811 = vmatmul.mubr.f32.gmra.mrb[0].mxu0 %v465
        %v812 = vpop.f32.mrb[0].mxu0
        %v813 = vadd.f32 0.0, %v812
        %v814 = vpop.f32.mrb[0].mxu0
        %815 = vmatprep.mubr.f32.mxu0 0.0
        %816 = vmatmul.mubr.f32.gmra.mrb[0].mxu0 %v466
        %v817 = vpop.f32.mrb[0].mxu0
        %v818 = vadd.f32 0.0, %v817
        %v819 = vpop.f32.mrb[0].mxu0
        %820 = vdwg.mxu0
        %v821 = vld [vmem:[#allocation7] sm:$0xff]
        %v822 = vld [vmem:[#allocation7 + $0x8] sm:$0xff]
        %v823 = vld [vmem:[#allocation7 + $0x10] sm:$0xff]
        %v824 = vld [vmem:[#allocation7 + $0x18] sm:$0xff]
        %v825 = vld [vmem:[#allocation7 + $0x20] sm:$0xff]
        %v826 = vld [vmem:[#allocation7 + $0x28] sm:$0xff]
        %v827 = vld [vmem:[#allocation7 + $0x30] sm:$0xff]
        %v828 = vld [vmem:[#allocation7 + $0x38] sm:$0xff]
        %v829 = vld [vmem:[#allocation7 + $0x40] sm:$0xff]
        %v830 = vld [vmem:[#allocation7 + $0x48] sm:$0xff]
        %v831 = vld [vmem:[#allocation7 + $0x50] sm:$0xff]
        %v832 = vld [vmem:[#allocation7 + $0x58] sm:$0xff]
        %v833 = vld [vmem:[#allocation7 + $0x60] sm:$0xff]
        %v834 = vld [vmem:[#allocation7 + $0x68] sm:$0xff]
        %v835 = vld [vmem:[#allocation7 + $0x70] sm:$0xff]
        %v836 = vld [vmem:[#allocation7 + $0x78] sm:$0xff]
        %v837 = vld [vmem:[#allocation7 + $0x80] sm:$0xff]
        %v838 = vld [vmem:[#allocation7 + $0x88] sm:$0xff]
        %v839 = vld [vmem:[#allocation7 + $0x90] sm:$0xff]
        %v840 = vld [vmem:[#allocation7 + $0x98] sm:$0xff]
        %v841 = vld [vmem:[#allocation7 + $0xa0] sm:$0xff]
        %v842 = vld [vmem:[#allocation7 + $0xa8] sm:$0xff]
        %v843 = vld [vmem:[#allocation7 + $0xb0] sm:$0xff]
        %v844 = vld [vmem:[#allocation7 + $0xb8] sm:$0xff]
        %v845 = vld [vmem:[#allocation7 + $0xc0] sm:$0xff]
        %v846 = vld [vmem:[#allocation7 + $0xc8] sm:$0xff]
        %v847 = vld [vmem:[#allocation7 + $0xd0] sm:$0xff]
        %v848 = vld [vmem:[#allocation7 + $0xd8] sm:$0xff]
        %v849 = vld [vmem:[#allocation7 + $0xe0] sm:$0xff]
        %v850 = vld [vmem:[#allocation7 + $0xe8] sm:$0xff]
        %v851 = vld [vmem:[#allocation7 + $0xf0] sm:$0xff]
        %v852 = vld [vmem:[#allocation7 + $0xf8] sm:$0xff]
        %v853 = vld [vmem:[#allocation7 + $0x100] sm:$0xff]
        %v854 = vld [vmem:[#allocation7 + $0x108] sm:$0xff]
        %v855 = vld [vmem:[#allocation7 + $0x110] sm:$0xff]
        %v856 = vld [vmem:[#allocation7 + $0x118] sm:$0xff]
        %v857 = vld [vmem:[#allocation7 + $0x120] sm:$0xff]
        %v858 = vld [vmem:[#allocation7 + $0x128] sm:$0xff]
        %v859 = vld [vmem:[#allocation7 + $0x130] sm:$0xff]
        %v860 = vld [vmem:[#allocation7 + $0x138] sm:$0xff]
        %v861 = vld [vmem:[#allocation7 + $0x140] sm:$0xff]
        %v862 = vld [vmem:[#allocation7 + $0x148] sm:$0xff]
        %v863 = vld [vmem:[#allocation7 + $0x150] sm:$0xff]
        %v864 = vld [vmem:[#allocation7 + $0x158] sm:$0xff]
        %v865 = vld [vmem:[#allocation7 + $0x160] sm:$0xff]
        %v866 = vld [vmem:[#allocation7 + $0x168] sm:$0xff]
        %v867 = vld [vmem:[#allocation7 + $0x170] sm:$0xff]
        %v868 = vld [vmem:[#allocation7 + $0x178] sm:$0xff]
        %869 = vmatprep.subr.mxu0 0.0
        %870 = vmatpush1.msra.mxu0 %v582
        %871 = vmatprep.subr.mxu0 0.0
        %872 = vmatpush1.msra.mxu0 %v588
        %873 = vmatprep.subr.mxu0 0.0
        %874 = vmatpush1.msra.mxu0 %v594
        %875 = vmatprep.subr.mxu0 0.0
        %876 = vmatpush1.msra.mxu0 %v600
        %877 = vmatprep.subr.mxu0 0.0
        %878 = vmatpush1.msra.mxu0 %v606
        %879 = vmatprep.subr.mxu0 0.0
        %880 = vmatpush1.msra.mxu0 %v612
        %881 = vmatprep.subr.mxu0 0.0
        %882 = vmatpush1.msra.mxu0 %v618
        %883 = vmatprep.subr.mxu0 0.0
        %884 = vmatpush1.msra.mxu0 %v624
        %885 = vmatprep.subr.mxu0 0.0
        %886 = vmatpush1.msra.mxu0 %v630
        %887 = vmatprep.subr.mxu0 0.0
        %888 = vmatpush1.msra.mxu0 %v636
        %889 = vmatprep.subr.mxu0 0.0
        %890 = vmatpush1.msra.mxu0 %v642
        %891 = vmatprep.subr.mxu0 0.0
        %892 = vmatpush1.msra.mxu0 %v648
        %893 = vmatprep.subr.mxu0 0.0
        %894 = vmatpush1.msra.mxu0 %v654
        %895 = vmatprep.subr.mxu0 0.0
        %896 = vmatpush1.msra.mxu0 %v660
        %897 = vmatprep.subr.mxu0 0.0
        %898 = vmatpush1.msra.mxu0 %v666
        %899 = vmatprep.subr.mxu0 0.0
        %900 = vmatpush1.msra.mxu0 %v672
        %901 = vmatprep.subr.mxu0 0.0
        %902 = vmatpush1.msra.mxu0 0.0
        %903 = vmatprep.subr.mxu0 0.0
        %904 = vmatpush1.msra.mxu0 0.0
        %905 = vmatprep.subr.mxu0 0.0
        %906 = vmatpush1.msra.mxu0 0.0
        %907 = vmatprep.subr.mxu0 0.0
        %908 = vmatpush1.msra.mxu0 0.0
        %909 = vmatprep.subr.mxu0 0.0
        %910 = vmatpush1.msra.mxu0 0.0
        %911 = vmatprep.subr.mxu0 0.0
        %912 = vmatpush1.msra.mxu0 0.0
        %913 = vmatprep.subr.mxu0 0.0
        %914 = vmatpush1.msra.mxu0 0.0
        %915 = vmatprep.subr.mxu0 0.0
        %916 = vmatpush1.msra.mxu0 0.0
        %917 = vmatprep.subr.mxu0 0.0
        %918 = vmatpush1.msra.mxu0 0.0
        %919 = vmatprep.subr.mxu0 0.0
        %920 = vmatpush1.msra.mxu0 0.0
        %921 = vmatprep.subr.mxu0 0.0
        %922 = vmatpush1.msra.mxu0 0.0
        %923 = vmatprep.subr.mxu0 0.0
        %924 = vmatpush1.msra.mxu0 0.0
        %925 = vmatprep.subr.mxu0 0.0
        %926 = vmatpush1.msra.mxu0 0.0
        %927 = vmatprep.subr.mxu0 0.0
        %928 = vmatpush1.msra.mxu0 0.0
        %929 = vmatprep.subr.mxu0 0.0
        %930 = vmatpush1.msra.mxu0 0.0
        %931 = vmatprep.subr.mxu0 0.0
        %932 = vmatpush1.msra.mxu0 0.0
        %933 = vmatprep.mubr.f32.mxu0 0.0
        %934 = vmatmul.mubr.f32.gmra.mrb[0].mxu0 %v821
        %v935 = vpop.f32.mrb[0].mxu0
        %v936 = vadd.f32 0.0, %v935
        %v937 = vpop.f32.mrb[0].mxu0
        %938 = vmatprep.mubr.f32.mxu0 0.0
        %939 = vmatmul.mubr.f32.gmra.mrb[0].mxu0 %v822
        %v940 = vpop.f32.mrb[0].mxu0
        %v941 = vadd.f32 0.0, %v940
        %v942 = vpop.f32.mrb[0].mxu0
        %943 = vmatprep.mubr.f32.mxu0 0.0
        %944 = vmatmul.mubr.f32.gmra.mrb[0].mxu0 %v823
        %v945 = vpop.f32.mrb[0].mxu0
        %v946 = vadd.f32 0.0, %v945
        %v947 = vpop.f32.mrb[0].mxu0
        %948 = vmatprep.mubr.f32.mxu0 0.0
        %949 = vmatmul.mubr.f32.gmra.mrb[0].mxu0 %v824
        %v950 = vpop.f32.mrb[0].mxu0
        %v951 = vadd.f32 0.0, %v950
        %v952 = vpop.f32.mrb[0].mxu0
        %953 = vmatprep.mubr.f32.mxu0 0.0
        %954 = vmatmul.mubr.f32.gmra.mrb[0].mxu0 %v825
        %v955 = vpop.f32.mrb[0].mxu0
        %v956 = vadd.f32 0.0, %v955
        %v957 = vpop.f32.mrb[0].mxu0
        %958 = vmatprep.mubr.f32.mxu0 0.0
        %959 = vmatmul.mubr.f32.gmra.mrb[0].mxu0 %v826
        %v960 = vpop.f32.mrb[0].mxu0
        %v961 = vadd.f32 0.0, %v960
        %v962 = vpop.f32.mrb[0].mxu0
        %963 = vmatprep.mubr.f32.mxu0 0.0
        %964 = vmatmul.mubr.f32.gmra.mrb[0].mxu0 %v827
        %v965 = vpop.f32.mrb[0].mxu0
        %v966 = vadd.f32 0.0, %v965
        %v967 = vpop.f32.mrb[0].mxu0
        %968 = vmatprep.mubr.f32.mxu0 0.0
        %969 = vmatmul.mubr.f32.gmra.mrb[0].mxu0 %v828
        %v970 = vpop.f32.mrb[0].mxu0
        %v971 = vadd.f32 0.0, %v970
        %v972 = vpop.f32.mrb[0].mxu0
        %973 = vmatprep.mubr.f32.mxu0 0.0
        %974 = vmatmul.mubr.f32.gmra.mrb[0].mxu0 %v829
        %v975 = vpop.f32.mrb[0].mxu0
        %v976 = vadd.f32 0.0, %v975
        %v977 = vpop.f32.mrb[0].mxu0
        %978 = vmatprep.mubr.f32.mxu0 0.0
        %979 = vmatmul.mubr.f32.gmra.mrb[0].mxu0 %v830
        %v980 = vpop.f32.mrb[0].mxu0
        %v981 = vadd.f32 0.0, %v980
        %v982 = vpop.f32.mrb[0].mxu0
        %983 = vmatprep.mubr.f32.mxu0 0.0
        %984 = vmatmul.mubr.f32.gmra.mrb[0].mxu0 %v831
        %v985 = vpop.f32.mrb[0].mxu0
        %v986 = vadd.f32 0.0, %v985
        %v987 = vpop.f32.mrb[0].mxu0
        %988 = vmatprep.mubr.f32.mxu0 0.0
        %989 = vmatmul.mubr.f32.gmra.mrb[0].mxu0 %v832
        %v990 = vpop.f32.mrb[0].mxu0
        %v991 = vadd.f32 0.0, %v990
        %v992 = vpop.f32.mrb[0].mxu0
        %993 = vmatprep.mubr.f32.mxu0 0.0
        %994 = vmatmul.mubr.f32.gmra.mrb[0].mxu0 %v833
        %v995 = vpop.f32.mrb[0].mxu0
        %v996 = vadd.f32 0.0, %v995
        %v997 = vpop.f32.mrb[0].mxu0
        %998 = vmatprep.mubr.f32.mxu0 0.0
        %999 = vmatmul.mubr.f32.gmra.mrb[0].mxu0 %v834
        %v1000 = vpop.f32.mrb[0].mxu0
        %v1001 = vadd.f32 0.0, %v1000
        %v1002 = vpop.f32.mrb[0].mxu0
        %1003 = vmatprep.mubr.f32.mxu0 0.0
        %1004 = vmatmul.mubr.f32.gmra.mrb[0].mxu0 %v835
        %v1005 = vpop.f32.mrb[0].mxu0
        %v1006 = vadd.f32 0.0, %v1005
        %v1007 = vpop.f32.mrb[0].mxu0
        %1008 = vmatprep.mubr.f32.mxu0 0.0
        %1009 = vmatmul.mubr.f32.gmra.mrb[0].mxu0 %v836
        %v1010 = vpop.f32.mrb[0].mxu0
        %v1011 = vadd.f32 0.0, %v1010
        %v1012 = vpop.f32.mrb[0].mxu0
        %1013 = vmatprep.mubr.f32.mxu0 0.0
        %1014 = vmatmul.mubr.f32.gmra.mrb[0].mxu0 %v837
        %v1015 = vpop.f32.mrb[0].mxu0
        %v1016 = vadd.f32 0.0, %v1015
        %v1017 = vpop.f32.mrb[0].mxu0
        %1018 = vmatprep.mubr.f32.mxu0 0.0
        %1019 = vmatmul.mubr.f32.gmra.mrb[0].mxu0 %v838
        %v1020 = vpop.f32.mrb[0].mxu0
        %v1021 = vadd.f32 0.0, %v1020
        %v1022 = vpop.f32.mrb[0].mxu0
        %1023 = vmatprep.mubr.f32.mxu0 0.0
        %1024 = vmatmul.mubr.f32.gmra.mrb[0].mxu0 %v839
        %v1025 = vpop.f32.mrb[0].mxu0
        %v1026 = vadd.f32 0.0, %v1025
        %v1027 = vpop.f32.mrb[0].mxu0
        %1028 = vmatprep.mubr.f32.mxu0 0.0
        %1029 = vmatmul.mubr.f32.gmra.mrb[0].mxu0 %v840
        %v1030 = vpop.f32.mrb[0].mxu0
        %v1031 = vadd.f32 0.0, %v1030
        %v1032 = vpop.f32.mrb[0].mxu0
        %1033 = vmatprep.mubr.f32.mxu0 0.0
        %1034 = vmatmul.mubr.f32.gmra.mrb[0].mxu0 %v841
        %v1035 = vpop.f32.mrb[0].mxu0
        %v1036 = vadd.f32 0.0, %v1035
        %v1037 = vpop.f32.mrb[0].mxu0
        %1038 = vmatprep.mubr.f32.mxu0 0.0
        %1039 = vmatmul.mubr.f32.gmra.mrb[0].mxu0 %v842
        %v1040 = vpop.f32.mrb[0].mxu0
        %v1041 = vadd.f32 0.0, %v1040
        %v1042 = vpop.f32.mrb[0].mxu0
        %1043 = vmatprep.mubr.f32.mxu0 0.0
        %1044 = vmatmul.mubr.f32.gmra.mrb[0].mxu0 %v843
        %v1045 = vpop.f32.mrb[0].mxu0
        %v1046 = vadd.f32 0.0, %v1045
        %v1047 = vpop.f32.mrb[0].mxu0
        %1048 = vmatprep.mubr.f32.mxu0 0.0
        %1049 = vmatmul.mubr.f32.gmra.mrb[0].mxu0 %v844
        %v1050 = vpop.f32.mrb[0].mxu0
        %v1051 = vadd.f32 0.0, %v1050
        %v1052 = vpop.f32.mrb[0].mxu0
        %1053 = vmatprep.mubr.f32.mxu0 0.0
        %1054 = vmatmul.mubr.f32.gmra.mrb[0].mxu0 %v845
        %v1055 = vpop.f32.mrb[0].mxu0
        %v1056 = vadd.f32 0.0, %v1055
        %v1057 = vpop.f32.mrb[0].mxu0
        %1058 = vmatprep.mubr.f32.mxu0 0.0
        %1059 = vmatmul.mubr.f32.gmra.mrb[0].mxu0 %v846
        %v1060 = vpop.f32.mrb[0].mxu0
        %v1061 = vadd.f32 0.0, %v1060
        %v1062 = vpop.f32.mrb[0].mxu0
        %1063 = vmatprep.mubr.f32.mxu0 0.0
        %1064 = vmatmul.mubr.f32.gmra.mrb[0].mxu0 %v847
        %v1065 = vpop.f32.mrb[0].mxu0
        %v1066 = vadd.f32 0.0, %v1065
        %v1067 = vpop.f32.mrb[0].mxu0
        %1068 = vmatprep.mubr.f32.mxu0 0.0
        %1069 = vmatmul.mubr.f32.gmra.mrb[0].mxu0 %v848
        %v1070 = vpop.f32.mrb[0].mxu0
        %v1071 = vadd.f32 0.0, %v1070
        %v1072 = vpop.f32.mrb[0].mxu0
        %1073 = vmatprep.mubr.f32.mxu0 0.0
        %1074 = vmatmul.mubr.f32.gmra.mrb[0].mxu0 %v849
        %v1075 = vpop.f32.mrb[0].mxu0
        %v1076 = vadd.f32 0.0, %v1075
        %v1077 = vpop.f32.mrb[0].mxu0
        %1078 = vmatprep.mubr.f32.mxu0 0.0
        %1079 = vmatmul.mubr.f32.gmra.mrb[0].mxu0 %v850
        %v1080 = vpop.f32.mrb[0].mxu0
        %v1081 = vadd.f32 0.0, %v1080
        %v1082 = vpop.f32.mrb[0].mxu0
        %1083 = vmatprep.mubr.f32.mxu0 0.0
        %1084 = vmatmul.mubr.f32.gmra.mrb[0].mxu0 %v851
        %v1085 = vpop.f32.mrb[0].mxu0
        %v1086 = vadd.f32 0.0, %v1085
        %v1087 = vpop.f32.mrb[0].mxu0
        %1088 = vmatprep.mubr.f32.mxu0 0.0
        %1089 = vmatmul.mubr.f32.gmra.mrb[0].mxu0 %v852
        %v1090 = vpop.f32.mrb[0].mxu0
        %v1091 = vadd.f32 0.0, %v1090
        %v1092 = vpop.f32.mrb[0].mxu0
        %1093 = vmatprep.mubr.f32.mxu0 0.0
        %1094 = vmatmul.mubr.f32.gmra.mrb[0].mxu0 %v853
        %v1095 = vpop.f32.mrb[0].mxu0
        %v1096 = vadd.f32 0.0, %v1095
        %v1097 = vpop.f32.mrb[0].mxu0
        %1098 = vmatprep.mubr.f32.mxu0 0.0
        %1099 = vmatmul.mubr.f32.gmra.mrb[0].mxu0 %v854
        %v1100 = vpop.f32.mrb[0].mxu0
        %v1101 = vadd.f32 0.0, %v1100
        %v1102 = vpop.f32.mrb[0].mxu0
        %1103 = vmatprep.mubr.f32.mxu0 0.0
        %1104 = vmatmul.mubr.f32.gmra.mrb[0].mxu0 %v855
        %v1105 = vpop.f32.mrb[0].mxu0
        %v1106 = vadd.f32 0.0, %v1105
        %v1107 = vpop.f32.mrb[0].mxu0
        %1108 = vmatprep.mubr.f32.mxu0 0.0
        %1109 = vmatmul.mubr.f32.gmra.mrb[0].mxu0 %v856
        %v1110 = vpop.f32.mrb[0].mxu0
        %v1111 = vadd.f32 0.0, %v1110
        %v1112 = vpop.f32.mrb[0].mxu0
        %1113 = vmatprep.mubr.f32.mxu0 0.0
        %1114 = vmatmul.mubr.f32.gmra.mrb[0].mxu0 %v857
        %v1115 = vpop.f32.mrb[0].mxu0
        %v1116 = vadd.f32 0.0, %v1115
        %v1117 = vpop.f32.mrb[0].mxu0
        %1118 = vmatprep.mubr.f32.mxu0 0.0
        %1119 = vmatmul.mubr.f32.gmra.mrb[0].mxu0 %v858
        %v1120 = vpop.f32.mrb[0].mxu0
        %v1121 = vadd.f32 0.0, %v1120
        %v1122 = vpop.f32.mrb[0].mxu0
        %1123 = vmatprep.mubr.f32.mxu0 0.0
        %1124 = vmatmul.mubr.f32.gmra.mrb[0].mxu0 %v859
        %v1125 = vpop.f32.mrb[0].mxu0
        %v1126 = vadd.f32 0.0, %v1125
        %v1127 = vpop.f32.mrb[0].mxu0
        %1128 = vmatprep.mubr.f32.mxu0 0.0
        %1129 = vmatmul.mubr.f32.gmra.mrb[0].mxu0 %v860
        %v1130 = vpop.f32.mrb[0].mxu0
        %v1131 = vadd.f32 0.0, %v1130
        %v1132 = vpop.f32.mrb[0].mxu0
        %1133 = vmatprep.mubr.f32.mxu0 0.0
        %1134 = vmatmul.mubr.f32.gmra.mrb[0].mxu0 %v861
        %v1135 = vpop.f32.mrb[0].mxu0
        %v1136 = vadd.f32 0.0, %v1135
        %v1137 = vpop.f32.mrb[0].mxu0
        %1138 = vmatprep.mubr.f32.mxu0 0.0
        %1139 = vmatmul.mubr.f32.gmra.mrb[0].mxu0 %v862
        %v1140 = vpop.f32.mrb[0].mxu0
        %v1141 = vadd.f32 0.0, %v1140
        %v1142 = vpop.f32.mrb[0].mxu0
        %1143 = vmatprep.mubr.f32.mxu0 0.0
        %1144 = vmatmul.mubr.f32.gmra.mrb[0].mxu0 %v863
        %v1145 = vpop.f32.mrb[0].mxu0
        %v1146 = vadd.f32 0.0, %v1145
        %v1147 = vpop.f32.mrb[0].mxu0
        %1148 = vmatprep.mubr.f32.mxu0 0.0
        %1149 = vmatmul.mubr.f32.gmra.mrb[0].mxu0 %v864
        %v1150 = vpop.f32.mrb[0].mxu0
        %v1151 = vadd.f32 0.0, %v1150
        %v1152 = vpop.f32.mrb[0].mxu0
        %1153 = vmatprep.mubr.f32.mxu0 0.0
        %1154 = vmatmul.mubr.f32.gmra.mrb[0].mxu0 %v865
        %v1155 = vpop.f32.mrb[0].mxu0
        %v1156 = vadd.f32 0.0, %v1155
        %v1157 = vpop.f32.mrb[0].mxu0
        %1158 = vmatprep.mubr.f32.mxu0 0.0
        %1159 = vmatmul.mubr.f32.gmra.mrb[0].mxu0 %v866
        %v1160 = vpop.f32.mrb[0].mxu0
        %v1161 = vadd.f32 0.0, %v1160
        %v1162 = vpop.f32.mrb[0].mxu0
        %1163 = vmatprep.mubr.f32.mxu0 0.0
        %1164 = vmatmul.mubr.f32.gmra.mrb[0].mxu0 %v867
        %v1165 = vpop.f32.mrb[0].mxu0
        %v1166 = vadd.f32 0.0, %v1165
        %v1167 = vpop.f32.mrb[0].mxu0
        %1168 = vmatprep.mubr.f32.mxu0 0.0
        %1169 = vmatmul.mubr.f32.gmra.mrb[0].mxu0 %v868
        %v1170 = vpop.f32.mrb[0].mxu0
        %v1171 = vadd.f32 0.0, %v1170
        %v1172 = vpop.f32.mrb[0].mxu0
        %1173 = vdwg.mxu0
        %v1174 = vld [vmem:[#allocation9] sm:$0xff]
        %v1175 = vld [vmem:[#allocation9 + $0x8] sm:$0xff]
        %v1176 = vld [vmem:[#allocation9 + $0x10] sm:$0xff]
        %v1177 = vld [vmem:[#allocation9 + $0x18] sm:$0xff]
        %v1178 = vld [vmem:[#allocation9 + $0x20] sm:$0xff]
        %v1179 = vld [vmem:[#allocation9 + $0x28] sm:$0xff]
        %v1180 = vld [vmem:[#allocation9 + $0x30] sm:$0xff]
        %v1181 = vld [vmem:[#allocation9 + $0x38] sm:$0xff]
        %v1182 = vld [vmem:[#allocation9 + $0x40] sm:$0xff]
        %v1183 = vld [vmem:[#allocation9 + $0x48] sm:$0xff]
        %v1184 = vld [vmem:[#allocation9 + $0x50] sm:$0xff]
        %v1185 = vld [vmem:[#allocation9 + $0x58] sm:$0xff]
        %v1186 = vld [vmem:[#allocation9 + $0x60] sm:$0xff]
        %v1187 = vld [vmem:[#allocation9 + $0x68] sm:$0xff]
        %v1188 = vld [vmem:[#allocation9 + $0x70] sm:$0xff]
        %v1189 = vld [vmem:[#allocation9 + $0x78] sm:$0xff]
        %v1190 = vld [vmem:[#allocation9 + $0x80] sm:$0xff]
        %v1191 = vld [vmem:[#allocation9 + $0x88] sm:$0xff]
        %v1192 = vld [vmem:[#allocation9 + $0x90] sm:$0xff]
        %v1193 = vld [vmem:[#allocation9 + $0x98] sm:$0xff]
        %v1194 = vld [vmem:[#allocation9 + $0xa0] sm:$0xff]
        %v1195 = vld [vmem:[#allocation9 + $0xa8] sm:$0xff]
        %v1196 = vld [vmem:[#allocation9 + $0xb0] sm:$0xff]
        %v1197 = vld [vmem:[#allocation9 + $0xb8] sm:$0xff]
        %v1198 = vld [vmem:[#allocation9 + $0xc0] sm:$0xff]
        %v1199 = vld [vmem:[#allocation9 + $0xc8] sm:$0xff]
        %v1200 = vld [vmem:[#allocation9 + $0xd0] sm:$0xff]
        %v1201 = vld [vmem:[#allocation9 + $0xd8] sm:$0xff]
        %v1202 = vld [vmem:[#allocation9 + $0xe0] sm:$0xff]
        %v1203 = vld [vmem:[#allocation9 + $0xe8] sm:$0xff]
        %v1204 = vld [vmem:[#allocation9 + $0xf0] sm:$0xff]
        %v1205 = vld [vmem:[#allocation9 + $0xf8] sm:$0xff]
        %1206 = vmatprep.subr.mxu0 0.0
        %1207 = vmatpush1.msra.mxu0 %v584
        %1208 = vmatprep.subr.mxu0 0.0
        %1209 = vmatpush1.msra.mxu0 %v590
        %1210 = vmatprep.subr.mxu0 0.0
        %1211 = vmatpush1.msra.mxu0 %v596
        %1212 = vmatprep.subr.mxu0 0.0
        %1213 = vmatpush1.msra.mxu0 %v602
        %1214 = vmatprep.subr.mxu0 0.0
        %1215 = vmatpush1.msra.mxu0 %v608
        %1216 = vmatprep.subr.mxu0 0.0
        %1217 = vmatpush1.msra.mxu0 %v614
        %1218 = vmatprep.subr.mxu0 0.0
        %1219 = vmatpush1.msra.mxu0 %v620
        %1220 = vmatprep.subr.mxu0 0.0
        %1221 = vmatpush1.msra.mxu0 %v626
        %1222 = vmatprep.subr.mxu0 0.0
        %1223 = vmatpush1.msra.mxu0 %v632
        %1224 = vmatprep.subr.mxu0 0.0
        %1225 = vmatpush1.msra.mxu0 %v638
        %1226 = vmatprep.subr.mxu0 0.0
        %1227 = vmatpush1.msra.mxu0 %v644
        %1228 = vmatprep.subr.mxu0 0.0
        %1229 = vmatpush1.msra.mxu0 %v650
        %1230 = vmatprep.subr.mxu0 0.0
        %1231 = vmatpush1.msra.mxu0 %v656
        %1232 = vmatprep.subr.mxu0 0.0
        %1233 = vmatpush1.msra.mxu0 %v662
        %1234 = vmatprep.subr.mxu0 0.0
        %1235 = vmatpush1.msra.mxu0 %v668
        %1236 = vmatprep.subr.mxu0 0.0
        %1237 = vmatpush1.msra.mxu0 %v674
        %1238 = vmatprep.subr.mxu0 0.0
        %1239 = vmatpush1.msra.mxu0 0.0
        %1240 = vmatprep.subr.mxu0 0.0
        %1241 = vmatpush1.msra.mxu0 0.0
        %1242 = vmatprep.subr.mxu0 0.0
        %1243 = vmatpush1.msra.mxu0 0.0
        %1244 = vmatprep.subr.mxu0 0.0
        %1245 = vmatpush1.msra.mxu0 0.0
        %1246 = vmatprep.subr.mxu0 0.0
        %1247 = vmatpush1.msra.mxu0 0.0
        %1248 = vmatprep.subr.mxu0 0.0
        %1249 = vmatpush1.msra.mxu0 0.0
        %1250 = vmatprep.subr.mxu0 0.0
        %1251 = vmatpush1.msra.mxu0 0.0
        %1252 = vmatprep.subr.mxu0 0.0
        %1253 = vmatpush1.msra.mxu0 0.0
        %1254 = vmatprep.subr.mxu0 0.0
        %1255 = vmatpush1.msra.mxu0 0.0
        %1256 = vmatprep.subr.mxu0 0.0
        %1257 = vmatpush1.msra.mxu0 0.0
        %1258 = vmatprep.subr.mxu0 0.0
        %1259 = vmatpush1.msra.mxu0 0.0
        %1260 = vmatprep.subr.mxu0 0.0
        %1261 = vmatpush1.msra.mxu0 0.0
        %1262 = vmatprep.subr.mxu0 0.0
        %1263 = vmatpush1.msra.mxu0 0.0
        %1264 = vmatprep.subr.mxu0 0.0
        %1265 = vmatpush1.msra.mxu0 0.0
        %1266 = vmatprep.subr.mxu0 0.0
        %1267 = vmatpush1.msra.mxu0 0.0
        %1268 = vmatprep.subr.mxu0 0.0
        %1269 = vmatpush1.msra.mxu0 0.0
        %1270 = vmatprep.mubr.f32.mxu0 0.0
        %1271 = vmatmul.mubr.f32.gmra.mrb[0].mxu0 %v1174
        %v1272 = vpop.f32.mrb[0].mxu0
        %v1273 = vadd.f32 0.0, %v1272
        %v1274 = vpop.f32.mrb[0].mxu0
        %1275 = vmatprep.mubr.f32.mxu0 0.0
        %1276 = vmatmul.mubr.f32.gmra.mrb[0].mxu0 %v1175
        %v1277 = vpop.f32.mrb[0].mxu0
        %v1278 = vadd.f32 0.0, %v1277
        %v1279 = vpop.f32.mrb[0].mxu0
        %1280 = vmatprep.mubr.f32.mxu0 0.0
        %1281 = vmatmul.mubr.f32.gmra.mrb[0].mxu0 %v1176
        %v1282 = vpop.f32.mrb[0].mxu0
        %v1283 = vadd.f32 0.0, %v1282
        %v1284 = vpop.f32.mrb[0].mxu0
        %1285 = vmatprep.mubr.f32.mxu0 0.0
        %1286 = vmatmul.mubr.f32.gmra.mrb[0].mxu0 %v1177
        %v1287 = vpop.f32.mrb[0].mxu0
        %v1288 = vadd.f32 0.0, %v1287
        %v1289 = vpop.f32.mrb[0].mxu0
        %1290 = vmatprep.mubr.f32.mxu0 0.0
        %1291 = vmatmul.mubr.f32.gmra.mrb[0].mxu0 %v1178
        %v1292 = vpop.f32.mrb[0].mxu0
        %v1293 = vadd.f32 0.0, %v1292
        %v1294 = vpop.f32.mrb[0].mxu0
        %1295 = vmatprep.mubr.f32.mxu0 0.0
        %1296 = vmatmul.mubr.f32.gmra.mrb[0].mxu0 %v1179
        %v1297 = vpop.f32.mrb[0].mxu0
        %v1298 = vadd.f32 0.0, %v1297
        %v1299 = vpop.f32.mrb[0].mxu0
        %1300 = vmatprep.mubr.f32.mxu0 0.0
        %1301 = vmatmul.mubr.f32.gmra.mrb[0].mxu0 %v1180
        %v1302 = vpop.f32.mrb[0].mxu0
        %v1303 = vadd.f32 0.0, %v1302
        %v1304 = vpop.f32.mrb[0].mxu0
        %1305 = vmatprep.mubr.f32.mxu0 0.0
        %1306 = vmatmul.mubr.f32.gmra.mrb[0].mxu0 %v1181
        %v1307 = vpop.f32.mrb[0].mxu0
        %v1308 = vadd.f32 0.0, %v1307
        %v1309 = vpop.f32.mrb[0].mxu0
        %1310 = vmatprep.mubr.f32.mxu0 0.0
        %1311 = vmatmul.mubr.f32.gmra.mrb[0].mxu0 %v1182
        %v1312 = vpop.f32.mrb[0].mxu0
        %v1313 = vadd.f32 0.0, %v1312
        %v1314 = vpop.f32.mrb[0].mxu0
        %1315 = vmatprep.mubr.f32.mxu0 0.0
        %1316 = vmatmul.mubr.f32.gmra.mrb[0].mxu0 %v1183
        %v1317 = vpop.f32.mrb[0].mxu0
        %v1318 = vadd.f32 0.0, %v1317
        %v1319 = vpop.f32.mrb[0].mxu0
        %1320 = vmatprep.mubr.f32.mxu0 0.0
        %1321 = vmatmul.mubr.f32.gmra.mrb[0].mxu0 %v1184
        %v1322 = vpop.f32.mrb[0].mxu0
        %v1323 = vadd.f32 0.0, %v1322
        %v1324 = vpop.f32.mrb[0].mxu0
        %1325 = vmatprep.mubr.f32.mxu0 0.0
        %1326 = vmatmul.mubr.f32.gmra.mrb[0].mxu0 %v1185
        %v1327 = vpop.f32.mrb[0].mxu0
        %v1328 = vadd.f32 0.0, %v1327
        %v1329 = vpop.f32.mrb[0].mxu0
        %1330 = vmatprep.mubr.f32.mxu0 0.0
        %1331 = vmatmul.mubr.f32.gmra.mrb[0].mxu0 %v1186
        %v1332 = vpop.f32.mrb[0].mxu0
        %v1333 = vadd.f32 0.0, %v1332
        %v1334 = vpop.f32.mrb[0].mxu0
        %1335 = vmatprep.mubr.f32.mxu0 0.0
        %1336 = vmatmul.mubr.f32.gmra.mrb[0].mxu0 %v1187
        %v1337 = vpop.f32.mrb[0].mxu0
        %v1338 = vadd.f32 0.0, %v1337
        %v1339 = vpop.f32.mrb[0].mxu0
        %1340 = vmatprep.mubr.f32.mxu0 0.0
        %1341 = vmatmul.mubr.f32.gmra.mrb[0].mxu0 %v1188
        %v1342 = vpop.f32.mrb[0].mxu0
        %v1343 = vadd.f32 0.0, %v1342
        %v1344 = vpop.f32.mrb[0].mxu0
        %1345 = vmatprep.mubr.f32.mxu0 0.0
        %1346 = vmatmul.mubr.f32.gmra.mrb[0].mxu0 %v1189
        %v1347 = vpop.f32.mrb[0].mxu0
        %v1348 = vadd.f32 0.0, %v1347
        %v1349 = vpop.f32.mrb[0].mxu0
        %1350 = vmatprep.mubr.f32.mxu0 0.0
        %1351 = vmatmul.mubr.f32.gmra.mrb[0].mxu0 %v1190
        %v1352 = vpop.f32.mrb[0].mxu0
        %v1353 = vadd.f32 0.0, %v1352
        %v1354 = vpop.f32.mrb[0].mxu0
        %1355 = vmatprep.mubr.f32.mxu0 0.0
        %1356 = vmatmul.mubr.f32.gmra.mrb[0].mxu0 %v1191
        %v1357 = vpop.f32.mrb[0].mxu0
        %v1358 = vadd.f32 0.0, %v1357
        %v1359 = vpop.f32.mrb[0].mxu0
        %1360 = vmatprep.mubr.f32.mxu0 0.0
        %1361 = vmatmul.mubr.f32.gmra.mrb[0].mxu0 %v1192
        %v1362 = vpop.f32.mrb[0].mxu0
        %v1363 = vadd.f32 0.0, %v1362
        %v1364 = vpop.f32.mrb[0].mxu0
        %1365 = vmatprep.mubr.f32.mxu0 0.0
        %1366 = vmatmul.mubr.f32.gmra.mrb[0].mxu0 %v1193
        %v1367 = vpop.f32.mrb[0].mxu0
        %v1368 = vadd.f32 0.0, %v1367
        %v1369 = vpop.f32.mrb[0].mxu0
        %1370 = vmatprep.mubr.f32.mxu0 0.0
        %1371 = vmatmul.mubr.f32.gmra.mrb[0].mxu0 %v1194
        %v1372 = vpop.f32.mrb[0].mxu0
        %v1373 = vadd.f32 0.0, %v1372
        %v1374 = vpop.f32.mrb[0].mxu0
        %1375 = vmatprep.mubr.f32.mxu0 0.0
        %1376 = vmatmul.mubr.f32.gmra.mrb[0].mxu0 %v1195
        %v1377 = vpop.f32.mrb[0].mxu0
        %v1378 = vadd.f32 0.0, %v1377
        %v1379 = vpop.f32.mrb[0].mxu0
        %1380 = vmatprep.mubr.f32.mxu0 0.0
        %1381 = vmatmul.mubr.f32.gmra.mrb[0].mxu0 %v1196
        %v1382 = vpop.f32.mrb[0].mxu0
        %v1383 = vadd.f32 0.0, %v1382
        %v1384 = vpop.f32.mrb[0].mxu0
        %1385 = vmatprep.mubr.f32.mxu0 0.0
        %1386 = vmatmul.mubr.f32.gmra.mrb[0].mxu0 %v1197
        %v1387 = vpop.f32.mrb[0].mxu0
        %v1388 = vadd.f32 0.0, %v1387
        %v1389 = vpop.f32.mrb[0].mxu0
        %1390 = vmatprep.mubr.f32.mxu0 0.0
        %1391 = vmatmul.mubr.f32.gmra.mrb[0].mxu0 %v1198
        %v1392 = vpop.f32.mrb[0].mxu0
        %v1393 = vadd.f32 0.0, %v1392
        %v1394 = vpop.f32.mrb[0].mxu0
        %1395 = vmatprep.mubr.f32.mxu0 0.0
        %1396 = vmatmul.mubr.f32.gmra.mrb[0].mxu0 %v1199
        %v1397 = vpop.f32.mrb[0].mxu0
        %v1398 = vadd.f32 0.0, %v1397
        %v1399 = vpop.f32.mrb[0].mxu0
        %1400 = vmatprep.mubr.f32.mxu0 0.0
        %1401 = vmatmul.mubr.f32.gmra.mrb[0].mxu0 %v1200
        %v1402 = vpop.f32.mrb[0].mxu0
        %v1403 = vadd.f32 0.0, %v1402
        %v1404 = vpop.f32.mrb[0].mxu0
        %1405 = vmatprep.mubr.f32.mxu0 0.0
        %1406 = vmatmul.mubr.f32.gmra.mrb[0].mxu0 %v1201
        %v1407 = vpop.f32.mrb[0].mxu0
        %v1408 = vadd.f32 0.0, %v1407
        %v1409 = vpop.f32.mrb[0].mxu0
        %1410 = vmatprep.mubr.f32.mxu0 0.0
        %1411 = vmatmul.mubr.f32.gmra.mrb[0].mxu0 %v1202
        %v1412 = vpop.f32.mrb[0].mxu0
        %v1413 = vadd.f32 0.0, %v1412
        %v1414 = vpop.f32.mrb[0].mxu0
        %1415 = vmatprep.mubr.f32.mxu0 0.0
        %1416 = vmatmul.mubr.f32.gmra.mrb[0].mxu0 %v1203
        %v1417 = vpop.f32.mrb[0].mxu0
        %v1418 = vadd.f32 0.0, %v1417
        %v1419 = vpop.f32.mrb[0].mxu0
        %1420 = vmatprep.mubr.f32.mxu0 0.0
        %1421 = vmatmul.mubr.f32.gmra.mrb[0].mxu0 %v1204
        %v1422 = vpop.f32.mrb[0].mxu0
        %v1423 = vadd.f32 0.0, %v1422
        %v1424 = vpop.f32.mrb[0].mxu0
        %1425 = vmatprep.mubr.f32.mxu0 0.0
        %1426 = vmatmul.mubr.f32.gmra.mrb[0].mxu0 %v1205
        %v1427 = vpop.f32.mrb[0].mxu0
        %v1428 = vadd.f32 0.0, %v1427
        %v1429 = vpop.f32.mrb[0].mxu0
        %1430 = vdwg.mxu0
        %v1431 = vld [vmem:[#allocation10] sm:$0xff]
        %v1432 = vld [vmem:[#allocation10 + $0x8] sm:$0xff]
        %v1433 = vld [vmem:[#allocation10 + $0x10] sm:$0xff]
        %v1434 = vld [vmem:[#allocation10 + $0x18] sm:$0xff]
        %v1435 = vld [vmem:[#allocation10 + $0x20] sm:$0xff]
        %v1436 = vld [vmem:[#allocation10 + $0x28] sm:$0xff]
        %v1437 = vld [vmem:[#allocation10 + $0x30] sm:$0xff]
        %v1438 = vld [vmem:[#allocation10 + $0x38] sm:$0xff]
        %v1439 = vld [vmem:[#allocation10 + $0x40] sm:$0xff]
        %v1440 = vld [vmem:[#allocation10 + $0x48] sm:$0xff]
        %v1441 = vld [vmem:[#allocation10 + $0x50] sm:$0xff]
        %v1442 = vld [vmem:[#allocation10 + $0x58] sm:$0xff]
        %v1443 = vld [vmem:[#allocation10 + $0x60] sm:$0xff]
        %v1444 = vld [vmem:[#allocation10 + $0x68] sm:$0xff]
        %v1445 = vld [vmem:[#allocation10 + $0x70] sm:$0xff]
        %v1446 = vld [vmem:[#allocation10 + $0x78] sm:$0xff]
        %1447 = vmatprep.subr.mxu0 0.0
        %1448 = vmatpush1.msra.mxu0 %v743
        %1449 = vmatprep.subr.mxu0 0.0
        %1450 = vmatpush1.msra.mxu0 %v748
        %1451 = vmatprep.subr.mxu0 0.0
        %1452 = vmatpush1.msra.mxu0 %v753
        %1453 = vmatprep.subr.mxu0 0.0
        %1454 = vmatpush1.msra.mxu0 %v758
        %1455 = vmatprep.subr.mxu0 0.0
        %1456 = vmatpush1.msra.mxu0 %v763
        %1457 = vmatprep.subr.mxu0 0.0
        %1458 = vmatpush1.msra.mxu0 %v768
        %1459 = vmatprep.subr.mxu0 0.0
        %1460 = vmatpush1.msra.mxu0 %v773
        %1461 = vmatprep.subr.mxu0 0.0
        %1462 = vmatpush1.msra.mxu0 %v778
        %1463 = vmatprep.subr.mxu0 0.0
        %1464 = vmatpush1.msra.mxu0 %v783
        %1465 = vmatprep.subr.mxu0 0.0
        %1466 = vmatpush1.msra.mxu0 %v788
        %1467 = vmatprep.subr.mxu0 0.0
        %1468 = vmatpush1.msra.mxu0 %v793
        %1469 = vmatprep.subr.mxu0 0.0
        %1470 = vmatpush1.msra.mxu0 %v798
        %1471 = vmatprep.subr.mxu0 0.0
        %1472 = vmatpush1.msra.mxu0 %v803
        %1473 = vmatprep.subr.mxu0 0.0
        %1474 = vmatpush1.msra.mxu0 %v808
        %1475 = vmatprep.subr.mxu0 0.0
        %1476 = vmatpush1.msra.mxu0 %v813
        %1477 = vmatprep.subr.mxu0 0.0
        %1478 = vmatpush1.msra.mxu0 %v818
        %1479 = vmatprep.subr.mxu0 0.0
        %1480 = vmatpush1.msra.mxu0 0.0
        %1481 = vmatprep.subr.mxu0 0.0
        %1482 = vmatpush1.msra.mxu0 0.0
        %1483 = vmatprep.subr.mxu0 0.0
        %1484 = vmatpush1.msra.mxu0 0.0
        %1485 = vmatprep.subr.mxu0 0.0
        %1486 = vmatpush1.msra.mxu0 0.0
        %1487 = vmatprep.subr.mxu0 0.0
        %1488 = vmatpush1.msra.mxu0 0.0
        %1489 = vmatprep.subr.mxu0 0.0
        %1490 = vmatpush1.msra.mxu0 0.0
        %1491 = vmatprep.subr.mxu0 0.0
        %1492 = vmatpush1.msra.mxu0 0.0
        %1493 = vmatprep.subr.mxu0 0.0
        %1494 = vmatpush1.msra.mxu0 0.0
        %1495 = vmatprep.subr.mxu0 0.0
        %1496 = vmatpush1.msra.mxu0 0.0
        %1497 = vmatprep.subr.mxu0 0.0
        %1498 = vmatpush1.msra.mxu0 0.0
        %1499 = vmatprep.subr.mxu0 0.0
        %1500 = vmatpush1.msra.mxu0 0.0
        %1501 = vmatprep.subr.mxu0 0.0
        %1502 = vmatpush1.msra.mxu0 0.0
        %1503 = vmatprep.subr.mxu0 0.0
        %1504 = vmatpush1.msra.mxu0 0.0
        %1505 = vmatprep.subr.mxu0 0.0
        %1506 = vmatpush1.msra.mxu0 0.0
        %1507 = vmatprep.subr.mxu0 0.0
        %1508 = vmatpush1.msra.mxu0 0.0
        %1509 = vmatprep.subr.mxu0 0.0
        %1510 = vmatpush1.msra.mxu0 0.0
        %1511 = vmatprep.mubr.f32.mxu0 0.0
        %1512 = vmatmul.mubr.f32.gmra.mrb[0].mxu0 %v1431
        %v1513 = vpop.f32.mrb[0].mxu0
        %v1514 = vadd.f32 0.0, %v1513
        %v1515 = vpop.f32.mrb[0].mxu0
        %1516 = vmatprep.mubr.f32.mxu0 0.0
        %1517 = vmatmul.mubr.f32.gmra.mrb[0].mxu0 %v1432
        %v1518 = vpop.f32.mrb[0].mxu0
        %v1519 = vadd.f32 0.0, %v1518
        %v1520 = vpop.f32.mrb[0].mxu0
        %1521 = vmatprep.mubr.f32.mxu0 0.0
        %1522 = vmatmul.mubr.f32.gmra.mrb[0].mxu0 %v1433
        %v1523 = vpop.f32.mrb[0].mxu0
        %v1524 = vadd.f32 0.0, %v1523
        %v1525 = vpop.f32.mrb[0].mxu0
        %1526 = vmatprep.mubr.f32.mxu0 0.0
        %1527 = vmatmul.mubr.f32.gmra.mrb[0].mxu0 %v1434
        %v1528 = vpop.f32.mrb[0].mxu0
        %v1529 = vadd.f32 0.0, %v1528
        %v1530 = vpop.f32.mrb[0].mxu0
        %1531 = vmatprep.mubr.f32.mxu0 0.0
        %1532 = vmatmul.mubr.f32.gmra.mrb[0].mxu0 %v1435
        %v1533 = vpop.f32.mrb[0].mxu0
        %v1534 = vadd.f32 0.0, %v1533
        %v1535 = vpop.f32.mrb[0].mxu0
        %1536 = vmatprep.mubr.f32.mxu0 0.0
        %1537 = vmatmul.mubr.f32.gmra.mrb[0].mxu0 %v1436
        %v1538 = vpop.f32.mrb[0].mxu0
        %v1539 = vadd.f32 0.0, %v1538
        %v1540 = vpop.f32.mrb[0].mxu0
        %1541 = vmatprep.mubr.f32.mxu0 0.0
        %1542 = vmatmul.mubr.f32.gmra.mrb[0].mxu0 %v1437
        %v1543 = vpop.f32.mrb[0].mxu0
        %v1544 = vadd.f32 0.0, %v1543
        %v1545 = vpop.f32.mrb[0].mxu0
        %1546 = vmatprep.mubr.f32.mxu0 0.0
        %1547 = vmatmul.mubr.f32.gmra.mrb[0].mxu0 %v1438
        %v1548 = vpop.f32.mrb[0].mxu0
        %v1549 = vadd.f32 0.0, %v1548
        %v1550 = vpop.f32.mrb[0].mxu0
        %1551 = vmatprep.mubr.f32.mxu0 0.0
        %1552 = vmatmul.mubr.f32.gmra.mrb[0].mxu0 %v1439
        %v1553 = vpop.f32.mrb[0].mxu0
        %v1554 = vadd.f32 0.0, %v1553
        %v1555 = vpop.f32.mrb[0].mxu0
        %1556 = vmatprep.mubr.f32.mxu0 0.0
        %1557 = vmatmul.mubr.f32.gmra.mrb[0].mxu0 %v1440
        %v1558 = vpop.f32.mrb[0].mxu0
        %v1559 = vadd.f32 0.0, %v1558
        %v1560 = vpop.f32.mrb[0].mxu0
        %1561 = vmatprep.mubr.f32.mxu0 0.0
        %1562 = vmatmul.mubr.f32.gmra.mrb[0].mxu0 %v1441
        %v1563 = vpop.f32.mrb[0].mxu0
        %v1564 = vadd.f32 0.0, %v1563
        %v1565 = vpop.f32.mrb[0].mxu0
        %1566 = vmatprep.mubr.f32.mxu0 0.0
        %1567 = vmatmul.mubr.f32.gmra.mrb[0].mxu0 %v1442
        %v1568 = vpop.f32.mrb[0].mxu0
        %v1569 = vadd.f32 0.0, %v1568
        %v1570 = vpop.f32.mrb[0].mxu0
        %1571 = vmatprep.mubr.f32.mxu0 0.0
        %1572 = vmatmul.mubr.f32.gmra.mrb[0].mxu0 %v1443
        %v1573 = vpop.f32.mrb[0].mxu0
        %v1574 = vadd.f32 0.0, %v1573
        %v1575 = vpop.f32.mrb[0].mxu0
        %1576 = vmatprep.mubr.f32.mxu0 0.0
        %1577 = vmatmul.mubr.f32.gmra.mrb[0].mxu0 %v1444
        %v1578 = vpop.f32.mrb[0].mxu0
        %v1579 = vadd.f32 0.0, %v1578
        %v1580 = vpop.f32.mrb[0].mxu0
        %1581 = vmatprep.mubr.f32.mxu0 0.0
        %1582 = vmatmul.mubr.f32.gmra.mrb[0].mxu0 %v1445
        %v1583 = vpop.f32.mrb[0].mxu0
        %v1584 = vadd.f32 0.0, %v1583
        %v1585 = vpop.f32.mrb[0].mxu0
        %1586 = vmatprep.mubr.f32.mxu0 0.0
        %1587 = vmatmul.mubr.f32.gmra.mrb[0].mxu0 %v1446
        %v1588 = vpop.f32.mrb[0].mxu0
        %v1589 = vadd.f32 0.0, %v1588
        %v1590 = vpop.f32.mrb[0].mxu0
        %1591 = vdwg.mxu0
        %s1592 = sld [smem:[#allocation13]]
        %v1593 = vstv %s1592
        %v1594 = vmul.f32 %v1593, %v936
        %v1595 = vmul.f32 %v1593, %v941
        %v1596 = vmul.f32 %v1593, %v946
        %v1597 = vmul.f32 %v1593, %v951
        %v1598 = vmul.f32 %v1593, %v956
        %v1599 = vmul.f32 %v1593, %v961
        %v1600 = vmul.f32 %v1593, %v966
        %v1601 = vmul.f32 %v1593, %v971
        %v1602 = vmul.f32 %v1593, %v976
        %v1603 = vmul.f32 %v1593, %v981
        %v1604 = vmul.f32 %v1593, %v986
        %v1605 = vmul.f32 %v1593, %v991
        %v1606 = vmul.f32 %v1593, %v996
        %v1607 = vmul.f32 %v1593, %v1001
        %v1608 = vmul.f32 %v1593, %v1006
        %v1609 = vmul.f32 %v1593, %v1011
        %s1610 = sld [smem:[#allocation14]]
        %v1611 = vstv %s1610
        %v1612 = vadd.f32 %v1594, %v1611
        %v1613 = vadd.f32 %v1595, %v1611
        %v1614 = vadd.f32 %v1596, %v1611
        %v1615 = vadd.f32 %v1597, %v1611
        %v1616 = vadd.f32 %v1598, %v1611
        %v1617 = vadd.f32 %v1599, %v1611
        %v1618 = vadd.f32 %v1600, %v1611
        %v1619 = vadd.f32 %v1601, %v1611
        %v1620 = vadd.f32 %v1602, %v1611
        %v1621 = vadd.f32 %v1603, %v1611
        %v1622 = vadd.f32 %v1604, %v1611
        %v1623 = vadd.f32 %v1605, %v1611
        %v1624 = vadd.f32 %v1606, %v1611
        %v1625 = vadd.f32 %v1607, %v1611
        %v1626 = vadd.f32 %v1608, %v1611
        %v1627 = vadd.f32 %v1609, %v1611
        %s1628 = sld [smem:[#allocation13 + $0x1]]
        %v1629 = vstv %s1628
        %v1630 = vmul.f32 %v1629, %v1016
        %v1631 = vmul.f32 %v1629, %v1021
        %v1632 = vmul.f32 %v1629, %v1026
        %v1633 = vmul.f32 %v1629, %v1031
        %v1634 = vmul.f32 %v1629, %v1036
        %v1635 = vmul.f32 %v1629, %v1041
        %v1636 = vmul.f32 %v1629, %v1046
        %v1637 = vmul.f32 %v1629, %v1051
        %v1638 = vmul.f32 %v1629, %v1056
        %v1639 = vmul.f32 %v1629, %v1061
        %v1640 = vmul.f32 %v1629, %v1066
        %v1641 = vmul.f32 %v1629, %v1071
        %v1642 = vmul.f32 %v1629, %v1076
        %v1643 = vmul.f32 %v1629, %v1081
        %v1644 = vmul.f32 %v1629, %v1086
        %v1645 = vmul.f32 %v1629, %v1091
        %v1646 = vadd.f32 %v1612, %v1630
        %v1647 = vadd.f32 %v1613, %v1631
        %v1648 = vadd.f32 %v1614, %v1632
        %v1649 = vadd.f32 %v1615, %v1633
        %v1650 = vadd.f32 %v1616, %v1634
        %v1651 = vadd.f32 %v1617, %v1635
        %v1652 = vadd.f32 %v1618, %v1636
        %v1653 = vadd.f32 %v1619, %v1637
        %v1654 = vadd.f32 %v1620, %v1638
        %v1655 = vadd.f32 %v1621, %v1639
        %v1656 = vadd.f32 %v1622, %v1640
        %v1657 = vadd.f32 %v1623, %v1641
        %v1658 = vadd.f32 %v1624, %v1642
        %v1659 = vadd.f32 %v1625, %v1643
        %v1660 = vadd.f32 %v1626, %v1644
        %v1661 = vadd.f32 %v1627, %v1645
        %s1662 = sld [smem:[#allocation13 + $0x2]]
        %v1663 = vstv %s1662
        %v1664 = vmul.f32 %v1663, %v1273
        %v1665 = vmul.f32 %v1663, %v1278
        %v1666 = vmul.f32 %v1663, %v1283
        %v1667 = vmul.f32 %v1663, %v1288
        %v1668 = vmul.f32 %v1663, %v1293
        %v1669 = vmul.f32 %v1663, %v1298
        %v1670 = vmul.f32 %v1663, %v1303
        %v1671 = vmul.f32 %v1663, %v1308
        %v1672 = vmul.f32 %v1663, %v1313
        %v1673 = vmul.f32 %v1663, %v1318
        %v1674 = vmul.f32 %v1663, %v1323
        %v1675 = vmul.f32 %v1663, %v1328
        %v1676 = vmul.f32 %v1663, %v1333
        %v1677 = vmul.f32 %v1663, %v1338
        %v1678 = vmul.f32 %v1663, %v1343
        %v1679 = vmul.f32 %v1663, %v1348
        %v1680 = vadd.f32 %v1646, %v1664
        %v1681 = vadd.f32 %v1647, %v1665
        %v1682 = vadd.f32 %v1648, %v1666
        %v1683 = vadd.f32 %v1649, %v1667
        %v1684 = vadd.f32 %v1650, %v1668
        %v1685 = vadd.f32 %v1651, %v1669
        %v1686 = vadd.f32 %v1652, %v1670
        %v1687 = vadd.f32 %v1653, %v1671
        %v1688 = vadd.f32 %v1654, %v1672
        %v1689 = vadd.f32 %v1655, %v1673
        %v1690 = vadd.f32 %v1656, %v1674
        %v1691 = vadd.f32 %v1657, %v1675
        %v1692 = vadd.f32 %v1658, %v1676
        %v1693 = vadd.f32 %v1659, %v1677
        %v1694 = vadd.f32 %v1660, %v1678
        %v1695 = vadd.f32 %v1661, %v1679
        %s1696 = sld [smem:[#allocation13 + $0x3]]
        %v1697 = vstv %s1696
        %v1698 = vmul.f32 %v1697, %v1096
        %v1699 = vmul.f32 %v1697, %v1101
        %v1700 = vmul.f32 %v1697, %v1106
        %v1701 = vmul.f32 %v1697, %v1111
        %v1702 = vmul.f32 %v1697, %v1116
        %v1703 = vmul.f32 %v1697, %v1121
        %v1704 = vmul.f32 %v1697, %v1126
        %v1705 = vmul.f32 %v1697, %v1131
        %v1706 = vmul.f32 %v1697, %v1136
        %v1707 = vmul.f32 %v1697, %v1141
        %v1708 = vmul.f32 %v1697, %v1146
        %v1709 = vmul.f32 %v1697, %v1151
        %v1710 = vmul.f32 %v1697, %v1156
        %v1711 = vmul.f32 %v1697, %v1161
        %v1712 = vmul.f32 %v1697, %v1166
        %v1713 = vmul.f32 %v1697, %v1171
        %v1714 = vadd.f32 %v1680, %v1698
        %v1715 = vadd.f32 %v1681, %v1699
        %v1716 = vadd.f32 %v1682, %v1700
        %v1717 = vadd.f32 %v1683, %v1701
        %v1718 = vadd.f32 %v1684, %v1702
        %v1719 = vadd.f32 %v1685, %v1703
        %v1720 = vadd.f32 %v1686, %v1704
        %v1721 = vadd.f32 %v1687, %v1705
        %v1722 = vadd.f32 %v1688, %v1706
        %v1723 = vadd.f32 %v1689, %v1707
        %v1724 = vadd.f32 %v1690, %v1708
        %v1725 = vadd.f32 %v1691, %v1709
        %v1726 = vadd.f32 %v1692, %v1710
        %v1727 = vadd.f32 %v1693, %v1711
        %v1728 = vadd.f32 %v1694, %v1712
        %v1729 = vadd.f32 %v1695, %v1713
        %s1730 = sld [smem:[#allocation13 + $0x4]]
        %v1731 = vstv %s1730
        %v1732 = vmul.f32 %v1731, %v1353
        %v1733 = vmul.f32 %v1731, %v1358
        %v1734 = vmul.f32 %v1731, %v1363
        %v1735 = vmul.f32 %v1731, %v1368
        %v1736 = vmul.f32 %v1731, %v1373
        %v1737 = vmul.f32 %v1731, %v1378
        %v1738 = vmul.f32 %v1731, %v1383
        %v1739 = vmul.f32 %v1731, %v1388
        %v1740 = vmul.f32 %v1731, %v1393
        %v1741 = vmul.f32 %v1731, %v1398
        %v1742 = vmul.f32 %v1731, %v1403
        %v1743 = vmul.f32 %v1731, %v1408
        %v1744 = vmul.f32 %v1731, %v1413
        %v1745 = vmul.f32 %v1731, %v1418
        %v1746 = vmul.f32 %v1731, %v1423
        %v1747 = vmul.f32 %v1731, %v1428
        %v1748 = vadd.f32 %v1714, %v1732
        %v1749 = vadd.f32 %v1715, %v1733
        %v1750 = vadd.f32 %v1716, %v1734
        %v1751 = vadd.f32 %v1717, %v1735
        %v1752 = vadd.f32 %v1718, %v1736
        %v1753 = vadd.f32 %v1719, %v1737
        %v1754 = vadd.f32 %v1720, %v1738
        %v1755 = vadd.f32 %v1721, %v1739
        %v1756 = vadd.f32 %v1722, %v1740
        %v1757 = vadd.f32 %v1723, %v1741
        %v1758 = vadd.f32 %v1724, %v1742
        %v1759 = vadd.f32 %v1725, %v1743
        %v1760 = vadd.f32 %v1726, %v1744
        %v1761 = vadd.f32 %v1727, %v1745
        %v1762 = vadd.f32 %v1728, %v1746
        %v1763 = vadd.f32 %v1729, %v1747
        %s1764 = sld [smem:[#allocation13 + $0x5]]
        %v1765 = vstv %s1764
        %v1766 = vmul.f32 %v1765, %v1514
        %v1767 = vmul.f32 %v1765, %v1519
        %v1768 = vmul.f32 %v1765, %v1524
        %v1769 = vmul.f32 %v1765, %v1529
        %v1770 = vmul.f32 %v1765, %v1534
        %v1771 = vmul.f32 %v1765, %v1539
        %v1772 = vmul.f32 %v1765, %v1544
        %v1773 = vmul.f32 %v1765, %v1549
        %v1774 = vmul.f32 %v1765, %v1554
        %v1775 = vmul.f32 %v1765, %v1559
        %v1776 = vmul.f32 %v1765, %v1564
        %v1777 = vmul.f32 %v1765, %v1569
        %v1778 = vmul.f32 %v1765, %v1574
        %v1779 = vmul.f32 %v1765, %v1579
        %v1780 = vmul.f32 %v1765, %v1584
        %v1781 = vmul.f32 %v1765, %v1589
        %v1782 = vadd.f32 %v1748, %v1766
        %v1783 = vadd.f32 %v1749, %v1767
        %v1784 = vadd.f32 %v1750, %v1768
        %v1785 = vadd.f32 %v1751, %v1769
        %v1786 = vadd.f32 %v1752, %v1770
        %v1787 = vadd.f32 %v1753, %v1771
        %v1788 = vadd.f32 %v1754, %v1772
        %v1789 = vadd.f32 %v1755, %v1773
        %v1790 = vadd.f32 %v1756, %v1774
        %v1791 = vadd.f32 %v1757, %v1775
        %v1792 = vadd.f32 %v1758, %v1776
        %v1793 = vadd.f32 %v1759, %v1777
        %v1794 = vadd.f32 %v1760, %v1778
        %v1795 = vadd.f32 %v1761, %v1779
        %v1796 = vadd.f32 %v1762, %v1780
        %v1797 = vadd.f32 %v1763, %v1781
        %v1798 = vmax.f32 %v1782, 0.0
        %v1799 = vmax.f32 %v1783, 0.0
        %v1800 = vmax.f32 %v1784, 0.0
        %v1801 = vmax.f32 %v1785, 0.0
        %v1802 = vmax.f32 %v1786, 0.0
        %v1803 = vmax.f32 %v1787, 0.0
        %v1804 = vmax.f32 %v1788, 0.0
        %v1805 = vmax.f32 %v1789, 0.0
        %v1806 = vmax.f32 %v1790, 0.0
        %v1807 = vmax.f32 %v1791, 0.0
        %v1808 = vmax.f32 %v1792, 0.0
        %v1809 = vmax.f32 %v1793, 0.0
        %v1810 = vmax.f32 %v1794, 0.0
        %v1811 = vmax.f32 %v1795, 0.0
        %v1812 = vmax.f32 %v1796, 0.0
        %v1813 = vmax.f32 %v1797, 0.0
        %s1814 = sld [smem:[#allocation16]]
        %v1815 = vstv %s1814
        %v1816 = vmul.f32 %v1815, %v1798
        %v1817 = vmul.f32 %v1815, %v1799
        %v1818 = vmul.f32 %v1815, %v1800
        %v1819 = vmul.f32 %v1815, %v1801
        %v1820 = vmul.f32 %v1815, %v1802
        %v1821 = vmul.f32 %v1815, %v1803
        %v1822 = vmul.f32 %v1815, %v1804
        %v1823 = vmul.f32 %v1815, %v1805
        %v1824 = vmul.f32 %v1815, %v1806
        %v1825 = vmul.f32 %v1815, %v1807
        %v1826 = vmul.f32 %v1815, %v1808
        %v1827 = vmul.f32 %v1815, %v1809
        %v1828 = vmul.f32 %v1815, %v1810
        %v1829 = vmul.f32 %v1815, %v1811
        %v1830 = vmul.f32 %v1815, %v1812
        %v1831 = vmul.f32 %v1815, %v1813
        %s1832 = sld [smem:[#allocation13 + $0x80]]
        %v1833 = vstv %s1832
        %v1834 = vmul.f32 %v1833, %v936
        %v1835 = vmul.f32 %v1833, %v941
        %v1836 = vmul.f32 %v1833, %v946
        %v1837 = vmul.f32 %v1833, %v951
        %v1838 = vmul.f32 %v1833, %v956
        %v1839 = vmul.f32 %v1833, %v961
        %v1840 = vmul.f32 %v1833, %v966
        %v1841 = vmul.f32 %v1833, %v971
        %v1842 = vmul.f32 %v1833, %v976
        %v1843 = vmul.f32 %v1833, %v981
        %v1844 = vmul.f32 %v1833, %v986
        %v1845 = vmul.f32 %v1833, %v991
        %v1846 = vmul.f32 %v1833, %v996
        %v1847 = vmul.f32 %v1833, %v1001
        %v1848 = vmul.f32 %v1833, %v1006
        %v1849 = vmul.f32 %v1833, %v1011
        %s1850 = sld [smem:[#allocation14 + $0x1]]
        %v1851 = vstv %s1850
        %v1852 = vadd.f32 %v1834, %v1851
        %v1853 = vadd.f32 %v1835, %v1851
        %v1854 = vadd.f32 %v1836, %v1851
        %v1855 = vadd.f32 %v1837, %v1851
        %v1856 = vadd.f32 %v1838, %v1851
        %v1857 = vadd.f32 %v1839, %v1851
        %v1858 = vadd.f32 %v1840, %v1851
        %v1859 = vadd.f32 %v1841, %v1851
        %v1860 = vadd.f32 %v1842, %v1851
        %v1861 = vadd.f32 %v1843, %v1851
        %v1862 = vadd.f32 %v1844, %v1851
        %v1863 = vadd.f32 %v1845, %v1851
        %v1864 = vadd.f32 %v1846, %v1851
        %v1865 = vadd.f32 %v1847, %v1851
        %v1866 = vadd.f32 %v1848, %v1851
        %v1867 = vadd.f32 %v1849, %v1851
        %s1868 = sld [smem:[#allocation13 + $0x81]]
        %v1869 = vstv %s1868
        %v1870 = vmul.f32 %v1869, %v1016
        %v1871 = vmul.f32 %v1869, %v1021
        %v1872 = vmul.f32 %v1869, %v1026
        %v1873 = vmul.f32 %v1869, %v1031
        %v1874 = vmul.f32 %v1869, %v1036
        %v1875 = vmul.f32 %v1869, %v1041
        %v1876 = vmul.f32 %v1869, %v1046
        %v1877 = vmul.f32 %v1869, %v1051
        %v1878 = vmul.f32 %v1869, %v1056
        %v1879 = vmul.f32 %v1869, %v1061
        %v1880 = vmul.f32 %v1869, %v1066
        %v1881 = vmul.f32 %v1869, %v1071
        %v1882 = vmul.f32 %v1869, %v1076
        %v1883 = vmul.f32 %v1869, %v1081
        %v1884 = vmul.f32 %v1869, %v1086
        %v1885 = vmul.f32 %v1869, %v1091
        %v1886 = vadd.f32 %v1852, %v1870
        %v1887 = vadd.f32 %v1853, %v1871
        %v1888 = vadd.f32 %v1854, %v1872
        %v1889 = vadd.f32 %v1855, %v1873
        %v1890 = vadd.f32 %v1856, %v1874
        %v1891 = vadd.f32 %v1857, %v1875
        %v1892 = vadd.f32 %v1858, %v1876
        %v1893 = vadd.f32 %v1859, %v1877
        %v1894 = vadd.f32 %v1860, %v1878
        %v1895 = vadd.f32 %v1861, %v1879
        %v1896 = vadd.f32 %v1862, %v1880
        %v1897 = vadd.f32 %v1863, %v1881
        %v1898 = vadd.f32 %v1864, %v1882
        %v1899 = vadd.f32 %v1865, %v1883
        %v1900 = vadd.f32 %v1866, %v1884
        %v1901 = vadd.f32 %v1867, %v1885
        %s1902 = sld [smem:[#allocation13 + $0x82]]
        %v1903 = vstv %s1902
        %v1904 = vmul.f32 %v1903, %v1273
        %v1905 = vmul.f32 %v1903, %v1278
        %v1906 = vmul.f32 %v1903, %v1283
        %v1907 = vmul.f32 %v1903, %v1288
        %v1908 = vmul.f32 %v1903, %v1293
        %v1909 = vmul.f32 %v1903, %v1298
        %v1910 = vmul.f32 %v1903, %v1303
        %v1911 = vmul.f32 %v1903, %v1308
        %v1912 = vmul.f32 %v1903, %v1313
        %v1913 = vmul.f32 %v1903, %v1318
        %v1914 = vmul.f32 %v1903, %v1323
        %v1915 = vmul.f32 %v1903, %v1328
        %v1916 = vmul.f32 %v1903, %v1333
        %v1917 = vmul.f32 %v1903, %v1338
        %v1918 = vmul.f32 %v1903, %v1343
        %v1919 = vmul.f32 %v1903, %v1348
        %v1920 = vadd.f32 %v1886, %v1904
        %v1921 = vadd.f32 %v1887, %v1905
        %v1922 = vadd.f32 %v1888, %v1906
        %v1923 = vadd.f32 %v1889, %v1907
        %v1924 = vadd.f32 %v1890, %v1908
        %v1925 = vadd.f32 %v1891, %v1909
        %v1926 = vadd.f32 %v1892, %v1910
        %v1927 = vadd.f32 %v1893, %v1911
        %v1928 = vadd.f32 %v1894, %v1912
        %v1929 = vadd.f32 %v1895, %v1913
        %v1930 = vadd.f32 %v1896, %v1914
        %v1931 = vadd.f32 %v1897, %v1915
        %v1932 = vadd.f32 %v1898, %v1916
        %v1933 = vadd.f32 %v1899, %v1917
        %v1934 = vadd.f32 %v1900, %v1918
        %v1935 = vadd.f32 %v1901, %v1919
        %s1936 = sld [smem:[#allocation13 + $0x83]]
        %v1937 = vstv %s1936
        %v1938 = vmul.f32 %v1937, %v1096
        %v1939 = vmul.f32 %v1937, %v1101
        %v1940 = vmul.f32 %v1937, %v1106
        %v1941 = vmul.f32 %v1937, %v1111
        %v1942 = vmul.f32 %v1937, %v1116
        %v1943 = vmul.f32 %v1937, %v1121
        %v1944 = vmul.f32 %v1937, %v1126
        %v1945 = vmul.f32 %v1937, %v1131
        %v1946 = vmul.f32 %v1937, %v1136
        %v1947 = vmul.f32 %v1937, %v1141
        %v1948 = vmul.f32 %v1937, %v1146
        %v1949 = vmul.f32 %v1937, %v1151
        %v1950 = vmul.f32 %v1937, %v1156
        %v1951 = vmul.f32 %v1937, %v1161
        %v1952 = vmul.f32 %v1937, %v1166
        %v1953 = vmul.f32 %v1937, %v1171
        %v1954 = vadd.f32 %v1920, %v1938
        %v1955 = vadd.f32 %v1921, %v1939
        %v1956 = vadd.f32 %v1922, %v1940
        %v1957 = vadd.f32 %v1923, %v1941
        %v1958 = vadd.f32 %v1924, %v1942
        %v1959 = vadd.f32 %v1925, %v1943
        %v1960 = vadd.f32 %v1926, %v1944
        %v1961 = vadd.f32 %v1927, %v1945
        %v1962 = vadd.f32 %v1928, %v1946
        %v1963 = vadd.f32 %v1929, %v1947
        %v1964 = vadd.f32 %v1930, %v1948
        %v1965 = vadd.f32 %v1931, %v1949
        %v1966 = vadd.f32 %v1932, %v1950
        %v1967 = vadd.f32 %v1933, %v1951
        %v1968 = vadd.f32 %v1934, %v1952
        %v1969 = vadd.f32 %v1935, %v1953
        %s1970 = sld [smem:[#allocation13 + $0x84]]
        %v1971 = vstv %s1970
        %v1972 = vmul.f32 %v1971, %v1353
        %v1973 = vmul.f32 %v1971, %v1358
        %v1974 = vmul.f32 %v1971, %v1363
        %v1975 = vmul.f32 %v1971, %v1368
        %v1976 = vmul.f32 %v1971, %v1373
        %v1977 = vmul.f32 %v1971, %v1378
        %v1978 = vmul.f32 %v1971, %v1383
        %v1979 = vmul.f32 %v1971, %v1388
        %v1980 = vmul.f32 %v1971, %v1393
        %v1981 = vmul.f32 %v1971, %v1398
        %v1982 = vmul.f32 %v1971, %v1403
        %v1983 = vmul.f32 %v1971, %v1408
        %v1984 = vmul.f32 %v1971, %v1413
        %v1985 = vmul.f32 %v1971, %v1418
        %v1986 = vmul.f32 %v1971, %v1423
        %v1987 = vmul.f32 %v1971, %v1428
        %v1988 = vadd.f32 %v1954, %v1972
        %v1989 = vadd.f32 %v1955, %v1973
        %v1990 = vadd.f32 %v1956, %v1974
        %v1991 = vadd.f32 %v1957, %v1975
        %v1992 = vadd.f32 %v1958, %v1976
        %v1993 = vadd.f32 %v1959, %v1977
        %v1994 = vadd.f32 %v1960, %v1978
        %v1995 = vadd.f32 %v1961, %v1979
        %v1996 = vadd.f32 %v1962, %v1980
        %v1997 = vadd.f32 %v1963, %v1981
        %v1998 = vadd.f32 %v1964, %v1982
        %v1999 = vadd.f32 %v1965, %v1983
        %v2000 = vadd.f32 %v1966, %v1984
        %v2001 = vadd.f32 %v1967, %v1985
        %v2002 = vadd.f32 %v1968, %v1986
        %v2003 = vadd.f32 %v1969, %v1987
        %s2004 = sld [smem:[#allocation13 + $0x85]]
        %v2005 = vstv %s2004
        %v2006 = vmul.f32 %v2005, %v1514
        %v2007 = vmul.f32 %v2005, %v1519
        %v2008 = vmul.f32 %v2005, %v1524
        %v2009 = vmul.f32 %v2005, %v1529
        %v2010 = vmul.f32 %v2005, %v1534
        %v2011 = vmul.f32 %v2005, %v1539
        %v2012 = vmul.f32 %v2005, %v1544
        %v2013 = vmul.f32 %v2005, %v1549
        %v2014 = vmul.f32 %v2005, %v1554
        %v2015 = vmul.f32 %v2005, %v1559
        %v2016 = vmul.f32 %v2005, %v1564
        %v2017 = vmul.f32 %v2005, %v1569
        %v2018 = vmul.f32 %v2005, %v1574
        %v2019 = vmul.f32 %v2005, %v1579
        %v2020 = vmul.f32 %v2005, %v1584
        %v2021 = vmul.f32 %v2005, %v1589
        %v2022 = vadd.f32 %v1988, %v2006
        %v2023 = vadd.f32 %v1989, %v2007
        %v2024 = vadd.f32 %v1990, %v2008
        %v2025 = vadd.f32 %v1991, %v2009
        %v2026 = vadd.f32 %v1992, %v2010
        %v2027 = vadd.f32 %v1993, %v2011
        %v2028 = vadd.f32 %v1994, %v2012
        %v2029 = vadd.f32 %v1995, %v2013
        %v2030 = vadd.f32 %v1996, %v2014
        %v2031 = vadd.f32 %v1997, %v2015
        %v2032 = vadd.f32 %v1998, %v2016
        %v2033 = vadd.f32 %v1999, %v2017
        %v2034 = vadd.f32 %v2000, %v2018
        %v2035 = vadd.f32 %v2001, %v2019
        %v2036 = vadd.f32 %v2002, %v2020
        %v2037 = vadd.f32 %v2003, %v2021
        %v2038 = vmax.f32 %v2022, 0.0
        %v2039 = vmax.f32 %v2023, 0.0
        %v2040 = vmax.f32 %v2024, 0.0
        %v2041 = vmax.f32 %v2025, 0.0
        %v2042 = vmax.f32 %v2026, 0.0
        %v2043 = vmax.f32 %v2027, 0.0
        %v2044 = vmax.f32 %v2028, 0.0
        %v2045 = vmax.f32 %v2029, 0.0
        %v2046 = vmax.f32 %v2030, 0.0
        %v2047 = vmax.f32 %v2031, 0.0
        %v2048 = vmax.f32 %v2032, 0.0
        %v2049 = vmax.f32 %v2033, 0.0
        %v2050 = vmax.f32 %v2034, 0.0
        %v2051 = vmax.f32 %v2035, 0.0
        %v2052 = vmax.f32 %v2036, 0.0
        %v2053 = vmax.f32 %v2037, 0.0
        %s2054 = sld [smem:[#allocation16 + $0x1]]
        %v2055 = vstv %s2054
        %v2056 = vmul.f32 %v2055, %v2038
        %v2057 = vmul.f32 %v2055, %v2039
        %v2058 = vmul.f32 %v2055, %v2040
        %v2059 = vmul.f32 %v2055, %v2041
        %v2060 = vmul.f32 %v2055, %v2042
        %v2061 = vmul.f32 %v2055, %v2043
        %v2062 = vmul.f32 %v2055, %v2044
        %v2063 = vmul.f32 %v2055, %v2045
        %v2064 = vmul.f32 %v2055, %v2046
        %v2065 = vmul.f32 %v2055, %v2047
        %v2066 = vmul.f32 %v2055, %v2048
        %v2067 = vmul.f32 %v2055, %v2049
        %v2068 = vmul.f32 %v2055, %v2050
        %v2069 = vmul.f32 %v2055, %v2051
        %v2070 = vmul.f32 %v2055, %v2052
        %v2071 = vmul.f32 %v2055, %v2053
        %v2072 = vadd.f32 %v1816, %v2056
        %v2073 = vadd.f32 %v1817, %v2057
        %v2074 = vadd.f32 %v1818, %v2058
        %v2075 = vadd.f32 %v1819, %v2059
        %v2076 = vadd.f32 %v1820, %v2060
        %v2077 = vadd.f32 %v1821, %v2061
        %v2078 = vadd.f32 %v1822, %v2062
        %v2079 = vadd.f32 %v1823, %v2063
        %v2080 = vadd.f32 %v1824, %v2064
        %v2081 = vadd.f32 %v1825, %v2065
        %v2082 = vadd.f32 %v1826, %v2066
        %v2083 = vadd.f32 %v1827, %v2067
        %v2084 = vadd.f32 %v1828, %v2068
        %v2085 = vadd.f32 %v1829, %v2069
        %v2086 = vadd.f32 %v1830, %v2070
        %v2087 = vadd.f32 %v1831, %v2071
        %s2088 = sld [smem:[#allocation13 + $0x100]]
        %v2089 = vstv %s2088
        %v2090 = vmul.f32 %v2089, %v936
        %v2091 = vmul.f32 %v2089, %v941
        %v2092 = vmul.f32 %v2089, %v946
        %v2093 = vmul.f32 %v2089, %v951
        %v2094 = vmul.f32 %v2089, %v956
        %v2095 = vmul.f32 %v2089, %v961
        %v2096 = vmul.f32 %v2089, %v966
        %v2097 = vmul.f32 %v2089, %v971
        %v2098 = vmul.f32 %v2089, %v976
        %v2099 = vmul.f32 %v2089, %v981
        %v2100 = vmul.f32 %v2089, %v986
        %v2101 = vmul.f32 %v2089, %v991
        %v2102 = vmul.f32 %v2089, %v996
        %v2103 = vmul.f32 %v2089, %v1001
        %v2104 = vmul.f32 %v2089, %v1006
        %v2105 = vmul.f32 %v2089, %v1011
        %s2106 = sld [smem:[#allocation14 + $0x2]]
        %v2107 = vstv %s2106
        %v2108 = vadd.f32 %v2090, %v2107
        %v2109 = vadd.f32 %v2091, %v2107
        %v2110 = vadd.f32 %v2092, %v2107
        %v2111 = vadd.f32 %v2093, %v2107
        %v2112 = vadd.f32 %v2094, %v2107
        %v2113 = vadd.f32 %v2095, %v2107
        %v2114 = vadd.f32 %v2096, %v2107
        %v2115 = vadd.f32 %v2097, %v2107
        %v2116 = vadd.f32 %v2098, %v2107
        %v2117 = vadd.f32 %v2099, %v2107
        %v2118 = vadd.f32 %v2100, %v2107
        %v2119 = vadd.f32 %v2101, %v2107
        %v2120 = vadd.f32 %v2102, %v2107
        %v2121 = vadd.f32 %v2103, %v2107
        %v2122 = vadd.f32 %v2104, %v2107
        %v2123 = vadd.f32 %v2105, %v2107
        %s2124 = sld [smem:[#allocation13 + $0x101]]
        %v2125 = vstv %s2124
        %v2126 = vmul.f32 %v2125, %v1016
        %v2127 = vmul.f32 %v2125, %v1021
        %v2128 = vmul.f32 %v2125, %v1026
        %v2129 = vmul.f32 %v2125, %v1031
        %v2130 = vmul.f32 %v2125, %v1036
        %v2131 = vmul.f32 %v2125, %v1041
        %v2132 = vmul.f32 %v2125, %v1046
        %v2133 = vmul.f32 %v2125, %v1051
        %v2134 = vmul.f32 %v2125, %v1056
        %v2135 = vmul.f32 %v2125, %v1061
        %v2136 = vmul.f32 %v2125, %v1066
        %v2137 = vmul.f32 %v2125, %v1071
        %v2138 = vmul.f32 %v2125, %v1076
        %v2139 = vmul.f32 %v2125, %v1081
        %v2140 = vmul.f32 %v2125, %v1086
        %v2141 = vmul.f32 %v2125, %v1091
        %v2142 = vadd.f32 %v2108, %v2126
        %v2143 = vadd.f32 %v2109, %v2127
        %v2144 = vadd.f32 %v2110, %v2128
        %v2145 = vadd.f32 %v2111, %v2129
        %v2146 = vadd.f32 %v2112, %v2130
        %v2147 = vadd.f32 %v2113, %v2131
        %v2148 = vadd.f32 %v2114, %v2132
        %v2149 = vadd.f32 %v2115, %v2133
        %v2150 = vadd.f32 %v2116, %v2134
        %v2151 = vadd.f32 %v2117, %v2135
        %v2152 = vadd.f32 %v2118, %v2136
        %v2153 = vadd.f32 %v2119, %v2137
        %v2154 = vadd.f32 %v2120, %v2138
        %v2155 = vadd.f32 %v2121, %v2139
        %v2156 = vadd.f32 %v2122, %v2140
        %v2157 = vadd.f32 %v2123, %v2141
        %s2158 = sld [smem:[#allocation13 + $0x102]]
        %v2159 = vstv %s2158
        %v2160 = vmul.f32 %v2159, %v1273
        %v2161 = vmul.f32 %v2159, %v1278
        %v2162 = vmul.f32 %v2159, %v1283
        %v2163 = vmul.f32 %v2159, %v1288
        %v2164 = vmul.f32 %v2159, %v1293
        %v2165 = vmul.f32 %v2159, %v1298
        %v2166 = vmul.f32 %v2159, %v1303
        %v2167 = vmul.f32 %v2159, %v1308
        %v2168 = vmul.f32 %v2159, %v1313
        %v2169 = vmul.f32 %v2159, %v1318
        %v2170 = vmul.f32 %v2159, %v1323
        %v2171 = vmul.f32 %v2159, %v1328
        %v2172 = vmul.f32 %v2159, %v1333
        %v2173 = vmul.f32 %v2159, %v1338
        %v2174 = vmul.f32 %v2159, %v1343
        %v2175 = vmul.f32 %v2159, %v1348
        %v2176 = vadd.f32 %v2142, %v2160
        %v2177 = vadd.f32 %v2143, %v2161
        %v2178 = vadd.f32 %v2144, %v2162
        %v2179 = vadd.f32 %v2145, %v2163
        %v2180 = vadd.f32 %v2146, %v2164
        %v2181 = vadd.f32 %v2147, %v2165
        %v2182 = vadd.f32 %v2148, %v2166
        %v2183 = vadd.f32 %v2149, %v2167
        %v2184 = vadd.f32 %v2150, %v2168
        %v2185 = vadd.f32 %v2151, %v2169
        %v2186 = vadd.f32 %v2152, %v2170
        %v2187 = vadd.f32 %v2153, %v2171
        %v2188 = vadd.f32 %v2154, %v2172
        %v2189 = vadd.f32 %v2155, %v2173
        %v2190 = vadd.f32 %v2156, %v2174
        %v2191 = vadd.f32 %v2157, %v2175
        %s2192 = sld [smem:[#allocation13 + $0x103]]
        %v2193 = vstv %s2192
        %v2194 = vmul.f32 %v2193, %v1096
        %v2195 = vmul.f32 %v2193, %v1101
        %v2196 = vmul.f32 %v2193, %v1106
        %v2197 = vmul.f32 %v2193, %v1111
        %v2198 = vmul.f32 %v2193, %v1116
        %v2199 = vmul.f32 %v2193, %v1121
        %v2200 = vmul.f32 %v2193, %v1126
        %v2201 = vmul.f32 %v2193, %v1131
        %v2202 = vmul.f32 %v2193, %v1136
        %v2203 = vmul.f32 %v2193, %v1141
        %v2204 = vmul.f32 %v2193, %v1146
        %v2205 = vmul.f32 %v2193, %v1151
        %v2206 = vmul.f32 %v2193, %v1156
        %v2207 = vmul.f32 %v2193, %v1161
        %v2208 = vmul.f32 %v2193, %v1166
        %v2209 = vmul.f32 %v2193, %v1171
        %v2210 = vadd.f32 %v2176, %v2194
        %v2211 = vadd.f32 %v2177, %v2195
        %v2212 = vadd.f32 %v2178, %v2196
        %v2213 = vadd.f32 %v2179, %v2197
        %v2214 = vadd.f32 %v2180, %v2198
        %v2215 = vadd.f32 %v2181, %v2199
        %v2216 = vadd.f32 %v2182, %v2200
        %v2217 = vadd.f32 %v2183, %v2201
        %v2218 = vadd.f32 %v2184, %v2202
        %v2219 = vadd.f32 %v2185, %v2203
        %v2220 = vadd.f32 %v2186, %v2204
        %v2221 = vadd.f32 %v2187, %v2205
        %v2222 = vadd.f32 %v2188, %v2206
        %v2223 = vadd.f32 %v2189, %v2207
        %v2224 = vadd.f32 %v2190, %v2208
        %v2225 = vadd.f32 %v2191, %v2209
        %s2226 = sld [smem:[#allocation13 + $0x104]]
        %v2227 = vstv %s2226
        %v2228 = vmul.f32 %v2227, %v1353
        %v2229 = vmul.f32 %v2227, %v1358
        %v2230 = vmul.f32 %v2227, %v1363
        %v2231 = vmul.f32 %v2227, %v1368
        %v2232 = vmul.f32 %v2227, %v1373
        %v2233 = vmul.f32 %v2227, %v1378
        %v2234 = vmul.f32 %v2227, %v1383
        %v2235 = vmul.f32 %v2227, %v1388
        %v2236 = vmul.f32 %v2227, %v1393
        %v2237 = vmul.f32 %v2227, %v1398
        %v2238 = vmul.f32 %v2227, %v1403
        %v2239 = vmul.f32 %v2227, %v1408
        %v2240 = vmul.f32 %v2227, %v1413
        %v2241 = vmul.f32 %v2227, %v1418
        %v2242 = vmul.f32 %v2227, %v1423
        %v2243 = vmul.f32 %v2227, %v1428
        %v2244 = vadd.f32 %v2210, %v2228
        %v2245 = vadd.f32 %v2211, %v2229
        %v2246 = vadd.f32 %v2212, %v2230
        %v2247 = vadd.f32 %v2213, %v2231
        %v2248 = vadd.f32 %v2214, %v2232
        %v2249 = vadd.f32 %v2215, %v2233
        %v2250 = vadd.f32 %v2216, %v2234
        %v2251 = vadd.f32 %v2217, %v2235
        %v2252 = vadd.f32 %v2218, %v2236
        %v2253 = vadd.f32 %v2219, %v2237
        %v2254 = vadd.f32 %v2220, %v2238
        %v2255 = vadd.f32 %v2221, %v2239
        %v2256 = vadd.f32 %v2222, %v2240
        %v2257 = vadd.f32 %v2223, %v2241
        %v2258 = vadd.f32 %v2224, %v2242
        %v2259 = vadd.f32 %v2225, %v2243
        %s2260 = sld [smem:[#allocation13 + $0x105]]
        %v2261 = vstv %s2260
        %v2262 = vmul.f32 %v2261, %v1514
        %v2263 = vmul.f32 %v2261, %v1519
        %v2264 = vmul.f32 %v2261, %v1524
        %v2265 = vmul.f32 %v2261, %v1529
        %v2266 = vmul.f32 %v2261, %v1534
        %v2267 = vmul.f32 %v2261, %v1539
        %v2268 = vmul.f32 %v2261, %v1544
        %v2269 = vmul.f32 %v2261, %v1549
        %v2270 = vmul.f32 %v2261, %v1554
        %v2271 = vmul.f32 %v2261, %v1559
        %v2272 = vmul.f32 %v2261, %v1564
        %v2273 = vmul.f32 %v2261, %v1569
        %v2274 = vmul.f32 %v2261, %v1574
        %v2275 = vmul.f32 %v2261, %v1579
        %v2276 = vmul.f32 %v2261, %v1584
        %v2277 = vmul.f32 %v2261, %v1589
        %v2278 = vadd.f32 %v2244, %v2262
        %v2279 = vadd.f32 %v2245, %v2263
        %v2280 = vadd.f32 %v2246, %v2264
        %v2281 = vadd.f32 %v2247, %v2265
        %v2282 = vadd.f32 %v2248, %v2266
        %v2283 = vadd.f32 %v2249, %v2267
        %v2284 = vadd.f32 %v2250, %v2268
        %v2285 = vadd.f32 %v2251, %v2269
        %v2286 = vadd.f32 %v2252, %v2270
        %v2287 = vadd.f32 %v2253, %v2271
        %v2288 = vadd.f32 %v2254, %v2272
        %v2289 = vadd.f32 %v2255, %v2273
        %v2290 = vadd.f32 %v2256, %v2274
        %v2291 = vadd.f32 %v2257, %v2275
        %v2292 = vadd.f32 %v2258, %v2276
        %v2293 = vadd.f32 %v2259, %v2277
        %v2294 = vmax.f32 %v2278, 0.0
        %v2295 = vmax.f32 %v2279, 0.0
        %v2296 = vmax.f32 %v2280, 0.0
        %v2297 = vmax.f32 %v2281, 0.0
        %v2298 = vmax.f32 %v2282, 0.0
        %v2299 = vmax.f32 %v2283, 0.0
        %v2300 = vmax.f32 %v2284, 0.0
        %v2301 = vmax.f32 %v2285, 0.0
        %v2302 = vmax.f32 %v2286, 0.0
        %v2303 = vmax.f32 %v2287, 0.0
        %v2304 = vmax.f32 %v2288, 0.0
        %v2305 = vmax.f32 %v2289, 0.0
        %v2306 = vmax.f32 %v2290, 0.0
        %v2307 = vmax.f32 %v2291, 0.0
        %v2308 = vmax.f32 %v2292, 0.0
        %v2309 = vmax.f32 %v2293, 0.0
        %s2310 = sld [smem:[#allocation16 + $0x2]]
        %v2311 = vstv %s2310
        %v2312 = vmul.f32 %v2311, %v2294
        %v2313 = vmul.f32 %v2311, %v2295
        %v2314 = vmul.f32 %v2311, %v2296
        %v2315 = vmul.f32 %v2311, %v2297
        %v2316 = vmul.f32 %v2311, %v2298
        %v2317 = vmul.f32 %v2311, %v2299
        %v2318 = vmul.f32 %v2311, %v2300
        %v2319 = vmul.f32 %v2311, %v2301
        %v2320 = vmul.f32 %v2311, %v2302
        %v2321 = vmul.f32 %v2311, %v2303
        %v2322 = vmul.f32 %v2311, %v2304
        %v2323 = vmul.f32 %v2311, %v2305
        %v2324 = vmul.f32 %v2311, %v2306
        %v2325 = vmul.f32 %v2311, %v2307
        %v2326 = vmul.f32 %v2311, %v2308
        %v2327 = vmul.f32 %v2311, %v2309
        %v2328 = vadd.f32 %v2072, %v2312
        %v2329 = vadd.f32 %v2073, %v2313
        %v2330 = vadd.f32 %v2074, %v2314
        %v2331 = vadd.f32 %v2075, %v2315
        %v2332 = vadd.f32 %v2076, %v2316
        %v2333 = vadd.f32 %v2077, %v2317
        %v2334 = vadd.f32 %v2078, %v2318
        %v2335 = vadd.f32 %v2079, %v2319
        %v2336 = vadd.f32 %v2080, %v2320
        %v2337 = vadd.f32 %v2081, %v2321
        %v2338 = vadd.f32 %v2082, %v2322
        %v2339 = vadd.f32 %v2083, %v2323
        %v2340 = vadd.f32 %v2084, %v2324
        %v2341 = vadd.f32 %v2085, %v2325
        %v2342 = vadd.f32 %v2086, %v2326
        %v2343 = vadd.f32 %v2087, %v2327
        %s2344 = sld [smem:[#allocation13 + $0x180]]
        %v2345 = vstv %s2344
        %v2346 = vmul.f32 %v2345, %v936
        %v2347 = vmul.f32 %v2345, %v941
        %v2348 = vmul.f32 %v2345, %v946
        %v2349 = vmul.f32 %v2345, %v951
        %v2350 = vmul.f32 %v2345, %v956
        %v2351 = vmul.f32 %v2345, %v961
        %v2352 = vmul.f32 %v2345, %v966
        %v2353 = vmul.f32 %v2345, %v971
        %v2354 = vmul.f32 %v2345, %v976
        %v2355 = vmul.f32 %v2345, %v981
        %v2356 = vmul.f32 %v2345, %v986
        %v2357 = vmul.f32 %v2345, %v991
        %v2358 = vmul.f32 %v2345, %v996
        %v2359 = vmul.f32 %v2345, %v1001
        %v2360 = vmul.f32 %v2345, %v1006
        %v2361 = vmul.f32 %v2345, %v1011
        %s2362 = sld [smem:[#allocation14 + $0x3]]
        %v2363 = vstv %s2362
        %v2364 = vadd.f32 %v2346, %v2363
        %v2365 = vadd.f32 %v2347, %v2363
        %v2366 = vadd.f32 %v2348, %v2363
        %v2367 = vadd.f32 %v2349, %v2363
        %v2368 = vadd.f32 %v2350, %v2363
        %v2369 = vadd.f32 %v2351, %v2363
        %v2370 = vadd.f32 %v2352, %v2363
        %v2371 = vadd.f32 %v2353, %v2363
        %v2372 = vadd.f32 %v2354, %v2363
        %v2373 = vadd.f32 %v2355, %v2363
        %v2374 = vadd.f32 %v2356, %v2363
        %v2375 = vadd.f32 %v2357, %v2363
        %v2376 = vadd.f32 %v2358, %v2363
        %v2377 = vadd.f32 %v2359, %v2363
        %v2378 = vadd.f32 %v2360, %v2363
        %v2379 = vadd.f32 %v2361, %v2363
        %s2380 = sld [smem:[#allocation13 + $0x181]]
        %v2381 = vstv %s2380
        %v2382 = vmul.f32 %v2381, %v1016
        %v2383 = vmul.f32 %v2381, %v1021
        %v2384 = vmul.f32 %v2381, %v1026
        %v2385 = vmul.f32 %v2381, %v1031
        %v2386 = vmul.f32 %v2381, %v1036
        %v2387 = vmul.f32 %v2381, %v1041
        %v2388 = vmul.f32 %v2381, %v1046
        %v2389 = vmul.f32 %v2381, %v1051
        %v2390 = vmul.f32 %v2381, %v1056
        %v2391 = vmul.f32 %v2381, %v1061
        %v2392 = vmul.f32 %v2381, %v1066
        %v2393 = vmul.f32 %v2381, %v1071
        %v2394 = vmul.f32 %v2381, %v1076
        %v2395 = vmul.f32 %v2381, %v1081
        %v2396 = vmul.f32 %v2381, %v1086
        %v2397 = vmul.f32 %v2381, %v1091
        %v2398 = vadd.f32 %v2364, %v2382
        %v2399 = vadd.f32 %v2365, %v2383
        %v2400 = vadd.f32 %v2366, %v2384
        %v2401 = vadd.f32 %v2367, %v2385
        %v2402 = vadd.f32 %v2368, %v2386
        %v2403 = vadd.f32 %v2369, %v2387
        %v2404 = vadd.f32 %v2370, %v2388
        %v2405 = vadd.f32 %v2371, %v2389
        %v2406 = vadd.f32 %v2372, %v2390
        %v2407 = vadd.f32 %v2373, %v2391
        %v2408 = vadd.f32 %v2374, %v2392
        %v2409 = vadd.f32 %v2375, %v2393
        %v2410 = vadd.f32 %v2376, %v2394
        %v2411 = vadd.f32 %v2377, %v2395
        %v2412 = vadd.f32 %v2378, %v2396
        %v2413 = vadd.f32 %v2379, %v2397
        %s2414 = sld [smem:[#allocation13 + $0x182]]
        %v2415 = vstv %s2414
        %v2416 = vmul.f32 %v2415, %v1273
        %v2417 = vmul.f32 %v2415, %v1278
        %v2418 = vmul.f32 %v2415, %v1283
        %v2419 = vmul.f32 %v2415, %v1288
        %v2420 = vmul.f32 %v2415, %v1293
        %v2421 = vmul.f32 %v2415, %v1298
        %v2422 = vmul.f32 %v2415, %v1303
        %v2423 = vmul.f32 %v2415, %v1308
        %v2424 = vmul.f32 %v2415, %v1313
        %v2425 = vmul.f32 %v2415, %v1318
        %v2426 = vmul.f32 %v2415, %v1323
        %v2427 = vmul.f32 %v2415, %v1328
        %v2428 = vmul.f32 %v2415, %v1333
        %v2429 = vmul.f32 %v2415, %v1338
        %v2430 = vmul.f32 %v2415, %v1343
        %v2431 = vmul.f32 %v2415, %v1348
        %v2432 = vadd.f32 %v2398, %v2416
        %v2433 = vadd.f32 %v2399, %v2417
        %v2434 = vadd.f32 %v2400, %v2418
        %v2435 = vadd.f32 %v2401, %v2419
        %v2436 = vadd.f32 %v2402, %v2420
        %v2437 = vadd.f32 %v2403, %v2421
        %v2438 = vadd.f32 %v2404, %v2422
        %v2439 = vadd.f32 %v2405, %v2423
        %v2440 = vadd.f32 %v2406, %v2424
        %v2441 = vadd.f32 %v2407, %v2425
        %v2442 = vadd.f32 %v2408, %v2426
        %v2443 = vadd.f32 %v2409, %v2427
        %v2444 = vadd.f32 %v2410, %v2428
        %v2445 = vadd.f32 %v2411, %v2429
        %v2446 = vadd.f32 %v2412, %v2430
        %v2447 = vadd.f32 %v2413, %v2431
        %s2448 = sld [smem:[#allocation13 + $0x183]]
        %v2449 = vstv %s2448
        %v2450 = vmul.f32 %v2449, %v1096
        %v2451 = vmul.f32 %v2449, %v1101
        %v2452 = vmul.f32 %v2449, %v1106
        %v2453 = vmul.f32 %v2449, %v1111
        %v2454 = vmul.f32 %v2449, %v1116
        %v2455 = vmul.f32 %v2449, %v1121
        %v2456 = vmul.f32 %v2449, %v1126
        %v2457 = vmul.f32 %v2449, %v1131
        %v2458 = vmul.f32 %v2449, %v1136
        %v2459 = vmul.f32 %v2449, %v1141
        %v2460 = vmul.f32 %v2449, %v1146
        %v2461 = vmul.f32 %v2449, %v1151
        %v2462 = vmul.f32 %v2449, %v1156
        %v2463 = vmul.f32 %v2449, %v1161
        %v2464 = vmul.f32 %v2449, %v1166
        %v2465 = vmul.f32 %v2449, %v1171
        %v2466 = vadd.f32 %v2432, %v2450
        %v2467 = vadd.f32 %v2433, %v2451
        %v2468 = vadd.f32 %v2434, %v2452
        %v2469 = vadd.f32 %v2435, %v2453
        %v2470 = vadd.f32 %v2436, %v2454
        %v2471 = vadd.f32 %v2437, %v2455
        %v2472 = vadd.f32 %v2438, %v2456
        %v2473 = vadd.f32 %v2439, %v2457
        %v2474 = vadd.f32 %v2440, %v2458
        %v2475 = vadd.f32 %v2441, %v2459
        %v2476 = vadd.f32 %v2442, %v2460
        %v2477 = vadd.f32 %v2443, %v2461
        %v2478 = vadd.f32 %v2444, %v2462
        %v2479 = vadd.f32 %v2445, %v2463
        %v2480 = vadd.f32 %v2446, %v2464
        %v2481 = vadd.f32 %v2447, %v2465
        %s2482 = sld [smem:[#allocation13 + $0x184]]
        %v2483 = vstv %s2482
        %v2484 = vmul.f32 %v2483, %v1353
        %v2485 = vmul.f32 %v2483, %v1358
        %v2486 = vmul.f32 %v2483, %v1363
        %v2487 = vmul.f32 %v2483, %v1368
        %v2488 = vmul.f32 %v2483, %v1373
        %v2489 = vmul.f32 %v2483, %v1378
        %v2490 = vmul.f32 %v2483, %v1383
        %v2491 = vmul.f32 %v2483, %v1388
        %v2492 = vmul.f32 %v2483, %v1393
        %v2493 = vmul.f32 %v2483, %v1398
        %v2494 = vmul.f32 %v2483, %v1403
        %v2495 = vmul.f32 %v2483, %v1408
        %v2496 = vmul.f32 %v2483, %v1413
        %v2497 = vmul.f32 %v2483, %v1418
        %v2498 = vmul.f32 %v2483, %v1423
        %v2499 = vmul.f32 %v2483, %v1428
        %v2500 = vadd.f32 %v2466, %v2484
        %v2501 = vadd.f32 %v2467, %v2485
        %v2502 = vadd.f32 %v2468, %v2486
        %v2503 = vadd.f32 %v2469, %v2487
        %v2504 = vadd.f32 %v2470, %v2488
        %v2505 = vadd.f32 %v2471, %v2489
        %v2506 = vadd.f32 %v2472, %v2490
        %v2507 = vadd.f32 %v2473, %v2491
        %v2508 = vadd.f32 %v2474, %v2492
        %v2509 = vadd.f32 %v2475, %v2493
        %v2510 = vadd.f32 %v2476, %v2494
        %v2511 = vadd.f32 %v2477, %v2495
        %v2512 = vadd.f32 %v2478, %v2496
        %v2513 = vadd.f32 %v2479, %v2497
        %v2514 = vadd.f32 %v2480, %v2498
        %v2515 = vadd.f32 %v2481, %v2499
        %s2516 = sld [smem:[#allocation13 + $0x185]]
        %v2517 = vstv %s2516
        %v2518 = vmul.f32 %v2517, %v1514
        %v2519 = vmul.f32 %v2517, %v1519
        %v2520 = vmul.f32 %v2517, %v1524
        %v2521 = vmul.f32 %v2517, %v1529
        %v2522 = vmul.f32 %v2517, %v1534
        %v2523 = vmul.f32 %v2517, %v1539
        %v2524 = vmul.f32 %v2517, %v1544
        %v2525 = vmul.f32 %v2517, %v1549
        %v2526 = vmul.f32 %v2517, %v1554
        %v2527 = vmul.f32 %v2517, %v1559
        %v2528 = vmul.f32 %v2517, %v1564
        %v2529 = vmul.f32 %v2517, %v1569
        %v2530 = vmul.f32 %v2517, %v1574
        %v2531 = vmul.f32 %v2517, %v1579
        %v2532 = vmul.f32 %v2517, %v1584
        %v2533 = vmul.f32 %v2517, %v1589
        %v2534 = vadd.f32 %v2500, %v2518
        %v2535 = vadd.f32 %v2501, %v2519
        %v2536 = vadd.f32 %v2502, %v2520
        %v2537 = vadd.f32 %v2503, %v2521
        %v2538 = vadd.f32 %v2504, %v2522
        %v2539 = vadd.f32 %v2505, %v2523
        %v2540 = vadd.f32 %v2506, %v2524
        %v2541 = vadd.f32 %v2507, %v2525
        %v2542 = vadd.f32 %v2508, %v2526
        %v2543 = vadd.f32 %v2509, %v2527
        %v2544 = vadd.f32 %v2510, %v2528
        %v2545 = vadd.f32 %v2511, %v2529
        %v2546 = vadd.f32 %v2512, %v2530
        %v2547 = vadd.f32 %v2513, %v2531
        %v2548 = vadd.f32 %v2514, %v2532
        %v2549 = vadd.f32 %v2515, %v2533
        %v2550 = vmax.f32 %v2534, 0.0
        %v2551 = vmax.f32 %v2535, 0.0
        %v2552 = vmax.f32 %v2536, 0.0
        %v2553 = vmax.f32 %v2537, 0.0
        %v2554 = vmax.f32 %v2538, 0.0
        %v2555 = vmax.f32 %v2539, 0.0
        %v2556 = vmax.f32 %v2540, 0.0
        %v2557 = vmax.f32 %v2541, 0.0
        %v2558 = vmax.f32 %v2542, 0.0
        %v2559 = vmax.f32 %v2543, 0.0
        %v2560 = vmax.f32 %v2544, 0.0
        %v2561 = vmax.f32 %v2545, 0.0
        %v2562 = vmax.f32 %v2546, 0.0
        %v2563 = vmax.f32 %v2547, 0.0
        %v2564 = vmax.f32 %v2548, 0.0
        %v2565 = vmax.f32 %v2549, 0.0
        %s2566 = sld [smem:[#allocation16 + $0x3]]
        %v2567 = vstv %s2566
        %v2568 = vmul.f32 %v2567, %v2550
        %v2569 = vmul.f32 %v2567, %v2551
        %v2570 = vmul.f32 %v2567, %v2552
        %v2571 = vmul.f32 %v2567, %v2553
        %v2572 = vmul.f32 %v2567, %v2554
        %v2573 = vmul.f32 %v2567, %v2555
        %v2574 = vmul.f32 %v2567, %v2556
        %v2575 = vmul.f32 %v2567, %v2557
        %v2576 = vmul.f32 %v2567, %v2558
        %v2577 = vmul.f32 %v2567, %v2559
        %v2578 = vmul.f32 %v2567, %v2560
        %v2579 = vmul.f32 %v2567, %v2561
        %v2580 = vmul.f32 %v2567, %v2562
        %v2581 = vmul.f32 %v2567, %v2563
        %v2582 = vmul.f32 %v2567, %v2564
        %v2583 = vmul.f32 %v2567, %v2565
        %v2584 = vadd.f32 %v2328, %v2568
        %v2585 = vadd.f32 %v2329, %v2569
        %v2586 = vadd.f32 %v2330, %v2570
        %v2587 = vadd.f32 %v2331, %v2571
        %v2588 = vadd.f32 %v2332, %v2572
        %v2589 = vadd.f32 %v2333, %v2573
        %v2590 = vadd.f32 %v2334, %v2574
        %v2591 = vadd.f32 %v2335, %v2575
        %v2592 = vadd.f32 %v2336, %v2576
        %v2593 = vadd.f32 %v2337, %v2577
        %v2594 = vadd.f32 %v2338, %v2578
        %v2595 = vadd.f32 %v2339, %v2579
        %v2596 = vadd.f32 %v2340, %v2580
        %v2597 = vadd.f32 %v2341, %v2581
        %v2598 = vadd.f32 %v2342, %v2582
        %v2599 = vadd.f32 %v2343, %v2583
        %s2600 = sld [smem:[#allocation13 + $0x200]]
        %v2601 = vstv %s2600
        %v2602 = vmul.f32 %v2601, %v936
        %v2603 = vmul.f32 %v2601, %v941
        %v2604 = vmul.f32 %v2601, %v946
        %v2605 = vmul.f32 %v2601, %v951
        %v2606 = vmul.f32 %v2601, %v956
        %v2607 = vmul.f32 %v2601, %v961
        %v2608 = vmul.f32 %v2601, %v966
        %v2609 = vmul.f32 %v2601, %v971
        %v2610 = vmul.f32 %v2601, %v976
        %v2611 = vmul.f32 %v2601, %v981
        %v2612 = vmul.f32 %v2601, %v986
        %v2613 = vmul.f32 %v2601, %v991
        %v2614 = vmul.f32 %v2601, %v996
        %v2615 = vmul.f32 %v2601, %v1001
        %v2616 = vmul.f32 %v2601, %v1006
        %v2617 = vmul.f32 %v2601, %v1011
        %s2618 = sld [smem:[#allocation14 + $0x4]]
        %v2619 = vstv %s2618
        %v2620 = vadd.f32 %v2602, %v2619
        %v2621 = vadd.f32 %v2603, %v2619
        %v2622 = vadd.f32 %v2604, %v2619
        %v2623 = vadd.f32 %v2605, %v2619
        %v2624 = vadd.f32 %v2606, %v2619
        %v2625 = vadd.f32 %v2607, %v2619
        %v2626 = vadd.f32 %v2608, %v2619
        %v2627 = vadd.f32 %v2609, %v2619
        %v2628 = vadd.f32 %v2610, %v2619
        %v2629 = vadd.f32 %v2611, %v2619
        %v2630 = vadd.f32 %v2612, %v2619
        %v2631 = vadd.f32 %v2613, %v2619
        %v2632 = vadd.f32 %v2614, %v2619
        %v2633 = vadd.f32 %v2615, %v2619
        %v2634 = vadd.f32 %v2616, %v2619
        %v2635 = vadd.f32 %v2617, %v2619
        %s2636 = sld [smem:[#allocation13 + $0x201]]
        %v2637 = vstv %s2636
        %v2638 = vmul.f32 %v2637, %v1016
        %v2639 = vmul.f32 %v2637, %v1021
        %v2640 = vmul.f32 %v2637, %v1026
        %v2641 = vmul.f32 %v2637, %v1031
        %v2642 = vmul.f32 %v2637, %v1036
        %v2643 = vmul.f32 %v2637, %v1041
        %v2644 = vmul.f32 %v2637, %v1046
        %v2645 = vmul.f32 %v2637, %v1051
        %v2646 = vmul.f32 %v2637, %v1056
        %v2647 = vmul.f32 %v2637, %v1061
        %v2648 = vmul.f32 %v2637, %v1066
        %v2649 = vmul.f32 %v2637, %v1071
        %v2650 = vmul.f32 %v2637, %v1076
        %v2651 = vmul.f32 %v2637, %v1081
        %v2652 = vmul.f32 %v2637, %v1086
        %v2653 = vmul.f32 %v2637, %v1091
        %v2654 = vadd.f32 %v2620, %v2638
        %v2655 = vadd.f32 %v2621, %v2639
        %v2656 = vadd.f32 %v2622, %v2640
        %v2657 = vadd.f32 %v2623, %v2641
        %v2658 = vadd.f32 %v2624, %v2642
        %v2659 = vadd.f32 %v2625, %v2643
        %v2660 = vadd.f32 %v2626, %v2644
        %v2661 = vadd.f32 %v2627, %v2645
        %v2662 = vadd.f32 %v2628, %v2646
        %v2663 = vadd.f32 %v2629, %v2647
        %v2664 = vadd.f32 %v2630, %v2648
        %v2665 = vadd.f32 %v2631, %v2649
        %v2666 = vadd.f32 %v2632, %v2650
        %v2667 = vadd.f32 %v2633, %v2651
        %v2668 = vadd.f32 %v2634, %v2652
        %v2669 = vadd.f32 %v2635, %v2653
        %s2670 = sld [smem:[#allocation13 + $0x202]]
        %v2671 = vstv %s2670
        %v2672 = vmul.f32 %v2671, %v1273
        %v2673 = vmul.f32 %v2671, %v1278
        %v2674 = vmul.f32 %v2671, %v1283
        %v2675 = vmul.f32 %v2671, %v1288
        %v2676 = vmul.f32 %v2671, %v1293
        %v2677 = vmul.f32 %v2671, %v1298
        %v2678 = vmul.f32 %v2671, %v1303
        %v2679 = vmul.f32 %v2671, %v1308
        %v2680 = vmul.f32 %v2671, %v1313
        %v2681 = vmul.f32 %v2671, %v1318
        %v2682 = vmul.f32 %v2671, %v1323
        %v2683 = vmul.f32 %v2671, %v1328
        %v2684 = vmul.f32 %v2671, %v1333
        %v2685 = vmul.f32 %v2671, %v1338
        %v2686 = vmul.f32 %v2671, %v1343
        %v2687 = vmul.f32 %v2671, %v1348
        %v2688 = vadd.f32 %v2654, %v2672
        %v2689 = vadd.f32 %v2655, %v2673
        %v2690 = vadd.f32 %v2656, %v2674
        %v2691 = vadd.f32 %v2657, %v2675
        %v2692 = vadd.f32 %v2658, %v2676
        %v2693 = vadd.f32 %v2659, %v2677
        %v2694 = vadd.f32 %v2660, %v2678
        %v2695 = vadd.f32 %v2661, %v2679
        %v2696 = vadd.f32 %v2662, %v2680
        %v2697 = vadd.f32 %v2663, %v2681
        %v2698 = vadd.f32 %v2664, %v2682
        %v2699 = vadd.f32 %v2665, %v2683
        %v2700 = vadd.f32 %v2666, %v2684
        %v2701 = vadd.f32 %v2667, %v2685
        %v2702 = vadd.f32 %v2668, %v2686
        %v2703 = vadd.f32 %v2669, %v2687
        %s2704 = sld [smem:[#allocation13 + $0x203]]
        %v2705 = vstv %s2704
        %v2706 = vmul.f32 %v2705, %v1096
        %v2707 = vmul.f32 %v2705, %v1101
        %v2708 = vmul.f32 %v2705, %v1106
        %v2709 = vmul.f32 %v2705, %v1111
        %v2710 = vmul.f32 %v2705, %v1116
        %v2711 = vmul.f32 %v2705, %v1121
        %v2712 = vmul.f32 %v2705, %v1126
        %v2713 = vmul.f32 %v2705, %v1131
        %v2714 = vmul.f32 %v2705, %v1136
        %v2715 = vmul.f32 %v2705, %v1141
        %v2716 = vmul.f32 %v2705, %v1146
        %v2717 = vmul.f32 %v2705, %v1151
        %v2718 = vmul.f32 %v2705, %v1156
        %v2719 = vmul.f32 %v2705, %v1161
        %v2720 = vmul.f32 %v2705, %v1166
        %v2721 = vmul.f32 %v2705, %v1171
        %v2722 = vadd.f32 %v2688, %v2706
        %v2723 = vadd.f32 %v2689, %v2707
        %v2724 = vadd.f32 %v2690, %v2708
        %v2725 = vadd.f32 %v2691, %v2709
        %v2726 = vadd.f32 %v2692, %v2710
        %v2727 = vadd.f32 %v2693, %v2711
        %v2728 = vadd.f32 %v2694, %v2712
        %v2729 = vadd.f32 %v2695, %v2713
        %v2730 = vadd.f32 %v2696, %v2714
        %v2731 = vadd.f32 %v2697, %v2715
        %v2732 = vadd.f32 %v2698, %v2716
        %v2733 = vadd.f32 %v2699, %v2717
        %v2734 = vadd.f32 %v2700, %v2718
        %v2735 = vadd.f32 %v2701, %v2719
        %v2736 = vadd.f32 %v2702, %v2720
        %v2737 = vadd.f32 %v2703, %v2721
        %s2738 = sld [smem:[#allocation13 + $0x204]]
        %v2739 = vstv %s2738
        %v2740 = vmul.f32 %v2739, %v1353
        %v2741 = vmul.f32 %v2739, %v1358
        %v2742 = vmul.f32 %v2739, %v1363
        %v2743 = vmul.f32 %v2739, %v1368
        %v2744 = vmul.f32 %v2739, %v1373
        %v2745 = vmul.f32 %v2739, %v1378
        %v2746 = vmul.f32 %v2739, %v1383
        %v2747 = vmul.f32 %v2739, %v1388
        %v2748 = vmul.f32 %v2739, %v1393
        %v2749 = vmul.f32 %v2739, %v1398
        %v2750 = vmul.f32 %v2739, %v1403
        %v2751 = vmul.f32 %v2739, %v1408
        %v2752 = vmul.f32 %v2739, %v1413
        %v2753 = vmul.f32 %v2739, %v1418
        %v2754 = vmul.f32 %v2739, %v1423
        %v2755 = vmul.f32 %v2739, %v1428
        %v2756 = vadd.f32 %v2722, %v2740
        %v2757 = vadd.f32 %v2723, %v2741
        %v2758 = vadd.f32 %v2724, %v2742
        %v2759 = vadd.f32 %v2725, %v2743
        %v2760 = vadd.f32 %v2726, %v2744
        %v2761 = vadd.f32 %v2727, %v2745
        %v2762 = vadd.f32 %v2728, %v2746
        %v2763 = vadd.f32 %v2729, %v2747
        %v2764 = vadd.f32 %v2730, %v2748
        %v2765 = vadd.f32 %v2731, %v2749
        %v2766 = vadd.f32 %v2732, %v2750
        %v2767 = vadd.f32 %v2733, %v2751
        %v2768 = vadd.f32 %v2734, %v2752
        %v2769 = vadd.f32 %v2735, %v2753
        %v2770 = vadd.f32 %v2736, %v2754
        %v2771 = vadd.f32 %v2737, %v2755
        %s2772 = sld [smem:[#allocation13 + $0x205]]
        %v2773 = vstv %s2772
        %v2774 = vmul.f32 %v2773, %v1514
        %v2775 = vmul.f32 %v2773, %v1519
        %v2776 = vmul.f32 %v2773, %v1524
        %v2777 = vmul.f32 %v2773, %v1529
        %v2778 = vmul.f32 %v2773, %v1534
        %v2779 = vmul.f32 %v2773, %v1539
        %v2780 = vmul.f32 %v2773, %v1544
        %v2781 = vmul.f32 %v2773, %v1549
        %v2782 = vmul.f32 %v2773, %v1554
        %v2783 = vmul.f32 %v2773, %v1559
        %v2784 = vmul.f32 %v2773, %v1564
        %v2785 = vmul.f32 %v2773, %v1569
        %v2786 = vmul.f32 %v2773, %v1574
        %v2787 = vmul.f32 %v2773, %v1579
        %v2788 = vmul.f32 %v2773, %v1584
        %v2789 = vmul.f32 %v2773, %v1589
        %v2790 = vadd.f32 %v2756, %v2774
        %v2791 = vadd.f32 %v2757, %v2775
        %v2792 = vadd.f32 %v2758, %v2776
        %v2793 = vadd.f32 %v2759, %v2777
        %v2794 = vadd.f32 %v2760, %v2778
        %v2795 = vadd.f32 %v2761, %v2779
        %v2796 = vadd.f32 %v2762, %v2780
        %v2797 = vadd.f32 %v2763, %v2781
        %v2798 = vadd.f32 %v2764, %v2782
        %v2799 = vadd.f32 %v2765, %v2783
        %v2800 = vadd.f32 %v2766, %v2784
        %v2801 = vadd.f32 %v2767, %v2785
        %v2802 = vadd.f32 %v2768, %v2786
        %v2803 = vadd.f32 %v2769, %v2787
        %v2804 = vadd.f32 %v2770, %v2788
        %v2805 = vadd.f32 %v2771, %v2789
        %v2806 = vmax.f32 %v2790, 0.0
        %v2807 = vmax.f32 %v2791, 0.0
        %v2808 = vmax.f32 %v2792, 0.0
        %v2809 = vmax.f32 %v2793, 0.0
        %v2810 = vmax.f32 %v2794, 0.0
        %v2811 = vmax.f32 %v2795, 0.0
        %v2812 = vmax.f32 %v2796, 0.0
        %v2813 = vmax.f32 %v2797, 0.0
        %v2814 = vmax.f32 %v2798, 0.0
        %v2815 = vmax.f32 %v2799, 0.0
        %v2816 = vmax.f32 %v2800, 0.0
        %v2817 = vmax.f32 %v2801, 0.0
        %v2818 = vmax.f32 %v2802, 0.0
        %v2819 = vmax.f32 %v2803, 0.0
        %v2820 = vmax.f32 %v2804, 0.0
        %v2821 = vmax.f32 %v2805, 0.0
        %s2822 = sld [smem:[#allocation16 + $0x4]]
        %v2823 = vstv %s2822
        %v2824 = vmul.f32 %v2823, %v2806
        %v2825 = vmul.f32 %v2823, %v2807
        %v2826 = vmul.f32 %v2823, %v2808
        %v2827 = vmul.f32 %v2823, %v2809
        %v2828 = vmul.f32 %v2823, %v2810
        %v2829 = vmul.f32 %v2823, %v2811
        %v2830 = vmul.f32 %v2823, %v2812
        %v2831 = vmul.f32 %v2823, %v2813
        %v2832 = vmul.f32 %v2823, %v2814
        %v2833 = vmul.f32 %v2823, %v2815
        %v2834 = vmul.f32 %v2823, %v2816
        %v2835 = vmul.f32 %v2823, %v2817
        %v2836 = vmul.f32 %v2823, %v2818
        %v2837 = vmul.f32 %v2823, %v2819
        %v2838 = vmul.f32 %v2823, %v2820
        %v2839 = vmul.f32 %v2823, %v2821
        %v2840 = vadd.f32 %v2584, %v2824
        %v2841 = vadd.f32 %v2585, %v2825
        %v2842 = vadd.f32 %v2586, %v2826
        %v2843 = vadd.f32 %v2587, %v2827
        %v2844 = vadd.f32 %v2588, %v2828
        %v2845 = vadd.f32 %v2589, %v2829
        %v2846 = vadd.f32 %v2590, %v2830
        %v2847 = vadd.f32 %v2591, %v2831
        %v2848 = vadd.f32 %v2592, %v2832
        %v2849 = vadd.f32 %v2593, %v2833
        %v2850 = vadd.f32 %v2594, %v2834
        %v2851 = vadd.f32 %v2595, %v2835
        %v2852 = vadd.f32 %v2596, %v2836
        %v2853 = vadd.f32 %v2597, %v2837
        %v2854 = vadd.f32 %v2598, %v2838
        %v2855 = vadd.f32 %v2599, %v2839
        %s2856 = sld [smem:[#allocation13 + $0x280]]
        %v2857 = vstv %s2856
        %v2858 = vmul.f32 %v2857, %v936
        %v2859 = vmul.f32 %v2857, %v941
        %v2860 = vmul.f32 %v2857, %v946
        %v2861 = vmul.f32 %v2857, %v951
        %v2862 = vmul.f32 %v2857, %v956
        %v2863 = vmul.f32 %v2857, %v961
        %v2864 = vmul.f32 %v2857, %v966
        %v2865 = vmul.f32 %v2857, %v971
        %v2866 = vmul.f32 %v2857, %v976
        %v2867 = vmul.f32 %v2857, %v981
        %v2868 = vmul.f32 %v2857, %v986
        %v2869 = vmul.f32 %v2857, %v991
        %v2870 = vmul.f32 %v2857, %v996
        %v2871 = vmul.f32 %v2857, %v1001
        %v2872 = vmul.f32 %v2857, %v1006
        %v2873 = vmul.f32 %v2857, %v1011
        %s2874 = sld [smem:[#allocation14 + $0x5]]
        %v2875 = vstv %s2874
        %v2876 = vadd.f32 %v2858, %v2875
        %v2877 = vadd.f32 %v2859, %v2875
        %v2878 = vadd.f32 %v2860, %v2875
        %v2879 = vadd.f32 %v2861, %v2875
        %v2880 = vadd.f32 %v2862, %v2875
        %v2881 = vadd.f32 %v2863, %v2875
        %v2882 = vadd.f32 %v2864, %v2875
        %v2883 = vadd.f32 %v2865, %v2875
        %v2884 = vadd.f32 %v2866, %v2875
        %v2885 = vadd.f32 %v2867, %v2875
        %v2886 = vadd.f32 %v2868, %v2875
        %v2887 = vadd.f32 %v2869, %v2875
        %v2888 = vadd.f32 %v2870, %v2875
        %v2889 = vadd.f32 %v2871, %v2875
        %v2890 = vadd.f32 %v2872, %v2875
        %v2891 = vadd.f32 %v2873, %v2875
        %s2892 = sld [smem:[#allocation13 + $0x281]]
        %v2893 = vstv %s2892
        %v2894 = vmul.f32 %v2893, %v1016
        %v2895 = vmul.f32 %v2893, %v1021
        %v2896 = vmul.f32 %v2893, %v1026
        %v2897 = vmul.f32 %v2893, %v1031
        %v2898 = vmul.f32 %v2893, %v1036
        %v2899 = vmul.f32 %v2893, %v1041
        %v2900 = vmul.f32 %v2893, %v1046
        %v2901 = vmul.f32 %v2893, %v1051
        %v2902 = vmul.f32 %v2893, %v1056
        %v2903 = vmul.f32 %v2893, %v1061
        %v2904 = vmul.f32 %v2893, %v1066
        %v2905 = vmul.f32 %v2893, %v1071
        %v2906 = vmul.f32 %v2893, %v1076
        %v2907 = vmul.f32 %v2893, %v1081
        %v2908 = vmul.f32 %v2893, %v1086
        %v2909 = vmul.f32 %v2893, %v1091
        %v2910 = vadd.f32 %v2876, %v2894
        %v2911 = vadd.f32 %v2877, %v2895
        %v2912 = vadd.f32 %v2878, %v2896
        %v2913 = vadd.f32 %v2879, %v2897
        %v2914 = vadd.f32 %v2880, %v2898
        %v2915 = vadd.f32 %v2881, %v2899
        %v2916 = vadd.f32 %v2882, %v2900
        %v2917 = vadd.f32 %v2883, %v2901
        %v2918 = vadd.f32 %v2884, %v2902
        %v2919 = vadd.f32 %v2885, %v2903
        %v2920 = vadd.f32 %v2886, %v2904
        %v2921 = vadd.f32 %v2887, %v2905
        %v2922 = vadd.f32 %v2888, %v2906
        %v2923 = vadd.f32 %v2889, %v2907
        %v2924 = vadd.f32 %v2890, %v2908
        %v2925 = vadd.f32 %v2891, %v2909
        %s2926 = sld [smem:[#allocation13 + $0x282]]
        %v2927 = vstv %s2926
        %v2928 = vmul.f32 %v2927, %v1273
        %v2929 = vmul.f32 %v2927, %v1278
        %v2930 = vmul.f32 %v2927, %v1283
        %v2931 = vmul.f32 %v2927, %v1288
        %v2932 = vmul.f32 %v2927, %v1293
        %v2933 = vmul.f32 %v2927, %v1298
        %v2934 = vmul.f32 %v2927, %v1303
        %v2935 = vmul.f32 %v2927, %v1308
        %v2936 = vmul.f32 %v2927, %v1313
        %v2937 = vmul.f32 %v2927, %v1318
        %v2938 = vmul.f32 %v2927, %v1323
        %v2939 = vmul.f32 %v2927, %v1328
        %v2940 = vmul.f32 %v2927, %v1333
        %v2941 = vmul.f32 %v2927, %v1338
        %v2942 = vmul.f32 %v2927, %v1343
        %v2943 = vmul.f32 %v2927, %v1348
        %v2944 = vadd.f32 %v2910, %v2928
        %v2945 = vadd.f32 %v2911, %v2929
        %v2946 = vadd.f32 %v2912, %v2930
        %v2947 = vadd.f32 %v2913, %v2931
        %v2948 = vadd.f32 %v2914, %v2932
        %v2949 = vadd.f32 %v2915, %v2933
        %v2950 = vadd.f32 %v2916, %v2934
        %v2951 = vadd.f32 %v2917, %v2935
        %v2952 = vadd.f32 %v2918, %v2936
        %v2953 = vadd.f32 %v2919, %v2937
        %v2954 = vadd.f32 %v2920, %v2938
        %v2955 = vadd.f32 %v2921, %v2939
        %v2956 = vadd.f32 %v2922, %v2940
        %v2957 = vadd.f32 %v2923, %v2941
        %v2958 = vadd.f32 %v2924, %v2942
        %v2959 = vadd.f32 %v2925, %v2943
        %s2960 = sld [smem:[#allocation13 + $0x283]]
        %v2961 = vstv %s2960
        %v2962 = vmul.f32 %v2961, %v1096
        %v2963 = vmul.f32 %v2961, %v1101
        %v2964 = vmul.f32 %v2961, %v1106
        %v2965 = vmul.f32 %v2961, %v1111
        %v2966 = vmul.f32 %v2961, %v1116
        %v2967 = vmul.f32 %v2961, %v1121
        %v2968 = vmul.f32 %v2961, %v1126
        %v2969 = vmul.f32 %v2961, %v1131
        %v2970 = vmul.f32 %v2961, %v1136
        %v2971 = vmul.f32 %v2961, %v1141
        %v2972 = vmul.f32 %v2961, %v1146
        %v2973 = vmul.f32 %v2961, %v1151
        %v2974 = vmul.f32 %v2961, %v1156
        %v2975 = vmul.f32 %v2961, %v1161
        %v2976 = vmul.f32 %v2961, %v1166
        %v2977 = vmul.f32 %v2961, %v1171
        %v2978 = vadd.f32 %v2944, %v2962
        %v2979 = vadd.f32 %v2945, %v2963
        %v2980 = vadd.f32 %v2946, %v2964
        %v2981 = vadd.f32 %v2947, %v2965
        %v2982 = vadd.f32 %v2948, %v2966
        %v2983 = vadd.f32 %v2949, %v2967
        %v2984 = vadd.f32 %v2950, %v2968
        %v2985 = vadd.f32 %v2951, %v2969
        %v2986 = vadd.f32 %v2952, %v2970
        %v2987 = vadd.f32 %v2953, %v2971
        %v2988 = vadd.f32 %v2954, %v2972
        %v2989 = vadd.f32 %v2955, %v2973
        %v2990 = vadd.f32 %v2956, %v2974
        %v2991 = vadd.f32 %v2957, %v2975
        %v2992 = vadd.f32 %v2958, %v2976
        %v2993 = vadd.f32 %v2959, %v2977
        %s2994 = sld [smem:[#allocation13 + $0x284]]
        %v2995 = vstv %s2994
        %v2996 = vmul.f32 %v2995, %v1353
        %v2997 = vmul.f32 %v2995, %v1358
        %v2998 = vmul.f32 %v2995, %v1363
        %v2999 = vmul.f32 %v2995, %v1368
        %v3000 = vmul.f32 %v2995, %v1373
        %v3001 = vmul.f32 %v2995, %v1378
        %v3002 = vmul.f32 %v2995, %v1383
        %v3003 = vmul.f32 %v2995, %v1388
        %v3004 = vmul.f32 %v2995, %v1393
        %v3005 = vmul.f32 %v2995, %v1398
        %v3006 = vmul.f32 %v2995, %v1403
        %v3007 = vmul.f32 %v2995, %v1408
        %v3008 = vmul.f32 %v2995, %v1413
        %v3009 = vmul.f32 %v2995, %v1418
        %v3010 = vmul.f32 %v2995, %v1423
        %v3011 = vmul.f32 %v2995, %v1428
        %v3012 = vadd.f32 %v2978, %v2996
        %v3013 = vadd.f32 %v2979, %v2997
        %v3014 = vadd.f32 %v2980, %v2998
        %v3015 = vadd.f32 %v2981, %v2999
        %v3016 = vadd.f32 %v2982, %v3000
        %v3017 = vadd.f32 %v2983, %v3001
        %v3018 = vadd.f32 %v2984, %v3002
        %v3019 = vadd.f32 %v2985, %v3003
        %v3020 = vadd.f32 %v2986, %v3004
        %v3021 = vadd.f32 %v2987, %v3005
        %v3022 = vadd.f32 %v2988, %v3006
        %v3023 = vadd.f32 %v2989, %v3007
        %v3024 = vadd.f32 %v2990, %v3008
        %v3025 = vadd.f32 %v2991, %v3009
        %v3026 = vadd.f32 %v2992, %v3010
        %v3027 = vadd.f32 %v2993, %v3011
        %s3028 = sld [smem:[#allocation13 + $0x285]]
        %v3029 = vstv %s3028
        %v3030 = vmul.f32 %v3029, %v1514
        %v3031 = vmul.f32 %v3029, %v1519
        %v3032 = vmul.f32 %v3029, %v1524
        %v3033 = vmul.f32 %v3029, %v1529
        %v3034 = vmul.f32 %v3029, %v1534
        %v3035 = vmul.f32 %v3029, %v1539
        %v3036 = vmul.f32 %v3029, %v1544
        %v3037 = vmul.f32 %v3029, %v1549
        %v3038 = vmul.f32 %v3029, %v1554
        %v3039 = vmul.f32 %v3029, %v1559
        %v3040 = vmul.f32 %v3029, %v1564
        %v3041 = vmul.f32 %v3029, %v1569
        %v3042 = vmul.f32 %v3029, %v1574
        %v3043 = vmul.f32 %v3029, %v1579
        %v3044 = vmul.f32 %v3029, %v1584
        %v3045 = vmul.f32 %v3029, %v1589
        %v3046 = vadd.f32 %v3012, %v3030
        %v3047 = vadd.f32 %v3013, %v3031
        %v3048 = vadd.f32 %v3014, %v3032
        %v3049 = vadd.f32 %v3015, %v3033
        %v3050 = vadd.f32 %v3016, %v3034
        %v3051 = vadd.f32 %v3017, %v3035
        %v3052 = vadd.f32 %v3018, %v3036
        %v3053 = vadd.f32 %v3019, %v3037
        %v3054 = vadd.f32 %v3020, %v3038
        %v3055 = vadd.f32 %v3021, %v3039
        %v3056 = vadd.f32 %v3022, %v3040
        %v3057 = vadd.f32 %v3023, %v3041
        %v3058 = vadd.f32 %v3024, %v3042
        %v3059 = vadd.f32 %v3025, %v3043
        %v3060 = vadd.f32 %v3026, %v3044
        %v3061 = vadd.f32 %v3027, %v3045
        %v3062 = vmax.f32 %v3046, 0.0
        %v3063 = vmax.f32 %v3047, 0.0
        %v3064 = vmax.f32 %v3048, 0.0
        %v3065 = vmax.f32 %v3049, 0.0
        %v3066 = vmax.f32 %v3050, 0.0
        %v3067 = vmax.f32 %v3051, 0.0
        %v3068 = vmax.f32 %v3052, 0.0
        %v3069 = vmax.f32 %v3053, 0.0
        %v3070 = vmax.f32 %v3054, 0.0
        %v3071 = vmax.f32 %v3055, 0.0
        %v3072 = vmax.f32 %v3056, 0.0
        %v3073 = vmax.f32 %v3057, 0.0
        %v3074 = vmax.f32 %v3058, 0.0
        %v3075 = vmax.f32 %v3059, 0.0
        %v3076 = vmax.f32 %v3060, 0.0
        %v3077 = vmax.f32 %v3061, 0.0
        %s3078 = sld [smem:[#allocation16 + $0x5]]
        %v3079 = vstv %s3078
        %v3080 = vmul.f32 %v3079, %v3062
        %v3081 = vmul.f32 %v3079, %v3063
        %v3082 = vmul.f32 %v3079, %v3064
        %v3083 = vmul.f32 %v3079, %v3065
        %v3084 = vmul.f32 %v3079, %v3066
        %v3085 = vmul.f32 %v3079, %v3067
        %v3086 = vmul.f32 %v3079, %v3068
        %v3087 = vmul.f32 %v3079, %v3069
        %v3088 = vmul.f32 %v3079, %v3070
        %v3089 = vmul.f32 %v3079, %v3071
        %v3090 = vmul.f32 %v3079, %v3072
        %v3091 = vmul.f32 %v3079, %v3073
        %v3092 = vmul.f32 %v3079, %v3074
        %v3093 = vmul.f32 %v3079, %v3075
        %v3094 = vmul.f32 %v3079, %v3076
        %v3095 = vmul.f32 %v3079, %v3077
        %v3096 = vadd.f32 %v2840, %v3080
        %v3097 = vadd.f32 %v2841, %v3081
        %v3098 = vadd.f32 %v2842, %v3082
        %v3099 = vadd.f32 %v2843, %v3083
        %v3100 = vadd.f32 %v2844, %v3084
        %v3101 = vadd.f32 %v2845, %v3085
        %v3102 = vadd.f32 %v2846, %v3086
        %v3103 = vadd.f32 %v2847, %v3087
        %v3104 = vadd.f32 %v2848, %v3088
        %v3105 = vadd.f32 %v2849, %v3089
        %v3106 = vadd.f32 %v2850, %v3090
        %v3107 = vadd.f32 %v2851, %v3091
        %v3108 = vadd.f32 %v2852, %v3092
        %v3109 = vadd.f32 %v2853, %v3093
        %v3110 = vadd.f32 %v2854, %v3094
        %v3111 = vadd.f32 %v2855, %v3095
        %s3112 = sld [smem:[#allocation13 + $0x300]]
        %v3113 = vstv %s3112
        %v3114 = vmul.f32 %v3113, %v936
        %v3115 = vmul.f32 %v3113, %v941
        %v3116 = vmul.f32 %v3113, %v946
        %v3117 = vmul.f32 %v3113, %v951
        %v3118 = vmul.f32 %v3113, %v956
        %v3119 = vmul.f32 %v3113, %v961
        %v3120 = vmul.f32 %v3113, %v966
        %v3121 = vmul.f32 %v3113, %v971
        %v3122 = vmul.f32 %v3113, %v976
        %v3123 = vmul.f32 %v3113, %v981
        %v3124 = vmul.f32 %v3113, %v986
        %v3125 = vmul.f32 %v3113, %v991
        %v3126 = vmul.f32 %v3113, %v996
        %v3127 = vmul.f32 %v3113, %v1001
        %v3128 = vmul.f32 %v3113, %v1006
        %v3129 = vmul.f32 %v3113, %v1011
        %s3130 = sld [smem:[#allocation14 + $0x6]]
        %v3131 = vstv %s3130
        %v3132 = vadd.f32 %v3114, %v3131
        %v3133 = vadd.f32 %v3115, %v3131
        %v3134 = vadd.f32 %v3116, %v3131
        %v3135 = vadd.f32 %v3117, %v3131
        %v3136 = vadd.f32 %v3118, %v3131
        %v3137 = vadd.f32 %v3119, %v3131
        %v3138 = vadd.f32 %v3120, %v3131
        %v3139 = vadd.f32 %v3121, %v3131
        %v3140 = vadd.f32 %v3122, %v3131
        %v3141 = vadd.f32 %v3123, %v3131
        %v3142 = vadd.f32 %v3124, %v3131
        %v3143 = vadd.f32 %v3125, %v3131
        %v3144 = vadd.f32 %v3126, %v3131
        %v3145 = vadd.f32 %v3127, %v3131
        %v3146 = vadd.f32 %v3128, %v3131
        %v3147 = vadd.f32 %v3129, %v3131
        %s3148 = sld [smem:[#allocation13 + $0x301]]
        %v3149 = vstv %s3148
        %v3150 = vmul.f32 %v3149, %v1016
        %v3151 = vmul.f32 %v3149, %v1021
        %v3152 = vmul.f32 %v3149, %v1026
        %v3153 = vmul.f32 %v3149, %v1031
        %v3154 = vmul.f32 %v3149, %v1036
        %v3155 = vmul.f32 %v3149, %v1041
        %v3156 = vmul.f32 %v3149, %v1046
        %v3157 = vmul.f32 %v3149, %v1051
        %v3158 = vmul.f32 %v3149, %v1056
        %v3159 = vmul.f32 %v3149, %v1061
        %v3160 = vmul.f32 %v3149, %v1066
        %v3161 = vmul.f32 %v3149, %v1071
        %v3162 = vmul.f32 %v3149, %v1076
        %v3163 = vmul.f32 %v3149, %v1081
        %v3164 = vmul.f32 %v3149, %v1086
        %v3165 = vmul.f32 %v3149, %v1091
        %v3166 = vadd.f32 %v3132, %v3150
        %v3167 = vadd.f32 %v3133, %v3151
        %v3168 = vadd.f32 %v3134, %v3152
        %v3169 = vadd.f32 %v3135, %v3153
        %v3170 = vadd.f32 %v3136, %v3154
        %v3171 = vadd.f32 %v3137, %v3155
        %v3172 = vadd.f32 %v3138, %v3156
        %v3173 = vadd.f32 %v3139, %v3157
        %v3174 = vadd.f32 %v3140, %v3158
        %v3175 = vadd.f32 %v3141, %v3159
        %v3176 = vadd.f32 %v3142, %v3160
        %v3177 = vadd.f32 %v3143, %v3161
        %v3178 = vadd.f32 %v3144, %v3162
        %v3179 = vadd.f32 %v3145, %v3163
        %v3180 = vadd.f32 %v3146, %v3164
        %v3181 = vadd.f32 %v3147, %v3165
        %s3182 = sld [smem:[#allocation13 + $0x302]]
        %v3183 = vstv %s3182
        %v3184 = vmul.f32 %v3183, %v1273
        %v3185 = vmul.f32 %v3183, %v1278
        %v3186 = vmul.f32 %v3183, %v1283
        %v3187 = vmul.f32 %v3183, %v1288
        %v3188 = vmul.f32 %v3183, %v1293
        %v3189 = vmul.f32 %v3183, %v1298
        %v3190 = vmul.f32 %v3183, %v1303
        %v3191 = vmul.f32 %v3183, %v1308
        %v3192 = vmul.f32 %v3183, %v1313
        %v3193 = vmul.f32 %v3183, %v1318
        %v3194 = vmul.f32 %v3183, %v1323
        %v3195 = vmul.f32 %v3183, %v1328
        %v3196 = vmul.f32 %v3183, %v1333
        %v3197 = vmul.f32 %v3183, %v1338
        %v3198 = vmul.f32 %v3183, %v1343
        %v3199 = vmul.f32 %v3183, %v1348
        %v3200 = vadd.f32 %v3166, %v3184
        %v3201 = vadd.f32 %v3167, %v3185
        %v3202 = vadd.f32 %v3168, %v3186
        %v3203 = vadd.f32 %v3169, %v3187
        %v3204 = vadd.f32 %v3170, %v3188
        %v3205 = vadd.f32 %v3171, %v3189
        %v3206 = vadd.f32 %v3172, %v3190
        %v3207 = vadd.f32 %v3173, %v3191
        %v3208 = vadd.f32 %v3174, %v3192
        %v3209 = vadd.f32 %v3175, %v3193
        %v3210 = vadd.f32 %v3176, %v3194
        %v3211 = vadd.f32 %v3177, %v3195
        %v3212 = vadd.f32 %v3178, %v3196
        %v3213 = vadd.f32 %v3179, %v3197
        %v3214 = vadd.f32 %v3180, %v3198
        %v3215 = vadd.f32 %v3181, %v3199
        %s3216 = sld [smem:[#allocation13 + $0x303]]
        %v3217 = vstv %s3216
        %v3218 = vmul.f32 %v3217, %v1096
        %v3219 = vmul.f32 %v3217, %v1101
        %v3220 = vmul.f32 %v3217, %v1106
        %v3221 = vmul.f32 %v3217, %v1111
        %v3222 = vmul.f32 %v3217, %v1116
        %v3223 = vmul.f32 %v3217, %v1121
        %v3224 = vmul.f32 %v3217, %v1126
        %v3225 = vmul.f32 %v3217, %v1131
        %v3226 = vmul.f32 %v3217, %v1136
        %v3227 = vmul.f32 %v3217, %v1141
        %v3228 = vmul.f32 %v3217, %v1146
        %v3229 = vmul.f32 %v3217, %v1151
        %v3230 = vmul.f32 %v3217, %v1156
        %v3231 = vmul.f32 %v3217, %v1161
        %v3232 = vmul.f32 %v3217, %v1166
        %v3233 = vmul.f32 %v3217, %v1171
        %v3234 = vadd.f32 %v3200, %v3218
        %v3235 = vadd.f32 %v3201, %v3219
        %v3236 = vadd.f32 %v3202, %v3220
        %v3237 = vadd.f32 %v3203, %v3221
        %v3238 = vadd.f32 %v3204, %v3222
        %v3239 = vadd.f32 %v3205, %v3223
        %v3240 = vadd.f32 %v3206, %v3224
        %v3241 = vadd.f32 %v3207, %v3225
        %v3242 = vadd.f32 %v3208, %v3226
        %v3243 = vadd.f32 %v3209, %v3227
        %v3244 = vadd.f32 %v3210, %v3228
        %v3245 = vadd.f32 %v3211, %v3229
        %v3246 = vadd.f32 %v3212, %v3230
        %v3247 = vadd.f32 %v3213, %v3231
        %v3248 = vadd.f32 %v3214, %v3232
        %v3249 = vadd.f32 %v3215, %v3233
        %s3250 = sld [smem:[#allocation13 + $0x304]]
        %v3251 = vstv %s3250
        %v3252 = vmul.f32 %v3251, %v1353
        %v3253 = vmul.f32 %v3251, %v1358
        %v3254 = vmul.f32 %v3251, %v1363
        %v3255 = vmul.f32 %v3251, %v1368
        %v3256 = vmul.f32 %v3251, %v1373
        %v3257 = vmul.f32 %v3251, %v1378
        %v3258 = vmul.f32 %v3251, %v1383
        %v3259 = vmul.f32 %v3251, %v1388
        %v3260 = vmul.f32 %v3251, %v1393
        %v3261 = vmul.f32 %v3251, %v1398
        %v3262 = vmul.f32 %v3251, %v1403
        %v3263 = vmul.f32 %v3251, %v1408
        %v3264 = vmul.f32 %v3251, %v1413
        %v3265 = vmul.f32 %v3251, %v1418
        %v3266 = vmul.f32 %v3251, %v1423
        %v3267 = vmul.f32 %v3251, %v1428
        %v3268 = vadd.f32 %v3234, %v3252
        %v3269 = vadd.f32 %v3235, %v3253
        %v3270 = vadd.f32 %v3236, %v3254
        %v3271 = vadd.f32 %v3237, %v3255
        %v3272 = vadd.f32 %v3238, %v3256
        %v3273 = vadd.f32 %v3239, %v3257
        %v3274 = vadd.f32 %v3240, %v3258
        %v3275 = vadd.f32 %v3241, %v3259
        %v3276 = vadd.f32 %v3242, %v3260
        %v3277 = vadd.f32 %v3243, %v3261
        %v3278 = vadd.f32 %v3244, %v3262
        %v3279 = vadd.f32 %v3245, %v3263
        %v3280 = vadd.f32 %v3246, %v3264
        %v3281 = vadd.f32 %v3247, %v3265
        %v3282 = vadd.f32 %v3248, %v3266
        %v3283 = vadd.f32 %v3249, %v3267
        %s3284 = sld [smem:[#allocation13 + $0x305]]
        %v3285 = vstv %s3284
        %v3286 = vmul.f32 %v3285, %v1514
        %v3287 = vmul.f32 %v3285, %v1519
        %v3288 = vmul.f32 %v3285, %v1524
        %v3289 = vmul.f32 %v3285, %v1529
        %v3290 = vmul.f32 %v3285, %v1534
        %v3291 = vmul.f32 %v3285, %v1539
        %v3292 = vmul.f32 %v3285, %v1544
        %v3293 = vmul.f32 %v3285, %v1549
        %v3294 = vmul.f32 %v3285, %v1554
        %v3295 = vmul.f32 %v3285, %v1559
        %v3296 = vmul.f32 %v3285, %v1564
        %v3297 = vmul.f32 %v3285, %v1569
        %v3298 = vmul.f32 %v3285, %v1574
        %v3299 = vmul.f32 %v3285, %v1579
        %v3300 = vmul.f32 %v3285, %v1584
        %v3301 = vmul.f32 %v3285, %v1589
        %v3302 = vadd.f32 %v3268, %v3286
        %v3303 = vadd.f32 %v3269, %v3287
        %v3304 = vadd.f32 %v3270, %v3288
        %v3305 = vadd.f32 %v3271, %v3289
        %v3306 = vadd.f32 %v3272, %v3290
        %v3307 = vadd.f32 %v3273, %v3291
        %v3308 = vadd.f32 %v3274, %v3292
        %v3309 = vadd.f32 %v3275, %v3293
        %v3310 = vadd.f32 %v3276, %v3294
        %v3311 = vadd.f32 %v3277, %v3295
        %v3312 = vadd.f32 %v3278, %v3296
        %v3313 = vadd.f32 %v3279, %v3297
        %v3314 = vadd.f32 %v3280, %v3298
        %v3315 = vadd.f32 %v3281, %v3299
        %v3316 = vadd.f32 %v3282, %v3300
        %v3317 = vadd.f32 %v3283, %v3301
        %v3318 = vmax.f32 %v3302, 0.0
        %v3319 = vmax.f32 %v3303, 0.0
        %v3320 = vmax.f32 %v3304, 0.0
        %v3321 = vmax.f32 %v3305, 0.0
        %v3322 = vmax.f32 %v3306, 0.0
        %v3323 = vmax.f32 %v3307, 0.0
        %v3324 = vmax.f32 %v3308, 0.0
        %v3325 = vmax.f32 %v3309, 0.0
        %v3326 = vmax.f32 %v3310, 0.0
        %v3327 = vmax.f32 %v3311, 0.0
        %v3328 = vmax.f32 %v3312, 0.0
        %v3329 = vmax.f32 %v3313, 0.0
        %v3330 = vmax.f32 %v3314, 0.0
        %v3331 = vmax.f32 %v3315, 0.0
        %v3332 = vmax.f32 %v3316, 0.0
        %v3333 = vmax.f32 %v3317, 0.0
        %s3334 = sld [smem:[#allocation16 + $0x6]]
        %v3335 = vstv %s3334
        %v3336 = vmul.f32 %v3335, %v3318
        %v3337 = vmul.f32 %v3335, %v3319
        %v3338 = vmul.f32 %v3335, %v3320
        %v3339 = vmul.f32 %v3335, %v3321
        %v3340 = vmul.f32 %v3335, %v3322
        %v3341 = vmul.f32 %v3335, %v3323
        %v3342 = vmul.f32 %v3335, %v3324
        %v3343 = vmul.f32 %v3335, %v3325
        %v3344 = vmul.f32 %v3335, %v3326
        %v3345 = vmul.f32 %v3335, %v3327
        %v3346 = vmul.f32 %v3335, %v3328
        %v3347 = vmul.f32 %v3335, %v3329
        %v3348 = vmul.f32 %v3335, %v3330
        %v3349 = vmul.f32 %v3335, %v3331
        %v3350 = vmul.f32 %v3335, %v3332
        %v3351 = vmul.f32 %v3335, %v3333
        %v3352 = vadd.f32 %v3096, %v3336
        %v3353 = vadd.f32 %v3097, %v3337
        %v3354 = vadd.f32 %v3098, %v3338
        %v3355 = vadd.f32 %v3099, %v3339
        %v3356 = vadd.f32 %v3100, %v3340
        %v3357 = vadd.f32 %v3101, %v3341
        %v3358 = vadd.f32 %v3102, %v3342
        %v3359 = vadd.f32 %v3103, %v3343
        %v3360 = vadd.f32 %v3104, %v3344
        %v3361 = vadd.f32 %v3105, %v3345
        %v3362 = vadd.f32 %v3106, %v3346
        %v3363 = vadd.f32 %v3107, %v3347
        %v3364 = vadd.f32 %v3108, %v3348
        %v3365 = vadd.f32 %v3109, %v3349
        %v3366 = vadd.f32 %v3110, %v3350
        %v3367 = vadd.f32 %v3111, %v3351
        %s3368 = sld [smem:[#allocation13 + $0x380]]
        %v3369 = vstv %s3368
        %v3370 = vmul.f32 %v3369, %v936
        %v3371 = vmul.f32 %v3369, %v941
        %v3372 = vmul.f32 %v3369, %v946
        %v3373 = vmul.f32 %v3369, %v951
        %v3374 = vmul.f32 %v3369, %v956
        %v3375 = vmul.f32 %v3369, %v961
        %v3376 = vmul.f32 %v3369, %v966
        %v3377 = vmul.f32 %v3369, %v971
        %v3378 = vmul.f32 %v3369, %v976
        %v3379 = vmul.f32 %v3369, %v981
        %v3380 = vmul.f32 %v3369, %v986
        %v3381 = vmul.f32 %v3369, %v991
        %v3382 = vmul.f32 %v3369, %v996
        %v3383 = vmul.f32 %v3369, %v1001
        %v3384 = vmul.f32 %v3369, %v1006
        %v3385 = vmul.f32 %v3369, %v1011
        %s3386 = sld [smem:[#allocation14 + $0x7]]
        %v3387 = vstv %s3386
        %v3388 = vadd.f32 %v3370, %v3387
        %v3389 = vadd.f32 %v3371, %v3387
        %v3390 = vadd.f32 %v3372, %v3387
        %v3391 = vadd.f32 %v3373, %v3387
        %v3392 = vadd.f32 %v3374, %v3387
        %v3393 = vadd.f32 %v3375, %v3387
        %v3394 = vadd.f32 %v3376, %v3387
        %v3395 = vadd.f32 %v3377, %v3387
        %v3396 = vadd.f32 %v3378, %v3387
        %v3397 = vadd.f32 %v3379, %v3387
        %v3398 = vadd.f32 %v3380, %v3387
        %v3399 = vadd.f32 %v3381, %v3387
        %v3400 = vadd.f32 %v3382, %v3387
        %v3401 = vadd.f32 %v3383, %v3387
        %v3402 = vadd.f32 %v3384, %v3387
        %v3403 = vadd.f32 %v3385, %v3387
        %s3404 = sld [smem:[#allocation13 + $0x381]]
        %v3405 = vstv %s3404
        %v3406 = vmul.f32 %v3405, %v1016
        %v3407 = vmul.f32 %v3405, %v1021
        %v3408 = vmul.f32 %v3405, %v1026
        %v3409 = vmul.f32 %v3405, %v1031
        %v3410 = vmul.f32 %v3405, %v1036
        %v3411 = vmul.f32 %v3405, %v1041
        %v3412 = vmul.f32 %v3405, %v1046
        %v3413 = vmul.f32 %v3405, %v1051
        %v3414 = vmul.f32 %v3405, %v1056
        %v3415 = vmul.f32 %v3405, %v1061
        %v3416 = vmul.f32 %v3405, %v1066
        %v3417 = vmul.f32 %v3405, %v1071
        %v3418 = vmul.f32 %v3405, %v1076
        %v3419 = vmul.f32 %v3405, %v1081
        %v3420 = vmul.f32 %v3405, %v1086
        %v3421 = vmul.f32 %v3405, %v1091
        %v3422 = vadd.f32 %v3388, %v3406
        %v3423 = vadd.f32 %v3389, %v3407
        %v3424 = vadd.f32 %v3390, %v3408
        %v3425 = vadd.f32 %v3391, %v3409
        %v3426 = vadd.f32 %v3392, %v3410
        %v3427 = vadd.f32 %v3393, %v3411
        %v3428 = vadd.f32 %v3394, %v3412
        %v3429 = vadd.f32 %v3395, %v3413
        %v3430 = vadd.f32 %v3396, %v3414
        %v3431 = vadd.f32 %v3397, %v3415
        %v3432 = vadd.f32 %v3398, %v3416
        %v3433 = vadd.f32 %v3399, %v3417
        %v3434 = vadd.f32 %v3400, %v3418
        %v3435 = vadd.f32 %v3401, %v3419
        %v3436 = vadd.f32 %v3402, %v3420
        %v3437 = vadd.f32 %v3403, %v3421
        %s3438 = sld [smem:[#allocation13 + $0x382]]
        %v3439 = vstv %s3438
        %v3440 = vmul.f32 %v3439, %v1273
        %v3441 = vmul.f32 %v3439, %v1278
        %v3442 = vmul.f32 %v3439, %v1283
        %v3443 = vmul.f32 %v3439, %v1288
        %v3444 = vmul.f32 %v3439, %v1293
        %v3445 = vmul.f32 %v3439, %v1298
        %v3446 = vmul.f32 %v3439, %v1303
        %v3447 = vmul.f32 %v3439, %v1308
        %v3448 = vmul.f32 %v3439, %v1313
        %v3449 = vmul.f32 %v3439, %v1318
        %v3450 = vmul.f32 %v3439, %v1323
        %v3451 = vmul.f32 %v3439, %v1328
        %v3452 = vmul.f32 %v3439, %v1333
        %v3453 = vmul.f32 %v3439, %v1338
        %v3454 = vmul.f32 %v3439, %v1343
        %v3455 = vmul.f32 %v3439, %v1348
        %v3456 = vadd.f32 %v3422, %v3440
        %v3457 = vadd.f32 %v3423, %v3441
        %v3458 = vadd.f32 %v3424, %v3442
        %v3459 = vadd.f32 %v3425, %v3443
        %v3460 = vadd.f32 %v3426, %v3444
        %v3461 = vadd.f32 %v3427, %v3445
        %v3462 = vadd.f32 %v3428, %v3446
        %v3463 = vadd.f32 %v3429, %v3447
        %v3464 = vadd.f32 %v3430, %v3448
        %v3465 = vadd.f32 %v3431, %v3449
        %v3466 = vadd.f32 %v3432, %v3450
        %v3467 = vadd.f32 %v3433, %v3451
        %v3468 = vadd.f32 %v3434, %v3452
        %v3469 = vadd.f32 %v3435, %v3453
        %v3470 = vadd.f32 %v3436, %v3454
        %v3471 = vadd.f32 %v3437, %v3455
        %s3472 = sld [smem:[#allocation13 + $0x383]]
        %v3473 = vstv %s3472
        %v3474 = vmul.f32 %v3473, %v1096
        %v3475 = vmul.f32 %v3473, %v1101
        %v3476 = vmul.f32 %v3473, %v1106
        %v3477 = vmul.f32 %v3473, %v1111
        %v3478 = vmul.f32 %v3473, %v1116
        %v3479 = vmul.f32 %v3473, %v1121
        %v3480 = vmul.f32 %v3473, %v1126
        %v3481 = vmul.f32 %v3473, %v1131
        %v3482 = vmul.f32 %v3473, %v1136
        %v3483 = vmul.f32 %v3473, %v1141
        %v3484 = vmul.f32 %v3473, %v1146
        %v3485 = vmul.f32 %v3473, %v1151
        %v3486 = vmul.f32 %v3473, %v1156
        %v3487 = vmul.f32 %v3473, %v1161
        %v3488 = vmul.f32 %v3473, %v1166
        %v3489 = vmul.f32 %v3473, %v1171
        %v3490 = vadd.f32 %v3456, %v3474
        %v3491 = vadd.f32 %v3457, %v3475
        %v3492 = vadd.f32 %v3458, %v3476
        %v3493 = vadd.f32 %v3459, %v3477
        %v3494 = vadd.f32 %v3460, %v3478
        %v3495 = vadd.f32 %v3461, %v3479
        %v3496 = vadd.f32 %v3462, %v3480
        %v3497 = vadd.f32 %v3463, %v3481
        %v3498 = vadd.f32 %v3464, %v3482
        %v3499 = vadd.f32 %v3465, %v3483
        %v3500 = vadd.f32 %v3466, %v3484
        %v3501 = vadd.f32 %v3467, %v3485
        %v3502 = vadd.f32 %v3468, %v3486
        %v3503 = vadd.f32 %v3469, %v3487
        %v3504 = vadd.f32 %v3470, %v3488
        %v3505 = vadd.f32 %v3471, %v3489
        %s3506 = sld [smem:[#allocation13 + $0x384]]
        %v3507 = vstv %s3506
        %v3508 = vmul.f32 %v3507, %v1353
        %v3509 = vmul.f32 %v3507, %v1358
        %v3510 = vmul.f32 %v3507, %v1363
        %v3511 = vmul.f32 %v3507, %v1368
        %v3512 = vmul.f32 %v3507, %v1373
        %v3513 = vmul.f32 %v3507, %v1378
        %v3514 = vmul.f32 %v3507, %v1383
        %v3515 = vmul.f32 %v3507, %v1388
        %v3516 = vmul.f32 %v3507, %v1393
        %v3517 = vmul.f32 %v3507, %v1398
        %v3518 = vmul.f32 %v3507, %v1403
        %v3519 = vmul.f32 %v3507, %v1408
        %v3520 = vmul.f32 %v3507, %v1413
        %v3521 = vmul.f32 %v3507, %v1418
        %v3522 = vmul.f32 %v3507, %v1423
        %v3523 = vmul.f32 %v3507, %v1428
        %v3524 = vadd.f32 %v3490, %v3508
        %v3525 = vadd.f32 %v3491, %v3509
        %v3526 = vadd.f32 %v3492, %v3510
        %v3527 = vadd.f32 %v3493, %v3511
        %v3528 = vadd.f32 %v3494, %v3512
        %v3529 = vadd.f32 %v3495, %v3513
        %v3530 = vadd.f32 %v3496, %v3514
        %v3531 = vadd.f32 %v3497, %v3515
        %v3532 = vadd.f32 %v3498, %v3516
        %v3533 = vadd.f32 %v3499, %v3517
        %v3534 = vadd.f32 %v3500, %v3518
        %v3535 = vadd.f32 %v3501, %v3519
        %v3536 = vadd.f32 %v3502, %v3520
        %v3537 = vadd.f32 %v3503, %v3521
        %v3538 = vadd.f32 %v3504, %v3522
        %v3539 = vadd.f32 %v3505, %v3523
        %s3540 = sld [smem:[#allocation13 + $0x385]]
        %v3541 = vstv %s3540
        %v3542 = vmul.f32 %v3541, %v1514
        %v3543 = vmul.f32 %v3541, %v1519
        %v3544 = vmul.f32 %v3541, %v1524
        %v3545 = vmul.f32 %v3541, %v1529
        %v3546 = vmul.f32 %v3541, %v1534
        %v3547 = vmul.f32 %v3541, %v1539
        %v3548 = vmul.f32 %v3541, %v1544
        %v3549 = vmul.f32 %v3541, %v1549
        %v3550 = vmul.f32 %v3541, %v1554
        %v3551 = vmul.f32 %v3541, %v1559
        %v3552 = vmul.f32 %v3541, %v1564
        %v3553 = vmul.f32 %v3541, %v1569
        %v3554 = vmul.f32 %v3541, %v1574
        %v3555 = vmul.f32 %v3541, %v1579
        %v3556 = vmul.f32 %v3541, %v1584
        %v3557 = vmul.f32 %v3541, %v1589
        %v3558 = vadd.f32 %v3524, %v3542
        %v3559 = vadd.f32 %v3525, %v3543
        %v3560 = vadd.f32 %v3526, %v3544
        %v3561 = vadd.f32 %v3527, %v3545
        %v3562 = vadd.f32 %v3528, %v3546
        %v3563 = vadd.f32 %v3529, %v3547
        %v3564 = vadd.f32 %v3530, %v3548
        %v3565 = vadd.f32 %v3531, %v3549
        %v3566 = vadd.f32 %v3532, %v3550
        %v3567 = vadd.f32 %v3533, %v3551
        %v3568 = vadd.f32 %v3534, %v3552
        %v3569 = vadd.f32 %v3535, %v3553
        %v3570 = vadd.f32 %v3536, %v3554
        %v3571 = vadd.f32 %v3537, %v3555
        %v3572 = vadd.f32 %v3538, %v3556
        %v3573 = vadd.f32 %v3539, %v3557
        %v3574 = vmax.f32 %v3558, 0.0
        %v3575 = vmax.f32 %v3559, 0.0
        %v3576 = vmax.f32 %v3560, 0.0
        %v3577 = vmax.f32 %v3561, 0.0
        %v3578 = vmax.f32 %v3562, 0.0
        %v3579 = vmax.f32 %v3563, 0.0
        %v3580 = vmax.f32 %v3564, 0.0
        %v3581 = vmax.f32 %v3565, 0.0
        %v3582 = vmax.f32 %v3566, 0.0
        %v3583 = vmax.f32 %v3567, 0.0
        %v3584 = vmax.f32 %v3568, 0.0
        %v3585 = vmax.f32 %v3569, 0.0
        %v3586 = vmax.f32 %v3570, 0.0
        %v3587 = vmax.f32 %v3571, 0.0
        %v3588 = vmax.f32 %v3572, 0.0
        %v3589 = vmax.f32 %v3573, 0.0
        %s3590 = sld [smem:[#allocation16 + $0x7]]
        %v3591 = vstv %s3590
        %v3592 = vmul.f32 %v3591, %v3574
        %v3593 = vmul.f32 %v3591, %v3575
        %v3594 = vmul.f32 %v3591, %v3576
        %v3595 = vmul.f32 %v3591, %v3577
        %v3596 = vmul.f32 %v3591, %v3578
        %v3597 = vmul.f32 %v3591, %v3579
        %v3598 = vmul.f32 %v3591, %v3580
        %v3599 = vmul.f32 %v3591, %v3581
        %v3600 = vmul.f32 %v3591, %v3582
        %v3601 = vmul.f32 %v3591, %v3583
        %v3602 = vmul.f32 %v3591, %v3584
        %v3603 = vmul.f32 %v3591, %v3585
        %v3604 = vmul.f32 %v3591, %v3586
        %v3605 = vmul.f32 %v3591, %v3587
        %v3606 = vmul.f32 %v3591, %v3588
        %v3607 = vmul.f32 %v3591, %v3589
        %v3608 = vadd.f32 %v3352, %v3592
        %v3609 = vadd.f32 %v3353, %v3593
        %v3610 = vadd.f32 %v3354, %v3594
        %v3611 = vadd.f32 %v3355, %v3595
        %v3612 = vadd.f32 %v3356, %v3596
        %v3613 = vadd.f32 %v3357, %v3597
        %v3614 = vadd.f32 %v3358, %v3598
        %v3615 = vadd.f32 %v3359, %v3599
        %v3616 = vadd.f32 %v3360, %v3600
        %v3617 = vadd.f32 %v3361, %v3601
        %v3618 = vadd.f32 %v3362, %v3602
        %v3619 = vadd.f32 %v3363, %v3603
        %v3620 = vadd.f32 %v3364, %v3604
        %v3621 = vadd.f32 %v3365, %v3605
        %v3622 = vadd.f32 %v3366, %v3606
        %v3623 = vadd.f32 %v3367, %v3607
        %s3624 = sld [smem:[#allocation13 + $0x400]]
        %v3625 = vstv %s3624
        %v3626 = vmul.f32 %v3625, %v936
        %v3627 = vmul.f32 %v3625, %v941
        %v3628 = vmul.f32 %v3625, %v946
        %v3629 = vmul.f32 %v3625, %v951
        %v3630 = vmul.f32 %v3625, %v956
        %v3631 = vmul.f32 %v3625, %v961
        %v3632 = vmul.f32 %v3625, %v966
        %v3633 = vmul.f32 %v3625, %v971
        %v3634 = vmul.f32 %v3625, %v976
        %v3635 = vmul.f32 %v3625, %v981
        %v3636 = vmul.f32 %v3625, %v986
        %v3637 = vmul.f32 %v3625, %v991
        %v3638 = vmul.f32 %v3625, %v996
        %v3639 = vmul.f32 %v3625, %v1001
        %v3640 = vmul.f32 %v3625, %v1006
        %v3641 = vmul.f32 %v3625, %v1011
        %s3642 = sld [smem:[#allocation14 + $0x8]]
        %v3643 = vstv %s3642
        %v3644 = vadd.f32 %v3626, %v3643
        %v3645 = vadd.f32 %v3627, %v3643
        %v3646 = vadd.f32 %v3628, %v3643
        %v3647 = vadd.f32 %v3629, %v3643
        %v3648 = vadd.f32 %v3630, %v3643
        %v3649 = vadd.f32 %v3631, %v3643
        %v3650 = vadd.f32 %v3632, %v3643
        %v3651 = vadd.f32 %v3633, %v3643
        %v3652 = vadd.f32 %v3634, %v3643
        %v3653 = vadd.f32 %v3635, %v3643
        %v3654 = vadd.f32 %v3636, %v3643
        %v3655 = vadd.f32 %v3637, %v3643
        %v3656 = vadd.f32 %v3638, %v3643
        %v3657 = vadd.f32 %v3639, %v3643
        %v3658 = vadd.f32 %v3640, %v3643
        %v3659 = vadd.f32 %v3641, %v3643
        %s3660 = sld [smem:[#allocation13 + $0x401]]
        %v3661 = vstv %s3660
        %v3662 = vmul.f32 %v3661, %v1016
        %v3663 = vmul.f32 %v3661, %v1021
        %v3664 = vmul.f32 %v3661, %v1026
        %v3665 = vmul.f32 %v3661, %v1031
        %v3666 = vmul.f32 %v3661, %v1036
        %v3667 = vmul.f32 %v3661, %v1041
        %v3668 = vmul.f32 %v3661, %v1046
        %v3669 = vmul.f32 %v3661, %v1051
        %v3670 = vmul.f32 %v3661, %v1056
        %v3671 = vmul.f32 %v3661, %v1061
        %v3672 = vmul.f32 %v3661, %v1066
        %v3673 = vmul.f32 %v3661, %v1071
        %v3674 = vmul.f32 %v3661, %v1076
        %v3675 = vmul.f32 %v3661, %v1081
        %v3676 = vmul.f32 %v3661, %v1086
        %v3677 = vmul.f32 %v3661, %v1091
        %v3678 = vadd.f32 %v3644, %v3662
        %v3679 = vadd.f32 %v3645, %v3663
        %v3680 = vadd.f32 %v3646, %v3664
        %v3681 = vadd.f32 %v3647, %v3665
        %v3682 = vadd.f32 %v3648, %v3666
        %v3683 = vadd.f32 %v3649, %v3667
        %v3684 = vadd.f32 %v3650, %v3668
        %v3685 = vadd.f32 %v3651, %v3669
        %v3686 = vadd.f32 %v3652, %v3670
        %v3687 = vadd.f32 %v3653, %v3671
        %v3688 = vadd.f32 %v3654, %v3672
        %v3689 = vadd.f32 %v3655, %v3673
        %v3690 = vadd.f32 %v3656, %v3674
        %v3691 = vadd.f32 %v3657, %v3675
        %v3692 = vadd.f32 %v3658, %v3676
        %v3693 = vadd.f32 %v3659, %v3677
        %s3694 = sld [smem:[#allocation13 + $0x402]]
        %v3695 = vstv %s3694
        %v3696 = vmul.f32 %v3695, %v1273
        %v3697 = vmul.f32 %v3695, %v1278
        %v3698 = vmul.f32 %v3695, %v1283
        %v3699 = vmul.f32 %v3695, %v1288
        %v3700 = vmul.f32 %v3695, %v1293
        %v3701 = vmul.f32 %v3695, %v1298
        %v3702 = vmul.f32 %v3695, %v1303
        %v3703 = vmul.f32 %v3695, %v1308
        %v3704 = vmul.f32 %v3695, %v1313
        %v3705 = vmul.f32 %v3695, %v1318
        %v3706 = vmul.f32 %v3695, %v1323
        %v3707 = vmul.f32 %v3695, %v1328
        %v3708 = vmul.f32 %v3695, %v1333
        %v3709 = vmul.f32 %v3695, %v1338
        %v3710 = vmul.f32 %v3695, %v1343
        %v3711 = vmul.f32 %v3695, %v1348
        %v3712 = vadd.f32 %v3678, %v3696
        %v3713 = vadd.f32 %v3679, %v3697
        %v3714 = vadd.f32 %v3680, %v3698
        %v3715 = vadd.f32 %v3681, %v3699
        %v3716 = vadd.f32 %v3682, %v3700
        %v3717 = vadd.f32 %v3683, %v3701
        %v3718 = vadd.f32 %v3684, %v3702
        %v3719 = vadd.f32 %v3685, %v3703
        %v3720 = vadd.f32 %v3686, %v3704
        %v3721 = vadd.f32 %v3687, %v3705
        %v3722 = vadd.f32 %v3688, %v3706
        %v3723 = vadd.f32 %v3689, %v3707
        %v3724 = vadd.f32 %v3690, %v3708
        %v3725 = vadd.f32 %v3691, %v3709
        %v3726 = vadd.f32 %v3692, %v3710
        %v3727 = vadd.f32 %v3693, %v3711
        %s3728 = sld [smem:[#allocation13 + $0x403]]
        %v3729 = vstv %s3728
        %v3730 = vmul.f32 %v3729, %v1096
        %v3731 = vmul.f32 %v3729, %v1101
        %v3732 = vmul.f32 %v3729, %v1106
        %v3733 = vmul.f32 %v3729, %v1111
        %v3734 = vmul.f32 %v3729, %v1116
        %v3735 = vmul.f32 %v3729, %v1121
        %v3736 = vmul.f32 %v3729, %v1126
        %v3737 = vmul.f32 %v3729, %v1131
        %v3738 = vmul.f32 %v3729, %v1136
        %v3739 = vmul.f32 %v3729, %v1141
        %v3740 = vmul.f32 %v3729, %v1146
        %v3741 = vmul.f32 %v3729, %v1151
        %v3742 = vmul.f32 %v3729, %v1156
        %v3743 = vmul.f32 %v3729, %v1161
        %v3744 = vmul.f32 %v3729, %v1166
        %v3745 = vmul.f32 %v3729, %v1171
        %v3746 = vadd.f32 %v3712, %v3730
        %v3747 = vadd.f32 %v3713, %v3731
        %v3748 = vadd.f32 %v3714, %v3732
        %v3749 = vadd.f32 %v3715, %v3733
        %v3750 = vadd.f32 %v3716, %v3734
        %v3751 = vadd.f32 %v3717, %v3735
        %v3752 = vadd.f32 %v3718, %v3736
        %v3753 = vadd.f32 %v3719, %v3737
        %v3754 = vadd.f32 %v3720, %v3738
        %v3755 = vadd.f32 %v3721, %v3739
        %v3756 = vadd.f32 %v3722, %v3740
        %v3757 = vadd.f32 %v3723, %v3741
        %v3758 = vadd.f32 %v3724, %v3742
        %v3759 = vadd.f32 %v3725, %v3743
        %v3760 = vadd.f32 %v3726, %v3744
        %v3761 = vadd.f32 %v3727, %v3745
        %s3762 = sld [smem:[#allocation13 + $0x404]]
        %v3763 = vstv %s3762
        %v3764 = vmul.f32 %v3763, %v1353
        %v3765 = vmul.f32 %v3763, %v1358
        %v3766 = vmul.f32 %v3763, %v1363
        %v3767 = vmul.f32 %v3763, %v1368
        %v3768 = vmul.f32 %v3763, %v1373
        %v3769 = vmul.f32 %v3763, %v1378
        %v3770 = vmul.f32 %v3763, %v1383
        %v3771 = vmul.f32 %v3763, %v1388
        %v3772 = vmul.f32 %v3763, %v1393
        %v3773 = vmul.f32 %v3763, %v1398
        %v3774 = vmul.f32 %v3763, %v1403
        %v3775 = vmul.f32 %v3763, %v1408
        %v3776 = vmul.f32 %v3763, %v1413
        %v3777 = vmul.f32 %v3763, %v1418
        %v3778 = vmul.f32 %v3763, %v1423
        %v3779 = vmul.f32 %v3763, %v1428
        %v3780 = vadd.f32 %v3746, %v3764
        %v3781 = vadd.f32 %v3747, %v3765
        %v3782 = vadd.f32 %v3748, %v3766
        %v3783 = vadd.f32 %v3749, %v3767
        %v3784 = vadd.f32 %v3750, %v3768
        %v3785 = vadd.f32 %v3751, %v3769
        %v3786 = vadd.f32 %v3752, %v3770
        %v3787 = vadd.f32 %v3753, %v3771
        %v3788 = vadd.f32 %v3754, %v3772
        %v3789 = vadd.f32 %v3755, %v3773
        %v3790 = vadd.f32 %v3756, %v3774
        %v3791 = vadd.f32 %v3757, %v3775
        %v3792 = vadd.f32 %v3758, %v3776
        %v3793 = vadd.f32 %v3759, %v3777
        %v3794 = vadd.f32 %v3760, %v3778
        %v3795 = vadd.f32 %v3761, %v3779
        %s3796 = sld [smem:[#allocation13 + $0x405]]
        %v3797 = vstv %s3796
        %v3798 = vmul.f32 %v3797, %v1514
        %v3799 = vmul.f32 %v3797, %v1519
        %v3800 = vmul.f32 %v3797, %v1524
        %v3801 = vmul.f32 %v3797, %v1529
        %v3802 = vmul.f32 %v3797, %v1534
        %v3803 = vmul.f32 %v3797, %v1539
        %v3804 = vmul.f32 %v3797, %v1544
        %v3805 = vmul.f32 %v3797, %v1549
        %v3806 = vmul.f32 %v3797, %v1554
        %v3807 = vmul.f32 %v3797, %v1559
        %v3808 = vmul.f32 %v3797, %v1564
        %v3809 = vmul.f32 %v3797, %v1569
        %v3810 = vmul.f32 %v3797, %v1574
        %v3811 = vmul.f32 %v3797, %v1579
        %v3812 = vmul.f32 %v3797, %v1584
        %v3813 = vmul.f32 %v3797, %v1589
        %v3814 = vadd.f32 %v3780, %v3798
        %v3815 = vadd.f32 %v3781, %v3799
        %v3816 = vadd.f32 %v3782, %v3800
        %v3817 = vadd.f32 %v3783, %v3801
        %v3818 = vadd.f32 %v3784, %v3802
        %v3819 = vadd.f32 %v3785, %v3803
        %v3820 = vadd.f32 %v3786, %v3804
        %v3821 = vadd.f32 %v3787, %v3805
        %v3822 = vadd.f32 %v3788, %v3806
        %v3823 = vadd.f32 %v3789, %v3807
        %v3824 = vadd.f32 %v3790, %v3808
        %v3825 = vadd.f32 %v3791, %v3809
        %v3826 = vadd.f32 %v3792, %v3810
        %v3827 = vadd.f32 %v3793, %v3811
        %v3828 = vadd.f32 %v3794, %v3812
        %v3829 = vadd.f32 %v3795, %v3813
        %v3830 = vmax.f32 %v3814, 0.0
        %v3831 = vmax.f32 %v3815, 0.0
        %v3832 = vmax.f32 %v3816, 0.0
        %v3833 = vmax.f32 %v3817, 0.0
        %v3834 = vmax.f32 %v3818, 0.0
        %v3835 = vmax.f32 %v3819, 0.0
        %v3836 = vmax.f32 %v3820, 0.0
        %v3837 = vmax.f32 %v3821, 0.0
        %v3838 = vmax.f32 %v3822, 0.0
        %v3839 = vmax.f32 %v3823, 0.0
        %v3840 = vmax.f32 %v3824, 0.0
        %v3841 = vmax.f32 %v3825, 0.0
        %v3842 = vmax.f32 %v3826, 0.0
        %v3843 = vmax.f32 %v3827, 0.0
        %v3844 = vmax.f32 %v3828, 0.0
        %v3845 = vmax.f32 %v3829, 0.0
        %s3846 = sld [smem:[#allocation16 + $0x8]]
        %v3847 = vstv %s3846
        %v3848 = vmul.f32 %v3847, %v3830
        %v3849 = vmul.f32 %v3847, %v3831
        %v3850 = vmul.f32 %v3847, %v3832
        %v3851 = vmul.f32 %v3847, %v3833
        %v3852 = vmul.f32 %v3847, %v3834
        %v3853 = vmul.f32 %v3847, %v3835
        %v3854 = vmul.f32 %v3847, %v3836
        %v3855 = vmul.f32 %v3847, %v3837
        %v3856 = vmul.f32 %v3847, %v3838
        %v3857 = vmul.f32 %v3847, %v3839
        %v3858 = vmul.f32 %v3847, %v3840
        %v3859 = vmul.f32 %v3847, %v3841
        %v3860 = vmul.f32 %v3847, %v3842
        %v3861 = vmul.f32 %v3847, %v3843
        %v3862 = vmul.f32 %v3847, %v3844
        %v3863 = vmul.f32 %v3847, %v3845
        %v3864 = vadd.f32 %v3608, %v3848
        %v3865 = vadd.f32 %v3609, %v3849
        %v3866 = vadd.f32 %v3610, %v3850
        %v3867 = vadd.f32 %v3611, %v3851
        %v3868 = vadd.f32 %v3612, %v3852
        %v3869 = vadd.f32 %v3613, %v3853
        %v3870 = vadd.f32 %v3614, %v3854
        %v3871 = vadd.f32 %v3615, %v3855
        %v3872 = vadd.f32 %v3616, %v3856
        %v3873 = vadd.f32 %v3617, %v3857
        %v3874 = vadd.f32 %v3618, %v3858
        %v3875 = vadd.f32 %v3619, %v3859
        %v3876 = vadd.f32 %v3620, %v3860
        %v3877 = vadd.f32 %v3621, %v3861
        %v3878 = vadd.f32 %v3622, %v3862
        %v3879 = vadd.f32 %v3623, %v3863
        %s3880 = sld [smem:[#allocation13 + $0x480]]
        %v3881 = vstv %s3880
        %v3882 = vmul.f32 %v3881, %v936
        %v3883 = vmul.f32 %v3881, %v941
        %v3884 = vmul.f32 %v3881, %v946
        %v3885 = vmul.f32 %v3881, %v951
        %v3886 = vmul.f32 %v3881, %v956
        %v3887 = vmul.f32 %v3881, %v961
        %v3888 = vmul.f32 %v3881, %v966
        %v3889 = vmul.f32 %v3881, %v971
        %v3890 = vmul.f32 %v3881, %v976
        %v3891 = vmul.f32 %v3881, %v981
        %v3892 = vmul.f32 %v3881, %v986
        %v3893 = vmul.f32 %v3881, %v991
        %v3894 = vmul.f32 %v3881, %v996
        %v3895 = vmul.f32 %v3881, %v1001
        %v3896 = vmul.f32 %v3881, %v1006
        %v3897 = vmul.f32 %v3881, %v1011
        %s3898 = sld [smem:[#allocation14 + $0x9]]
        %v3899 = vstv %s3898
        %v3900 = vadd.f32 %v3882, %v3899
        %v3901 = vadd.f32 %v3883, %v3899
        %v3902 = vadd.f32 %v3884, %v3899
        %v3903 = vadd.f32 %v3885, %v3899
        %v3904 = vadd.f32 %v3886, %v3899
        %v3905 = vadd.f32 %v3887, %v3899
        %v3906 = vadd.f32 %v3888, %v3899
        %v3907 = vadd.f32 %v3889, %v3899
        %v3908 = vadd.f32 %v3890, %v3899
        %v3909 = vadd.f32 %v3891, %v3899
        %v3910 = vadd.f32 %v3892, %v3899
        %v3911 = vadd.f32 %v3893, %v3899
        %v3912 = vadd.f32 %v3894, %v3899
        %v3913 = vadd.f32 %v3895, %v3899
        %v3914 = vadd.f32 %v3896, %v3899
        %v3915 = vadd.f32 %v3897, %v3899
        %s3916 = sld [smem:[#allocation13 + $0x481]]
        %v3917 = vstv %s3916
        %v3918 = vmul.f32 %v3917, %v1016
        %v3919 = vmul.f32 %v3917, %v1021
        %v3920 = vmul.f32 %v3917, %v1026
        %v3921 = vmul.f32 %v3917, %v1031
        %v3922 = vmul.f32 %v3917, %v1036
        %v3923 = vmul.f32 %v3917, %v1041
        %v3924 = vmul.f32 %v3917, %v1046
        %v3925 = vmul.f32 %v3917, %v1051
        %v3926 = vmul.f32 %v3917, %v1056
        %v3927 = vmul.f32 %v3917, %v1061
        %v3928 = vmul.f32 %v3917, %v1066
        %v3929 = vmul.f32 %v3917, %v1071
        %v3930 = vmul.f32 %v3917, %v1076
        %v3931 = vmul.f32 %v3917, %v1081
        %v3932 = vmul.f32 %v3917, %v1086
        %v3933 = vmul.f32 %v3917, %v1091
        %v3934 = vadd.f32 %v3900, %v3918
        %v3935 = vadd.f32 %v3901, %v3919
        %v3936 = vadd.f32 %v3902, %v3920
        %v3937 = vadd.f32 %v3903, %v3921
        %v3938 = vadd.f32 %v3904, %v3922
        %v3939 = vadd.f32 %v3905, %v3923
        %v3940 = vadd.f32 %v3906, %v3924
        %v3941 = vadd.f32 %v3907, %v3925
        %v3942 = vadd.f32 %v3908, %v3926
        %v3943 = vadd.f32 %v3909, %v3927
        %v3944 = vadd.f32 %v3910, %v3928
        %v3945 = vadd.f32 %v3911, %v3929
        %v3946 = vadd.f32 %v3912, %v3930
        %v3947 = vadd.f32 %v3913, %v3931
        %v3948 = vadd.f32 %v3914, %v3932
        %v3949 = vadd.f32 %v3915, %v3933
        %s3950 = sld [smem:[#allocation13 + $0x482]]
        %v3951 = vstv %s3950
        %v3952 = vmul.f32 %v3951, %v1273
        %v3953 = vmul.f32 %v3951, %v1278
        %v3954 = vmul.f32 %v3951, %v1283
        %v3955 = vmul.f32 %v3951, %v1288
        %v3956 = vmul.f32 %v3951, %v1293
        %v3957 = vmul.f32 %v3951, %v1298
        %v3958 = vmul.f32 %v3951, %v1303
        %v3959 = vmul.f32 %v3951, %v1308
        %v3960 = vmul.f32 %v3951, %v1313
        %v3961 = vmul.f32 %v3951, %v1318
        %v3962 = vmul.f32 %v3951, %v1323
        %v3963 = vmul.f32 %v3951, %v1328
        %v3964 = vmul.f32 %v3951, %v1333
        %v3965 = vmul.f32 %v3951, %v1338
        %v3966 = vmul.f32 %v3951, %v1343
        %v3967 = vmul.f32 %v3951, %v1348
        %v3968 = vadd.f32 %v3934, %v3952
        %v3969 = vadd.f32 %v3935, %v3953
        %v3970 = vadd.f32 %v3936, %v3954
        %v3971 = vadd.f32 %v3937, %v3955
        %v3972 = vadd.f32 %v3938, %v3956
        %v3973 = vadd.f32 %v3939, %v3957
        %v3974 = vadd.f32 %v3940, %v3958
        %v3975 = vadd.f32 %v3941, %v3959
        %v3976 = vadd.f32 %v3942, %v3960
        %v3977 = vadd.f32 %v3943, %v3961
        %v3978 = vadd.f32 %v3944, %v3962
        %v3979 = vadd.f32 %v3945, %v3963
        %v3980 = vadd.f32 %v3946, %v3964
        %v3981 = vadd.f32 %v3947, %v3965
        %v3982 = vadd.f32 %v3948, %v3966
        %v3983 = vadd.f32 %v3949, %v3967
        %s3984 = sld [smem:[#allocation13 + $0x483]]
        %v3985 = vstv %s3984
        %v3986 = vmul.f32 %v3985, %v1096
        %v3987 = vmul.f32 %v3985, %v1101
        %v3988 = vmul.f32 %v3985, %v1106
        %v3989 = vmul.f32 %v3985, %v1111
        %v3990 = vmul.f32 %v3985, %v1116
        %v3991 = vmul.f32 %v3985, %v1121
        %v3992 = vmul.f32 %v3985, %v1126
        %v3993 = vmul.f32 %v3985, %v1131
        %v3994 = vmul.f32 %v3985, %v1136
        %v3995 = vmul.f32 %v3985, %v1141
        %v3996 = vmul.f32 %v3985, %v1146
        %v3997 = vmul.f32 %v3985, %v1151
        %v3998 = vmul.f32 %v3985, %v1156
        %v3999 = vmul.f32 %v3985, %v1161
        %v4000 = vmul.f32 %v3985, %v1166
        %v4001 = vmul.f32 %v3985, %v1171
        %v4002 = vadd.f32 %v3968, %v3986
        %v4003 = vadd.f32 %v3969, %v3987
        %v4004 = vadd.f32 %v3970, %v3988
        %v4005 = vadd.f32 %v3971, %v3989
        %v4006 = vadd.f32 %v3972, %v3990
        %v4007 = vadd.f32 %v3973, %v3991
        %v4008 = vadd.f32 %v3974, %v3992
        %v4009 = vadd.f32 %v3975, %v3993
        %v4010 = vadd.f32 %v3976, %v3994
        %v4011 = vadd.f32 %v3977, %v3995
        %v4012 = vadd.f32 %v3978, %v3996
        %v4013 = vadd.f32 %v3979, %v3997
        %v4014 = vadd.f32 %v3980, %v3998
        %v4015 = vadd.f32 %v3981, %v3999
        %v4016 = vadd.f32 %v3982, %v4000
        %v4017 = vadd.f32 %v3983, %v4001
        %s4018 = sld [smem:[#allocation13 + $0x484]]
        %v4019 = vstv %s4018
        %v4020 = vmul.f32 %v4019, %v1353
        %v4021 = vmul.f32 %v4019, %v1358
        %v4022 = vmul.f32 %v4019, %v1363
        %v4023 = vmul.f32 %v4019, %v1368
        %v4024 = vmul.f32 %v4019, %v1373
        %v4025 = vmul.f32 %v4019, %v1378
        %v4026 = vmul.f32 %v4019, %v1383
        %v4027 = vmul.f32 %v4019, %v1388
        %v4028 = vmul.f32 %v4019, %v1393
        %v4029 = vmul.f32 %v4019, %v1398
        %v4030 = vmul.f32 %v4019, %v1403
        %v4031 = vmul.f32 %v4019, %v1408
        %v4032 = vmul.f32 %v4019, %v1413
        %v4033 = vmul.f32 %v4019, %v1418
        %v4034 = vmul.f32 %v4019, %v1423
        %v4035 = vmul.f32 %v4019, %v1428
        %v4036 = vadd.f32 %v4002, %v4020
        %v4037 = vadd.f32 %v4003, %v4021
        %v4038 = vadd.f32 %v4004, %v4022
        %v4039 = vadd.f32 %v4005, %v4023
        %v4040 = vadd.f32 %v4006, %v4024
        %v4041 = vadd.f32 %v4007, %v4025
        %v4042 = vadd.f32 %v4008, %v4026
        %v4043 = vadd.f32 %v4009, %v4027
        %v4044 = vadd.f32 %v4010, %v4028
        %v4045 = vadd.f32 %v4011, %v4029
        %v4046 = vadd.f32 %v4012, %v4030
        %v4047 = vadd.f32 %v4013, %v4031
        %v4048 = vadd.f32 %v4014, %v4032
        %v4049 = vadd.f32 %v4015, %v4033
        %v4050 = vadd.f32 %v4016, %v4034
        %v4051 = vadd.f32 %v4017, %v4035
        %s4052 = sld [smem:[#allocation13 + $0x485]]
        %v4053 = vstv %s4052
        %v4054 = vmul.f32 %v4053, %v1514
        %v4055 = vmul.f32 %v4053, %v1519
        %v4056 = vmul.f32 %v4053, %v1524
        %v4057 = vmul.f32 %v4053, %v1529
        %v4058 = vmul.f32 %v4053, %v1534
        %v4059 = vmul.f32 %v4053, %v1539
        %v4060 = vmul.f32 %v4053, %v1544
        %v4061 = vmul.f32 %v4053, %v1549
        %v4062 = vmul.f32 %v4053, %v1554
        %v4063 = vmul.f32 %v4053, %v1559
        %v4064 = vmul.f32 %v4053, %v1564
        %v4065 = vmul.f32 %v4053, %v1569
        %v4066 = vmul.f32 %v4053, %v1574
        %v4067 = vmul.f32 %v4053, %v1579
        %v4068 = vmul.f32 %v4053, %v1584
        %v4069 = vmul.f32 %v4053, %v1589
        %v4070 = vadd.f32 %v4036, %v4054
        %v4071 = vadd.f32 %v4037, %v4055
        %v4072 = vadd.f32 %v4038, %v4056
        %v4073 = vadd.f32 %v4039, %v4057
        %v4074 = vadd.f32 %v4040, %v4058
        %v4075 = vadd.f32 %v4041, %v4059
        %v4076 = vadd.f32 %v4042, %v4060
        %v4077 = vadd.f32 %v4043, %v4061
        %v4078 = vadd.f32 %v4044, %v4062
        %v4079 = vadd.f32 %v4045, %v4063
        %v4080 = vadd.f32 %v4046, %v4064
        %v4081 = vadd.f32 %v4047, %v4065
        %v4082 = vadd.f32 %v4048, %v4066
        %v4083 = vadd.f32 %v4049, %v4067
        %v4084 = vadd.f32 %v4050, %v4068
        %v4085 = vadd.f32 %v4051, %v4069
        %v4086 = vmax.f32 %v4070, 0.0
        %v4087 = vmax.f32 %v4071, 0.0
        %v4088 = vmax.f32 %v4072, 0.0
        %v4089 = vmax.f32 %v4073, 0.0
        %v4090 = vmax.f32 %v4074, 0.0
        %v4091 = vmax.f32 %v4075, 0.0
        %v4092 = vmax.f32 %v4076, 0.0
        %v4093 = vmax.f32 %v4077, 0.0
        %v4094 = vmax.f32 %v4078, 0.0
        %v4095 = vmax.f32 %v4079, 0.0
        %v4096 = vmax.f32 %v4080, 0.0
        %v4097 = vmax.f32 %v4081, 0.0
        %v4098 = vmax.f32 %v4082, 0.0
        %v4099 = vmax.f32 %v4083, 0.0
        %v4100 = vmax.f32 %v4084, 0.0
        %v4101 = vmax.f32 %v4085, 0.0
        %s4102 = sld [smem:[#allocation16 + $0x9]]
        %v4103 = vstv %s4102
        %v4104 = vmul.f32 %v4103, %v4086
        %v4105 = vmul.f32 %v4103, %v4087
        %v4106 = vmul.f32 %v4103, %v4088
        %v4107 = vmul.f32 %v4103, %v4089
        %v4108 = vmul.f32 %v4103, %v4090
        %v4109 = vmul.f32 %v4103, %v4091
        %v4110 = vmul.f32 %v4103, %v4092
        %v4111 = vmul.f32 %v4103, %v4093
        %v4112 = vmul.f32 %v4103, %v4094
        %v4113 = vmul.f32 %v4103, %v4095
        %v4114 = vmul.f32 %v4103, %v4096
        %v4115 = vmul.f32 %v4103, %v4097
        %v4116 = vmul.f32 %v4103, %v4098
        %v4117 = vmul.f32 %v4103, %v4099
        %v4118 = vmul.f32 %v4103, %v4100
        %v4119 = vmul.f32 %v4103, %v4101
        %v4120 = vadd.f32 %v3864, %v4104
        %v4121 = vadd.f32 %v3865, %v4105
        %v4122 = vadd.f32 %v3866, %v4106
        %v4123 = vadd.f32 %v3867, %v4107
        %v4124 = vadd.f32 %v3868, %v4108
        %v4125 = vadd.f32 %v3869, %v4109
        %v4126 = vadd.f32 %v3870, %v4110
        %v4127 = vadd.f32 %v3871, %v4111
        %v4128 = vadd.f32 %v3872, %v4112
        %v4129 = vadd.f32 %v3873, %v4113
        %v4130 = vadd.f32 %v3874, %v4114
        %v4131 = vadd.f32 %v3875, %v4115
        %v4132 = vadd.f32 %v3876, %v4116
        %v4133 = vadd.f32 %v3877, %v4117
        %v4134 = vadd.f32 %v3878, %v4118
        %v4135 = vadd.f32 %v3879, %v4119
        %s4136 = sld [smem:[#allocation2]]
        %v4137 = vstv %s4136
        %v4138 = vadd.f32 %v4120, %v4137
        %v4139 = vadd.f32 %v4121, %v4137
        %v4140 = vadd.f32 %v4122, %v4137
        %v4141 = vadd.f32 %v4123, %v4137
        %v4142 = vadd.f32 %v4124, %v4137
        %v4143 = vadd.f32 %v4125, %v4137
        %v4144 = vadd.f32 %v4126, %v4137
        %v4145 = vadd.f32 %v4127, %v4137
        %v4146 = vadd.f32 %v4128, %v4137
        %v4147 = vadd.f32 %v4129, %v4137
        %v4148 = vadd.f32 %v4130, %v4137
        %v4149 = vadd.f32 %v4131, %v4137
        %v4150 = vadd.f32 %v4132, %v4137
        %v4151 = vadd.f32 %v4133, %v4137
        %v4152 = vadd.f32 %v4134, %v4137
        %v4153 = vadd.f32 %v4135, %v4137
        %v4154 = vsub.f32 0.0, %v4138
        %v4155 = vsub.f32 0.0, %v4139
        %v4156 = vsub.f32 0.0, %v4140
        %v4157 = vsub.f32 0.0, %v4141
        %v4158 = vsub.f32 0.0, %v4142
        %v4159 = vsub.f32 0.0, %v4143
        %v4160 = vsub.f32 0.0, %v4144
        %v4161 = vsub.f32 0.0, %v4145
        %v4162 = vsub.f32 0.0, %v4146
        %v4163 = vsub.f32 0.0, %v4147
        %v4164 = vsub.f32 0.0, %v4148
        %v4165 = vsub.f32 0.0, %v4149
        %v4166 = vsub.f32 0.0, %v4150
        %v4167 = vsub.f32 0.0, %v4151
        %v4168 = vsub.f32 0.0, %v4152
        %v4169 = vsub.f32 0.0, %v4153
        %v4170 = vmul.f32 %v4154, 1.442695
        %v4171 = vpow.pop %v4170
        %v4172 = vmul.f32 %v4155, 1.442695
        %v4173 = vpow.pop %v4172
        %v4174 = vmul.f32 %v4156, 1.442695
        %v4175 = vpow.pop %v4174
        %v4176 = vmul.f32 %v4157, 1.442695
        %v4177 = vpow.pop %v4176
        %v4178 = vmul.f32 %v4158, 1.442695
        %v4179 = vpow.pop %v4178
        %v4180 = vmul.f32 %v4159, 1.442695
        %v4181 = vpow.pop %v4180
        %v4182 = vmul.f32 %v4160, 1.442695
        %v4183 = vpow.pop %v4182
        %v4184 = vmul.f32 %v4161, 1.442695
        %v4185 = vpow.pop %v4184
        %v4186 = vmul.f32 %v4162, 1.442695
        %v4187 = vpow.pop %v4186
        %v4188 = vmul.f32 %v4163, 1.442695
        %v4189 = vpow.pop %v4188
        %v4190 = vmul.f32 %v4164, 1.442695
        %v4191 = vpow.pop %v4190
        %v4192 = vmul.f32 %v4165, 1.442695
        %v4193 = vpow.pop %v4192
        %v4194 = vmul.f32 %v4166, 1.442695
        %v4195 = vpow.pop %v4194
        %v4196 = vmul.f32 %v4167, 1.442695
        %v4197 = vpow.pop %v4196
        %v4198 = vmul.f32 %v4168, 1.442695
        %v4199 = vpow.pop %v4198
        %v4200 = vmul.f32 %v4169, 1.442695
        %v4201 = vpow.pop %v4200
        %v4202 = vadd.f32 %v4171, 1.0
        %v4203 = vadd.f32 %v4173, 1.0
        %v4204 = vadd.f32 %v4175, 1.0
        %v4205 = vadd.f32 %v4177, 1.0
        %v4206 = vadd.f32 %v4179, 1.0
        %v4207 = vadd.f32 %v4181, 1.0
        %v4208 = vadd.f32 %v4183, 1.0
        %v4209 = vadd.f32 %v4185, 1.0
        %v4210 = vadd.f32 %v4187, 1.0
        %v4211 = vadd.f32 %v4189, 1.0
        %v4212 = vadd.f32 %v4191, 1.0
        %v4213 = vadd.f32 %v4193, 1.0
        %v4214 = vadd.f32 %v4195, 1.0
        %v4215 = vadd.f32 %v4197, 1.0
        %v4216 = vadd.f32 %v4199, 1.0
        %v4217 = vadd.f32 %v4201, 1.0
        %v4218 = vrcp.pop %v4202
        %v4219 = vrcp.pop %v4203
        %v4220 = vrcp.pop %v4204
        %v4221 = vrcp.pop %v4205
        %v4222 = vrcp.pop %v4206
        %v4223 = vrcp.pop %v4207
        %v4224 = vrcp.pop %v4208
        %v4225 = vrcp.pop %v4209
        %v4226 = vrcp.pop %v4210
        %v4227 = vrcp.pop %v4211
        %v4228 = vrcp.pop %v4212
        %v4229 = vrcp.pop %v4213
        %v4230 = vrcp.pop %v4214
        %v4231 = vrcp.pop %v4215
        %v4232 = vrcp.pop %v4216
        %v4233 = vrcp.pop %v4217
        %4234 = vst [vmem:[%s450] sm:$0xff] %v4218
        %4235 = vst [vmem:[%s450 + $0x8] sm:$0xff] %v4219
        %4236 = vst [vmem:[%s450 + $0x10] sm:$0xff] %v4220
        %4237 = vst [vmem:[%s450 + $0x18] sm:$0xff] %v4221
        %4238 = vst [vmem:[%s450 + $0x20] sm:$0xff] %v4222
        %4239 = vst [vmem:[%s450 + $0x28] sm:$0xff] %v4223
        %4240 = vst [vmem:[%s450 + $0x30] sm:$0xff] %v4224
        %4241 = vst [vmem:[%s450 + $0x38] sm:$0xff] %v4225
        %4242 = vst [vmem:[%s450 + $0x40] sm:$0xff] %v4226
        %4243 = vst [vmem:[%s450 + $0x48] sm:$0xff] %v4227
        %4244 = vst [vmem:[%s450 + $0x50] sm:$0xff] %v4228
        %4245 = vst [vmem:[%s450 + $0x58] sm:$0xff] %v4229
        %4246 = vst [vmem:[%s450 + $0x60] sm:$0xff] %v4230
        %4247 = vst [vmem:[%s450 + $0x68] sm:$0xff] %v4231
        %4248 = vst [vmem:[%s450 + $0x70] sm:$0xff] %v4232
        %4249 = vst [vmem:[%s450 + $0x78] sm:$0xff] %v4233
        %s4250 = sand.u32 %s233, 1
        %s4251 = scalar_lea.sflag [#allocation5], %s4250
        %s4252 = sand.u32 %s233, 1
        %s4253 = smul.addr %s4252, 128
        %s4254 = scalar_lea.vmem [#allocation17], %s4253
        // Predicated region
        $region89: #{tpu_custom_call.1} parent=55 // pred_check
          %p4255 = pneg %p243
        $region90: #{tpu_custom_call.1} parent=55 // pred_check_branch
          %4257 = sbr.rel (%p4255) target = $region92
        $region91: #{tpu_custom_call.1} parent=55 // pred_region
          %s4259 = ssub.s32 2048, 2048
          %4260 = vsyncadd %s4251, %s4259
          %s4261 = smul.addr %s31, 16
          %s4262 = smul.addr %s4261, 128
          %s4263 = scalar_lea.hbm %s9, %s4262
          %s4264 = sshll.u32 %s4254, 4
          %s4265 = int_to_ptr.vmem [resolvable:$true] %s4264
          %4270 = dma.vmem_to_hbm [thread:$0]  %s4265, 2048, %s4263, %s4251, 128, 128, 8
        $region92: #{tpu_custom_call.1} parent=55 // pred_fallthru
          _
      $region56: #{tpu_custom_call.1} parent=5 // pred_fallthru
        _
      %p4271 = scmp.le.s32.totalorder 2, %s26
      // Predicated region
      $region93: #{tpu_custom_call.1} parent=5 // pred_check
        %p4272 = pneg %p4271
      $region94: #{tpu_custom_call.1} parent=5 // pred_check_branch
        %4274 = sbr.rel (%p4272) target = $region96
      $region95: #{tpu_custom_call.1} parent=5 // pred_region
        %s4275 = ssub.s32 %s26, 2
        // Predicated region
        $region97: #{tpu_custom_call.1} parent=95 // pred_check
          %p4276 = pneg %p249
        $region98: #{tpu_custom_call.1} parent=95 // pred_check_branch
          %4278 = sbr.rel (%p4276) target = $region100
        $region99: #{tpu_custom_call.1} parent=95 // pred_region
          %s4279 = sand.u32 %s234, 1
          %s4280 = scalar_lea.sflag [#allocation5], %s4279
          %s4281 = sand.u32 %s234, 1
          %s4282 = smul.addr %s4281, 128
          %s4283 = scalar_lea.vmem [#allocation17], %s4282
          %4284 = dma.done %s4280, 2048
        $region100: #{tpu_custom_call.1} parent=95 // pred_fallthru
          _
      $region96: #{tpu_custom_call.1} parent=5 // pred_fallthru
        _
    $region6: #{tpu_custom_call.1} parent=1 // loop_footer
      %s30 = sadd.s32 1, %s26
    $region7: #{tpu_custom_call.1} parent=1 // loop_footer_branch
      %25 = sbr.rel target = $region3
    $region8: #{tpu_custom_call.1} parent=1 // loop_exit
      _
    %4285 = vsyncpa [#allocation4], 1
    %s4286 = scalar_lea.sflag [#allocation4], 1
    %4287 = vsyncpa %s4286, 1
    %4288 = vsyncpa [#allocation8], 1
    %4289 = vsyncpa [#allocation11], 1
    %4290 = vsyncpa [#allocation5], 1
    %s4291 = scalar_lea.sflag [#allocation5], 1
    %4292 = vsyncpa %s4291, 1
    %4293 = vsyncpa [#allocation6], 1
    %s4294 = scalar_lea.sflag [#allocation6], 1
    %4295 = vsyncpa %s4294, 1
    %4296 = vsyncpa [#allocation15], 1

</llo_original>
